<compile_context>
chip_gen: v7x
topology: tpu7x:2x2x1
jax: 0.10.0
libtpu: 0.0.40
codegen_flags: <defaults>
</compile_context>

<pallas_src>
import math
from functools import partial

import jax
import jax.numpy as jnp
from jax import lax
from jax.experimental import pallas as pl
from jax.experimental.pallas import tpu as pltpu

LN_EPS = 1e-6  # partial(nn.LayerNorm, eps=1e-06)
_GELU_C = math.sqrt(2.0 / math.pi)


def _gelu_tanh(x):
    # tanh-approximate GELU (EUP tanh); deviates from exact erf GELU by <~1e-3,
    # inside the bf16 matmul noise floor.
    return 0.5 * x * (1.0 + jnp.tanh(_GELU_C * (x + 0.044715 * x * x * x)))


def _layernorm(x, w, b):
    mean = jnp.mean(x, axis=-1, keepdims=True)
    xc = x - mean
    var = jnp.mean(xc * xc, axis=-1, keepdims=True)
    return xc * lax.rsqrt(var + LN_EPS) * w + b


def _mhsa_kernel(xkv_ref, n1w_ref, n1b_ref,
                 wq_ref, bq_ref, wk_ref, bk_ref, wv_ref, bv_ref,
                 wo_ref, bo_ref, n2w_ref, n2b_ref,
                 w1_ref, b1_ref, w2_ref, b2_ref,
                 o_ref,
                 k_cache, v_cache, av_scratch,
                 *, num_heads, tl, compute_dtype):
    f32 = jnp.float32
    l_idx = pl.program_id(1)

    # ---- per-batch K/V cache: filled once (first query tile of this batch) ----
    @pl.when(l_idx == 0)
    def _():
        xkv = xkv_ref[...].astype(f32)                               # (L, C)
        xn = _layernorm(xkv, n1w_ref[...], n1b_ref[...]).astype(compute_dtype)
        k = jnp.dot(xn, wk_ref[...], preferred_element_type=f32) + bk_ref[...]
        v = jnp.dot(xn, wv_ref[...], preferred_element_type=f32) + bv_ref[...]
        k_cache[...] = k.astype(compute_dtype)
        v_cache[...] = v.astype(compute_dtype)

    # ---- query tile: rows of the resident full-sequence block ----
    row0 = pl.multiple_of(l_idx * tl, tl)
    xq = xkv_ref[pl.ds(row0, tl), :].astype(f32)                     # (TL, C) residual
    xnq = _layernorm(xq, n1w_ref[...], n1b_ref[...]).astype(compute_dtype)
    # scale 1/sqrt(hd) already folded into wq / bq by the wrapper
    q = (jnp.dot(xnq, wq_ref[...], preferred_element_type=f32)
         + bq_ref[...]).astype(compute_dtype)                        # (TL, C)

    C = q.shape[-1]
    hd = C // num_heads
    # TODO(synk): for num_heads > 8 switch to lax.fori_loop over heads (dynamic
    # lane slices, VMEM-carried accumulator) to bound vreg live ranges.
    for h in range(num_heads):
        sl = slice(h * hd, (h + 1) * hd)
        qh = q[:, sl]                                                # (TL, hd)
        kh = k_cache[:, sl]                                          # (L, hd)
        # scores = q @ k^T via contracting dims -> no explicit transpose
        s = lax.dot_general(qh, kh, (((1,), (1,)), ((), ())),
                            preferred_element_type=f32)              # (TL, L)
        s = s - jnp.max(s, axis=-1, keepdims=True)
        p = jnp.exp(s)
        denom = jnp.sum(p, axis=-1, keepdims=True)
        av = jnp.dot(p.astype(compute_dtype), v_cache[:, sl],
                     preferred_element_type=f32)                     # (TL, hd)
        # normalize AFTER the AV matmul: TL*hd multiplies instead of TL*L
        av_scratch[:, sl] = av * pl.reciprocal(denom, approx=True)

    attn = jnp.dot(av_scratch[...].astype(compute_dtype), wo_ref[...],
                   preferred_element_type=f32) + bo_ref[...]         # (TL, C)
    x1 = xq + attn

    # ---- MLP branch ----
    # TODO(synk): stream w1/w2 in hidden-dim slabs (extra grid axis or
    # pltpu.emit_pipeline) so large-C configs fit v7x's 64 MiB VMEM.
    xn2 = _layernorm(x1, n2w_ref[...], n2b_ref[...]).astype(compute_dtype)
    hmid = jnp.dot(xn2, w1_ref[...], preferred_element_type=f32) + b1_ref[...]
    hmid = _gelu_tanh(hmid)                                          # f32 elementwise
    y = jnp.dot(hmid.astype(compute_dtype), w2_ref[...],
                preferred_element_type=f32) + b2_ref[...]

    o_ref[...] = (x1 + y).astype(o_ref.dtype)


def _prep_operands(params, num_heads, compute_dtype):
    """PyTorch-layout params -> kernel operands (bf16 matmul weights, f32 biases/LN)."""
    f32 = jnp.float32
    C = params["norm1_w"].shape[0]
    H = params["b1"].shape[0]
    hd = C // num_heads
    scale = 1.0 / math.sqrt(hd)

    wqkv_t = params["wqkv_t"].astype(f32)    # (C, 3C), columns ordered [Q | K | V]
    bqkv = params["bqkv"].astype(f32)        # (3C,)

    wq = (wqkv_t[:, 0:C] * scale).astype(compute_dtype)       # softmax scale folded in
    wk = wqkv_t[:, C:2 * C].astype(compute_dtype)
    wv = wqkv_t[:, 2 * C:3 * C].astype(compute_dtype)
    bq = (bqkv[0:C] * scale).reshape(1, C).astype(f32)
    bk = bqkv[C:2 * C].reshape(1, C).astype(f32)
    bv = bqkv[2 * C:3 * C].reshape(1, C).astype(f32)

    return [
        params["norm1_w"].reshape(1, C).astype(f32),
        params["norm1_b"].reshape(1, C).astype(f32),
        wq, bq, wk, bk, wv, bv,
        params["wo_t"].astype(compute_dtype),                 # (C, C)
        params["bo"].reshape(1, C).astype(f32),
        params["norm2_w"].reshape(1, C).astype(f32),
        params["norm2_b"].reshape(1, C).astype(f32),
        params["w1_t"].astype(compute_dtype),                 # (C, H)
        params["b1"].reshape(1, H).astype(f32),
        params["w2_t"].astype(compute_dtype),                 # (H, C)
        params["b2"].reshape(1, C).astype(f32),
    ]


def mhsa_block(x, params, num_heads, *, l_tile=None, compute_dtype=jnp.bfloat16):
    B, L, C = x.shape

    # per-generation VMEM budget: physical capacity minus headroom
    try:
        vmem_cap = int(pltpu.get_tpu_info().vmem_capacity_bytes)
    except Exception:
        vmem_cap = 128 * 2**20
    vmem_limit = int(max(32 * 2**20, vmem_cap - 8 * 2**20))

    if l_tile is None:
        # bigger query tiles on 128 MiB parts (v5e/v6e); 128 on v7x (64 MiB/TC)
        l_tile = 256 if vmem_cap >= 96 * 2**20 else 128
    tl = min(l_tile, L)
    if L % tl != 0 or (tl < L and tl % 8 != 0):
        tl = L
    n_l = L // tl

    operands = _prep_operands(params, num_heads, compute_dtype)
    x_c = x.astype(compute_dtype)   # bf16 activation DMA; kernel upcasts to f32

    kernel = partial(_mhsa_kernel, num_heads=num_heads, tl=tl,
                     compute_dtype=compute_dtype)

    # TODO(synk): on v7x with B == 1 add a leading size-2 "parallel" grid axis over
    # head groups so both TensorCores stay busy (L is "arbitrary" for K/V caching).
    def build(single_buffer_weights):
        in_specs = [
            # full sequence, constant across the l axis -> stays resident in VMEM
            pl.BlockSpec((None, L, C), lambda b, l: (b, 0, 0)),
        ]
        for w in operands:
            kw = {"pipeline_mode": pl.Buffered(1)} if single_buffer_weights else {}
            in_specs.append(
                pl.BlockSpec(w.shape, lambda b, l, n=w.ndim: (0,) * n, **kw))
        grid_spec = pltpu.PrefetchScalarGridSpec(
            num_scalar_prefetch=0,
            grid=(B, n_l),
            in_specs=in_specs,
            out_specs=pl.BlockSpec((None, tl, C), lambda b, l: (b, l, 0)),
            scratch_shapes=[
                pltpu.VMEM((L, C), compute_dtype),   # per-batch K cache
                pltpu.VMEM((L, C), compute_dtype),   # per-batch V cache
                pltpu.VMEM((tl, C), jnp.float32),    # per-tile AV (head concat)
            ],
        )
        return pl.pallas_call(
            kernel,
            out_shape=jax.ShapeDtypeStruct((B, L, C), x.dtype),
            grid_spec=grid_spec,
            compiler_params=pltpu.CompilerParams(
                dimension_semantics=("parallel", "arbitrary"),
                vmem_limit_bytes=vmem_limit,
            ),
        )

    try:
        out = build(True)(x_c, *operands)
        return jax.block_until_ready(out)
    except Exception:
        # Fallback if this jax version rejects pl.Buffered(1) single-buffering.
        return build(False)(x_c, *operands)


def init_params(key, C, mlp_ratio=4.0):
    H = int(mlp_ratio * C)
    ks = jax.random.split(key, 6)
    # PyTorch-layout weights: in_proj (3C, C), out_proj (C, C), mlp (H, C) / (C, H)
    wqkv = jax.random.normal(ks[0], (3 * C, C), jnp.float32) * 0.05
    bqkv = jax.random.normal(ks[1], (3 * C,), jnp.float32) * 0.05
    wo = jax.random.normal(ks[2], (C, C), jnp.float32) * 0.05
    bo = jnp.zeros((C,), jnp.float32)
    w1 = jax.random.normal(ks[3], (H, C), jnp.float32) * 0.05
    b1 = jax.random.normal(ks[4], (H,), jnp.float32) * 0.05
    w2 = jax.random.normal(ks[5], (C, H), jnp.float32) * 0.05
    b2 = jnp.zeros((C,), jnp.float32)
    return dict(
        norm1_w=jnp.ones((C,), jnp.float32), norm1_b=jnp.zeros((C,), jnp.float32),
        wqkv_t=wqkv.T, bqkv=bqkv, wo_t=wo.T, bo=bo,
        norm2_w=jnp.ones((C,), jnp.float32), norm2_b=jnp.zeros((C,), jnp.float32),
        w1_t=w1.T, b1=b1, w2_t=w2.T, b2=b2,
    )


def reference(x, p, num_heads):
    # Plain-JAX f32 replica of the PyTorch forward, used only for validation.
    B, L, C = x.shape
    Dh = C // num_heads

    def ln(z, w, b):
        m = jnp.mean(z, -1, keepdims=True)
        v = jnp.mean((z - m) ** 2, -1, keepdims=True)
        return (z - m) / jnp.sqrt(v + LN_EPS) * w + b

    shortcut = x
    xn = ln(x, p["norm1_w"], p["norm1_b"])
    qkv = xn @ p["wqkv_t"] + p["bqkv"]
    q, k, v = qkv[..., :C], qkv[..., C:2 * C], qkv[..., 2 * C:]
    q = q.reshape(B, L, num_heads, Dh).transpose(0, 2, 1, 3) / math.sqrt(Dh)
    k = k.reshape(B, L, num_heads, Dh).transpose(0, 2, 1, 3)
    v = v.reshape(B, L, num_heads, Dh).transpose(0, 2, 1, 3)
    a = jax.nn.softmax(q @ k.transpose(0, 1, 3, 2), axis=-1)
    o = (a @ v).transpose(0, 2, 1, 3).reshape(B, L, C)
    o = o @ p["wo_t"] + p["bo"]
    x1 = shortcut + o
    xn2 = ln(x1, p["norm2_w"], p["norm2_b"])
    h = jax.nn.gelu(xn2 @ p["w1_t"] + p["b1"], approximate=False)
    y = h @ p["w2_t"] + p["b2"]
    return x1 + y


if __name__ == "__main__":
    B, L, C, num_heads = 2, 8, 32, 4   # embed_dim=32, num_heads=4, mlp hidden=128
    key = jax.random.PRNGKey(0)
    kx, kp = jax.random.split(key)
    x = jax.random.normal(kx, (B, L, C), jnp.float32)
    params = init_params(kp, C)

    out = mhsa_block(x, params, num_heads)
    out = jax.block_until_ready(out)

    ref = reference(x, params, num_heads)
    assert out.shape == (B, L, C)
    err = float(jnp.max(jnp.abs(out - ref)))
    # bf16 inputs + bf16 MXU operands + tanh GELU vs. the f32/erf reference
    assert jnp.allclose(out, ref, atol=2e-2, rtol=2e-2), err
    print("KERNEL_OK")
</pallas_src>

<mosaic_0001>
module attributes {stable_mosaic.version = 11 : i64} {
  func.func @_mhsa_kernel(%arg0: i32, %arg1: i32, %arg2: memref<1x8x32xbf16, #tpu.memory_space<vmem>>, %arg3: memref<1x32xf32, #tpu.memory_space<vmem>>, %arg4: memref<1x32xf32, #tpu.memory_space<vmem>>, %arg5: memref<32x32xbf16, #tpu.memory_space<vmem>>, %arg6: memref<1x32xf32, #tpu.memory_space<vmem>>, %arg7: memref<32x32xbf16, #tpu.memory_space<vmem>>, %arg8: memref<1x32xf32, #tpu.memory_space<vmem>>, %arg9: memref<32x32xbf16, #tpu.memory_space<vmem>>, %arg10: memref<1x32xf32, #tpu.memory_space<vmem>>, %arg11: memref<32x32xbf16, #tpu.memory_space<vmem>>, %arg12: memref<1x32xf32, #tpu.memory_space<vmem>>, %arg13: memref<1x32xf32, #tpu.memory_space<vmem>>, %arg14: memref<1x32xf32, #tpu.memory_space<vmem>>, %arg15: memref<32x128xbf16, #tpu.memory_space<vmem>>, %arg16: memref<1x128xf32, #tpu.memory_space<vmem>>, %arg17: memref<128x32xbf16, #tpu.memory_space<vmem>>, %arg18: memref<1x32xf32, #tpu.memory_space<vmem>>, %arg19: memref<1x8x32xf32, #tpu.memory_space<vmem>>, %arg20: memref<8x32xbf16, #tpu.memory_space<vmem>>, %arg21: memref<8x32xbf16, #tpu.memory_space<vmem>>, %arg22: memref<8x32xf32, #tpu.memory_space<vmem>>) attributes {dimension_semantics = [#tpu.dimension_semantics<parallel>, #tpu.dimension_semantics<arbitrary>], iteration_bounds = array<i64: 2, 1>, scalar_prefetch = 0 : i64, scratch_operands = 3 : i64, tpu.core_type = #tpu.core_type<tc>, window_params = [{transform_indices = @transform_0, window_bounds = array<i64: 1, 8, 32>}, {pipeline_mode = #tpu.pipeline_mode<synchronous>, transform_indices = @transform_1, window_bounds = array<i64: 1, 32>}, {pipeline_mode = #tpu.pipeline_mode<synchronous>, transform_indices = @transform_2, window_bounds = array<i64: 1, 32>}, {pipeline_mode = #tpu.pipeline_mode<synchronous>, transform_indices = @transform_3, window_bounds = array<i64: 32, 32>}, {pipeline_mode = #tpu.pipeline_mode<synchronous>, transform_indices = @transform_4, window_bounds = array<i64: 1, 32>}, {pipeline_mode = #tpu.pipeline_mode<synchronous>, transform_indices = @transform_5, window_bounds = array<i64: 32, 32>}, {pipeline_mode = #tpu.pipeline_mode<synchronous>, transform_indices = @transform_6, window_bounds = array<i64: 1, 32>}, {pipeline_mode = #tpu.pipeline_mode<synchronous>, transform_indices = @transform_7, window_bounds = array<i64: 32, 32>}, {pipeline_mode = #tpu.pipeline_mode<synchronous>, transform_indices = @transform_8, window_bounds = array<i64: 1, 32>}, {pipeline_mode = #tpu.pipeline_mode<synchronous>, transform_indices = @transform_9, window_bounds = array<i64: 32, 32>}, {pipeline_mode = #tpu.pipeline_mode<synchronous>, transform_indices = @transform_10, window_bounds = array<i64: 1, 32>}, {pipeline_mode = #tpu.pipeline_mode<synchronous>, transform_indices = @transform_11, window_bounds = array<i64: 1, 32>}, {pipeline_mode = #tpu.pipeline_mode<synchronous>, transform_indices = @transform_12, window_bounds = array<i64: 1, 32>}, {pipeline_mode = #tpu.pipeline_mode<synchronous>, transform_indices = @transform_13, window_bounds = array<i64: 32, 128>}, {pipeline_mode = #tpu.pipeline_mode<synchronous>, transform_indices = @transform_14, window_bounds = array<i64: 1, 128>}, {pipeline_mode = #tpu.pipeline_mode<synchronous>, transform_indices = @transform_15, window_bounds = array<i64: 128, 32>}, {pipeline_mode = #tpu.pipeline_mode<synchronous>, transform_indices = @transform_16, window_bounds = array<i64: 1, 32>}, {transform_indices = @transform_17, window_bounds = array<i64: 1, 8, 32>}]} {
    %c0_i32 = arith.constant 0 : i32
    %0 = arith.cmpi eq, %arg1, %c0_i32 : i32
    %1 = arith.extui %0 : i1 to i32
    %c0_i32_0 = arith.constant 0 : i32
    %2 = arith.cmpi ne, %1, %c0_i32_0 : i32
    scf.if %2 {
      %c0_85 = arith.constant 0 : index
      %c0_86 = arith.constant 0 : index
      %c0_87 = arith.constant 0 : index
      %165 = vector.load %arg2[%c0_85, %c0_86, %c0_87] : memref<1x8x32xbf16, #tpu.memory_space<vmem>>, vector<1x8x32xbf16>
      %166 = vector.shape_cast %165 : vector<1x8x32xbf16> to vector<8x32xbf16>
      %167 = arith.extf %166 : vector<8x32xbf16> to vector<8x32xf32>
      %c0_88 = arith.constant 0 : index
      %c0_89 = arith.constant 0 : index
      %168 = vector.load %arg3[%c0_88, %c0_89] : memref<1x32xf32, #tpu.memory_space<vmem>>, vector<1x32xf32>
      %c0_90 = arith.constant 0 : index
      %c0_91 = arith.constant 0 : index
      %169 = vector.load %arg4[%c0_90, %c0_91] : memref<1x32xf32, #tpu.memory_space<vmem>>, vector<1x32xf32>
      %cst_92 = arith.constant dense<0.000000e+00> : vector<8xf32>
      %170 = vector.multi_reduction <add>, %167, %cst_92 [1] : vector<8x32xf32> to vector<8xf32>
      %171 = vector.shape_cast %170 : vector<8xf32> to vector<8x1xf32>
      %cst_93 = arith.constant 3.200000e+01 : f32
      %172 = vector.broadcast %cst_93 : f32 to vector<8x1xf32>
      %173 = arith.divf %171, %172 : vector<8x1xf32>
      %174 = vector.broadcast %173 : vector<8x1xf32> to vector<8x32xf32>
      %175 = arith.subf %167, %174 : vector<8x32xf32>
      %176 = arith.mulf %175, %175 : vector<8x32xf32>
      %cst_94 = arith.constant dense<0.000000e+00> : vector<8xf32>
      %177 = vector.multi_reduction <add>, %176, %cst_94 [1] : vector<8x32xf32> to vector<8xf32>
      %178 = vector.shape_cast %177 : vector<8xf32> to vector<8x1xf32>
      %cst_95 = arith.constant 3.200000e+01 : f32
      %179 = vector.broadcast %cst_95 : f32 to vector<8x1xf32>
      %180 = arith.divf %178, %179 : vector<8x1xf32>
      %cst_96 = arith.constant 9.99999997E-7 : f32
      %181 = vector.broadcast %cst_96 : f32 to vector<8x1xf32>
      %182 = arith.addf %180, %181 : vector<8x1xf32>
      %183 = math.rsqrt %182 : vector<8x1xf32>
      %184 = vector.broadcast %183 : vector<8x1xf32> to vector<8x32xf32>
      %185 = arith.mulf %175, %184 : vector<8x32xf32>
      %186 = vector.broadcast %168 : vector<1x32xf32> to vector<8x32xf32>
      %187 = arith.mulf %185, %186 : vector<8x32xf32>
      %188 = vector.broadcast %169 : vector<1x32xf32> to vector<8x32xf32>
      %189 = arith.addf %187, %188 : vector<8x32xf32>
      %190 = arith.truncf %189 : vector<8x32xf32> to vector<8x32xbf16>
      %c0_97 = arith.constant 0 : index
      %c0_98 = arith.constant 0 : index
      %191 = vector.load %arg7[%c0_97, %c0_98] : memref<32x32xbf16, #tpu.memory_space<vmem>>, vector<32x32xbf16>
      %cst_99 = arith.constant dense<0.000000e+00> : vector<8x32xf32>
      %192 = tpu.matmul %190, %191, %cst_99 {dimension_numbers = #tpu.dot_dimension_numbers<[1], [0], [0], [1], [0, 0, 1, 1], [], []>} : vector<8x32xbf16>, vector<32x32xbf16>, vector<8x32xf32> -> vector<8x32xf32>
      %c0_100 = arith.constant 0 : index
      %c0_101 = arith.constant 0 : index
      %193 = vector.load %arg8[%c0_100, %c0_101] : memref<1x32xf32, #tpu.memory_space<vmem>>, vector<1x32xf32>
      %194 = vector.broadcast %193 : vector<1x32xf32> to vector<8x32xf32>
      %195 = arith.addf %192, %194 : vector<8x32xf32>
      %c0_102 = arith.constant 0 : index
      %c0_103 = arith.constant 0 : index
      %196 = vector.load %arg9[%c0_102, %c0_103] : memref<32x32xbf16, #tpu.memory_space<vmem>>, vector<32x32xbf16>
      %cst_104 = arith.constant dense<0.000000e+00> : vector<8x32xf32>
      %197 = tpu.matmul %190, %196, %cst_104 {dimension_numbers = #tpu.dot_dimension_numbers<[1], [0], [0], [1], [0, 0, 1, 1], [], []>} : vector<8x32xbf16>, vector<32x32xbf16>, vector<8x32xf32> -> vector<8x32xf32>
      %c0_105 = arith.constant 0 : index
      %c0_106 = arith.constant 0 : index
      %198 = vector.load %arg10[%c0_105, %c0_106] : memref<1x32xf32, #tpu.memory_space<vmem>>, vector<1x32xf32>
      %199 = vector.broadcast %198 : vector<1x32xf32> to vector<8x32xf32>
      %200 = arith.addf %197, %199 : vector<8x32xf32>
      %201 = arith.truncf %195 : vector<8x32xf32> to vector<8x32xbf16>
      %c0_107 = arith.constant 0 : index
      %c0_108 = arith.constant 0 : index
      %202 = vector.load %arg20[%c0_107, %c0_108] : memref<8x32xbf16, #tpu.memory_space<vmem>>, vector<8x32xbf16>
      tpu.vector_store %arg20[%c0_107, %c0_108], %201 {strides = array<i32>} : memref<8x32xbf16, #tpu.memory_space<vmem>>, vector<8x32xbf16>,
      %203 = arith.truncf %200 : vector<8x32xf32> to vector<8x32xbf16>
      %c0_109 = arith.constant 0 : index
      %c0_110 = arith.constant 0 : index
      %204 = vector.load %arg21[%c0_109, %c0_110] : memref<8x32xbf16, #tpu.memory_space<vmem>>, vector<8x32xbf16>
      tpu.vector_store %arg21[%c0_109, %c0_110], %203 {strides = array<i32>} : memref<8x32xbf16, #tpu.memory_space<vmem>>, vector<8x32xbf16>,
    } else {
    }
    %c8_i32 = arith.constant 8 : i32
    %3 = arith.muli %arg1, %c8_i32 : i32
    %4 = tpu.assume_multiple %3, 8 : i32
    %c0 = arith.constant 0 : index
    %5 = arith.index_cast %4 : i32 to index
    %c0_1 = arith.constant 0 : index
    %6 = vector.load %arg2[%c0, %5, %c0_1] : memref<1x8x32xbf16, #tpu.memory_space<vmem>>, vector<1x8x32xbf16>
    %7 = vector.shape_cast %6 : vector<1x8x32xbf16> to vector<8x32xbf16>
    %8 = arith.extf %7 : vector<8x32xbf16> to vector<8x32xf32>
    %c0_2 = arith.constant 0 : index
    %c0_3 = arith.constant 0 : index
    %9 = vector.load %arg3[%c0_2, %c0_3] : memref<1x32xf32, #tpu.memory_space<vmem>>, vector<1x32xf32>
    %c0_4 = arith.constant 0 : index
    %c0_5 = arith.constant 0 : index
    %10 = vector.load %arg4[%c0_4, %c0_5] : memref<1x32xf32, #tpu.memory_space<vmem>>, vector<1x32xf32>
    %cst = arith.constant dense<0.000000e+00> : vector<8xf32>
    %11 = vector.multi_reduction <add>, %8, %cst [1] : vector<8x32xf32> to vector<8xf32>
    %12 = vector.shape_cast %11 : vector<8xf32> to vector<8x1xf32>
    %cst_6 = arith.constant 3.200000e+01 : f32
    %13 = vector.broadcast %cst_6 : f32 to vector<8x1xf32>
    %14 = arith.divf %12, %13 : vector<8x1xf32>
    %15 = vector.broadcast %14 : vector<8x1xf32> to vector<8x32xf32>
    %16 = arith.subf %8, %15 : vector<8x32xf32>
    %17 = arith.mulf %16, %16 : vector<8x32xf32>
    %cst_7 = arith.constant dense<0.000000e+00> : vector<8xf32>
    %18 = vector.multi_reduction <add>, %17, %cst_7 [1] : vector<8x32xf32> to vector<8xf32>
    %19 = vector.shape_cast %18 : vector<8xf32> to vector<8x1xf32>
    %cst_8 = arith.constant 3.200000e+01 : f32
    %20 = vector.broadcast %cst_8 : f32 to vector<8x1xf32>
    %21 = arith.divf %19, %20 : vector<8x1xf32>
    %cst_9 = arith.constant 9.99999997E-7 : f32
    %22 = vector.broadcast %cst_9 : f32 to vector<8x1xf32>
    %23 = arith.addf %21, %22 : vector<8x1xf32>
    %24 = math.rsqrt %23 : vector<8x1xf32>
    %25 = vector.broadcast %24 : vector<8x1xf32> to vector<8x32xf32>
    %26 = arith.mulf %16, %25 : vector<8x32xf32>
    %27 = vector.broadcast %9 : vector<1x32xf32> to vector<8x32xf32>
    %28 = arith.mulf %26, %27 : vector<8x32xf32>
    %29 = vector.broadcast %10 : vector<1x32xf32> to vector<8x32xf32>
    %30 = arith.addf %28, %29 : vector<8x32xf32>
    %31 = arith.truncf %30 : vector<8x32xf32> to vector<8x32xbf16>
    %c0_10 = arith.constant 0 : index
    %c0_11 = arith.constant 0 : index
    %32 = vector.load %arg5[%c0_10, %c0_11] : memref<32x32xbf16, #tpu.memory_space<vmem>>, vector<32x32xbf16>
    %cst_12 = arith.constant dense<0.000000e+00> : vector<8x32xf32>
    %33 = tpu.matmul %31, %32, %cst_12 {dimension_numbers = #tpu.dot_dimension_numbers<[1], [0], [0], [1], [0, 0, 1, 1], [], []>} : vector<8x32xbf16>, vector<32x32xbf16>, vector<8x32xf32> -> vector<8x32xf32>
    %c0_13 = arith.constant 0 : index
    %c0_14 = arith.constant 0 : index
    %34 = vector.load %arg6[%c0_13, %c0_14] : memref<1x32xf32, #tpu.memory_space<vmem>>, vector<1x32xf32>
    %35 = vector.broadcast %34 : vector<1x32xf32> to vector<8x32xf32>
    %36 = arith.addf %33, %35 : vector<8x32xf32>
    %37 = arith.truncf %36 : vector<8x32xf32> to vector<8x32xbf16>
    %38 = vector.extract_strided_slice %37 {offsets = [0, 0], sizes = [8, 8], strides = [1, 1]} : vector<8x32xbf16> to vector<8x8xbf16>
    %c0_15 = arith.constant 0 : index
    %c0_16 = arith.constant 0 : index
    %39 = vector.load %arg20[%c0_15, %c0_16] : memref<8x32xbf16, #tpu.memory_space<vmem>>, vector<8x8xbf16>
    %cst_17 = arith.constant dense<0.000000e+00> : vector<8x8xf32>
    %40 = tpu.matmul %38, %39, %cst_17 {dimension_numbers = #tpu.dot_dimension_numbers<[1], [1], [0], [0], [0, 0, 1, 0], [], []>} : vector<8x8xbf16>, vector<8x8xbf16>, vector<8x8xf32> -> vector<8x8xf32>
    %cst_18 = arith.constant dense<0xFF800000> : vector<8xf32>
    %41 = vector.multi_reduction <maximumf>, %40, %cst_18 [1] : vector<8x8xf32> to vector<8xf32>
    %42 = vector.shape_cast %41 : vector<8xf32> to vector<8x1xf32>
    %43 = vector.broadcast %42 : vector<8x1xf32> to vector<8x8xf32>
    %44 = arith.subf %40, %43 : vector<8x8xf32>
    %45 = math.exp %44 : vector<8x8xf32>
    %cst_19 = arith.constant dense<0.000000e+00> : vector<8xf32>
    %46 = vector.multi_reduction <add>, %45, %cst_19 [1] : vector<8x8xf32> to vector<8xf32>
    %47 = vector.shape_cast %46 : vector<8xf32> to vector<8x1xf32>
    %48 = arith.truncf %45 : vector<8x8xf32> to vector<8x8xbf16>
    %c0_20 = arith.constant 0 : index
    %c0_21 = arith.constant 0 : index
    %49 = vector.load %arg21[%c0_20, %c0_21] : memref<8x32xbf16, #tpu.memory_space<vmem>>, vector<8x8xbf16>
    %cst_22 = arith.constant dense<0.000000e+00> : vector<8x8xf32>
    %50 = tpu.matmul %48, %49, %cst_22 {dimension_numbers = #tpu.dot_dimension_numbers<[1], [0], [0], [1], [0, 0, 1, 1], [], []>} : vector<8x8xbf16>, vector<8x8xbf16>, vector<8x8xf32> -> vector<8x8xf32>
    %51 = tpu.reciprocal %47 {approx = true} : vector<8x1xf32> -> vector<8x1xf32>
    %52 = vector.broadcast %51 : vector<8x1xf32> to vector<8x8xf32>
    %53 = arith.mulf %50, %52 : vector<8x8xf32>
    %c0_23 = arith.constant 0 : index
    %c0_24 = arith.constant 0 : index
    %54 = vector.load %arg22[%c0_23, %c0_24] : memref<8x32xf32, #tpu.memory_space<vmem>>, vector<8x8xf32>
    tpu.vector_store %arg22[%c0_23, %c0_24], %53 {strides = array<i32>} : memref<8x32xf32, #tpu.memory_space<vmem>>, vector<8x8xf32>,
    %55 = vector.extract_strided_slice %37 {offsets = [0, 8], sizes = [8, 8], strides = [1, 1]} : vector<8x32xbf16> to vector<8x8xbf16>
    %c0_25 = arith.constant 0 : index
    %c8 = arith.constant 8 : index
    %56 = vector.load %arg20[%c0_25, %c8] : memref<8x32xbf16, #tpu.memory_space<vmem>>, vector<8x8xbf16>
    %cst_26 = arith.constant dense<0.000000e+00> : vector<8x8xf32>
    %57 = tpu.matmul %55, %56, %cst_26 {dimension_numbers = #tpu.dot_dimension_numbers<[1], [1], [0], [0], [0, 0, 1, 0], [], []>} : vector<8x8xbf16>, vector<8x8xbf16>, vector<8x8xf32> -> vector<8x8xf32>
    %cst_27 = arith.constant dense<0xFF800000> : vector<8xf32>
    %58 = vector.multi_reduction <maximumf>, %57, %cst_27 [1] : vector<8x8xf32> to vector<8xf32>
    %59 = vector.shape_cast %58 : vector<8xf32> to vector<8x1xf32>
    %60 = vector.broadcast %59 : vector<8x1xf32> to vector<8x8xf32>
    %61 = arith.subf %57, %60 : vector<8x8xf32>
    %62 = math.exp %61 : vector<8x8xf32>
    %cst_28 = arith.constant dense<0.000000e+00> : vector<8xf32>
    %63 = vector.multi_reduction <add>, %62, %cst_28 [1] : vector<8x8xf32> to vector<8xf32>
    %64 = vector.shape_cast %63 : vector<8xf32> to vector<8x1xf32>
    %65 = arith.truncf %62 : vector<8x8xf32> to vector<8x8xbf16>
    %c0_29 = arith.constant 0 : index
    %c8_30 = arith.constant 8 : index
    %66 = vector.load %arg21[%c0_29, %c8_30] : memref<8x32xbf16, #tpu.memory_space<vmem>>, vector<8x8xbf16>
    %cst_31 = arith.constant dense<0.000000e+00> : vector<8x8xf32>
    %67 = tpu.matmul %65, %66, %cst_31 {dimension_numbers = #tpu.dot_dimension_numbers<[1], [0], [0], [1], [0, 0, 1, 1], [], []>} : vector<8x8xbf16>, vector<8x8xbf16>, vector<8x8xf32> -> vector<8x8xf32>
    %68 = tpu.reciprocal %64 {approx = true} : vector<8x1xf32> -> vector<8x1xf32>
    %69 = vector.broadcast %68 : vector<8x1xf32> to vector<8x8xf32>
    %70 = arith.mulf %67, %69 : vector<8x8xf32>
    %c0_32 = arith.constant 0 : index
    %c8_33 = arith.constant 8 : index
    %71 = vector.load %arg22[%c0_32, %c8_33] : memref<8x32xf32, #tpu.memory_space<vmem>>, vector<8x8xf32>
    tpu.vector_store %arg22[%c0_32, %c8_33], %70 {strides = array<i32>} : memref<8x32xf32, #tpu.memory_space<vmem>>, vector<8x8xf32>,
    %72 = vector.extract_strided_slice %37 {offsets = [0, 16], sizes = [8, 8], strides = [1, 1]} : vector<8x32xbf16> to vector<8x8xbf16>
    %c0_34 = arith.constant 0 : index
    %c16 = arith.constant 16 : index
    %73 = vector.load %arg20[%c0_34, %c16] : memref<8x32xbf16, #tpu.memory_space<vmem>>, vector<8x8xbf16>
    %cst_35 = arith.constant dense<0.000000e+00> : vector<8x8xf32>
    %74 = tpu.matmul %72, %73, %cst_35 {dimension_numbers = #tpu.dot_dimension_numbers<[1], [1], [0], [0], [0, 0, 1, 0], [], []>} : vector<8x8xbf16>, vector<8x8xbf16>, vector<8x8xf32> -> vector<8x8xf32>
    %cst_36 = arith.constant dense<0xFF800000> : vector<8xf32>
    %75 = vector.multi_reduction <maximumf>, %74, %cst_36 [1] : vector<8x8xf32> to vector<8xf32>
    %76 = vector.shape_cast %75 : vector<8xf32> to vector<8x1xf32>
    %77 = vector.broadcast %76 : vector<8x1xf32> to vector<8x8xf32>
    %78 = arith.subf %74, %77 : vector<8x8xf32>
    %79 = math.exp %78 : vector<8x8xf32>
    %cst_37 = arith.constant dense<0.000000e+00> : vector<8xf32>
    %80 = vector.multi_reduction <add>, %79, %cst_37 [1] : vector<8x8xf32> to vector<8xf32>
    %81 = vector.shape_cast %80 : vector<8xf32> to vector<8x1xf32>
    %82 = arith.truncf %79 : vector<8x8xf32> to vector<8x8xbf16>
    %c0_38 = arith.constant 0 : index
    %c16_39 = arith.constant 16 : index
    %83 = vector.load %arg21[%c0_38, %c16_39] : memref<8x32xbf16, #tpu.memory_space<vmem>>, vector<8x8xbf16>
    %cst_40 = arith.constant dense<0.000000e+00> : vector<8x8xf32>
    %84 = tpu.matmul %82, %83, %cst_40 {dimension_numbers = #tpu.dot_dimension_numbers<[1], [0], [0], [1], [0, 0, 1, 1], [], []>} : vector<8x8xbf16>, vector<8x8xbf16>, vector<8x8xf32> -> vector<8x8xf32>
    %85 = tpu.reciprocal %81 {approx = true} : vector<8x1xf32> -> vector<8x1xf32>
    %86 = vector.broadcast %85 : vector<8x1xf32> to vector<8x8xf32>
    %87 = arith.mulf %84, %86 : vector<8x8xf32>
    %c0_41 = arith.constant 0 : index
    %c16_42 = arith.constant 16 : index
    %88 = vector.load %arg22[%c0_41, %c16_42] : memref<8x32xf32, #tpu.memory_space<vmem>>, vector<8x8xf32>
    tpu.vector_store %arg22[%c0_41, %c16_42], %87 {strides = array<i32>} : memref<8x32xf32, #tpu.memory_space<vmem>>, vector<8x8xf32>,
    %89 = vector.extract_strided_slice %37 {offsets = [0, 24], sizes = [8, 8], strides = [1, 1]} : vector<8x32xbf16> to vector<8x8xbf16>
    %c0_43 = arith.constant 0 : index
    %c24 = arith.constant 24 : index
    %90 = vector.load %arg20[%c0_43, %c24] : memref<8x32xbf16, #tpu.memory_space<vmem>>, vector<8x8xbf16>
    %cst_44 = arith.constant dense<0.000000e+00> : vector<8x8xf32>
    %91 = tpu.matmul %89, %90, %cst_44 {dimension_numbers = #tpu.dot_dimension_numbers<[1], [1], [0], [0], [0, 0, 1, 0], [], []>} : vector<8x8xbf16>, vector<8x8xbf16>, vector<8x8xf32> -> vector<8x8xf32>
    %cst_45 = arith.constant dense<0xFF800000> : vector<8xf32>
    %92 = vector.multi_reduction <maximumf>, %91, %cst_45 [1] : vector<8x8xf32> to vector<8xf32>
    %93 = vector.shape_cast %92 : vector<8xf32> to vector<8x1xf32>
    %94 = vector.broadcast %93 : vector<8x1xf32> to vector<8x8xf32>
    %95 = arith.subf %91, %94 : vector<8x8xf32>
    %96 = math.exp %95 : vector<8x8xf32>
    %cst_46 = arith.constant dense<0.000000e+00> : vector<8xf32>
    %97 = vector.multi_reduction <add>, %96, %cst_46 [1] : vector<8x8xf32> to vector<8xf32>
    %98 = vector.shape_cast %97 : vector<8xf32> to vector<8x1xf32>
    %99 = arith.truncf %96 : vector<8x8xf32> to vector<8x8xbf16>
    %c0_47 = arith.constant 0 : index
    %c24_48 = arith.constant 24 : index
    %100 = vector.load %arg21[%c0_47, %c24_48] : memref<8x32xbf16, #tpu.memory_space<vmem>>, vector<8x8xbf16>
    %cst_49 = arith.constant dense<0.000000e+00> : vector<8x8xf32>
    %101 = tpu.matmul %99, %100, %cst_49 {dimension_numbers = #tpu.dot_dimension_numbers<[1], [0], [0], [1], [0, 0, 1, 1], [], []>} : vector<8x8xbf16>, vector<8x8xbf16>, vector<8x8xf32> -> vector<8x8xf32>
    %102 = tpu.reciprocal %98 {approx = true} : vector<8x1xf32> -> vector<8x1xf32>
    %103 = vector.broadcast %102 : vector<8x1xf32> to vector<8x8xf32>
    %104 = arith.mulf %101, %103 : vector<8x8xf32>
    %c0_50 = arith.constant 0 : index
    %c24_51 = arith.constant 24 : index
    %105 = vector.load %arg22[%c0_50, %c24_51] : memref<8x32xf32, #tpu.memory_space<vmem>>, vector<8x8xf32>
    tpu.vector_store %arg22[%c0_50, %c24_51], %104 {strides = array<i32>} : memref<8x32xf32, #tpu.memory_space<vmem>>, vector<8x8xf32>,
    %c0_52 = arith.constant 0 : index
    %c0_53 = arith.constant 0 : index
    %106 = vector.load %arg22[%c0_52, %c0_53] : memref<8x32xf32, #tpu.memory_space<vmem>>, vector<8x32xf32>
    %107 = arith.truncf %106 : vector<8x32xf32> to vector<8x32xbf16>
    %c0_54 = arith.constant 0 : index
    %c0_55 = arith.constant 0 : index
    %108 = vector.load %arg11[%c0_54, %c0_55] : memref<32x32xbf16, #tpu.memory_space<vmem>>, vector<32x32xbf16>
    %cst_56 = arith.constant dense<0.000000e+00> : vector<8x32xf32>
    %109 = tpu.matmul %107, %108, %cst_56 {dimension_numbers = #tpu.dot_dimension_numbers<[1], [0], [0], [1], [0, 0, 1, 1], [], []>} : vector<8x32xbf16>, vector<32x32xbf16>, vector<8x32xf32> -> vector<8x32xf32>
    %c0_57 = arith.constant 0 : index
    %c0_58 = arith.constant 0 : index
    %110 = vector.load %arg12[%c0_57, %c0_58] : memref<1x32xf32, #tpu.memory_space<vmem>>, vector<1x32xf32>
    %111 = vector.broadcast %110 : vector<1x32xf32> to vector<8x32xf32>
    %112 = arith.addf %109, %111 : vector<8x32xf32>
    %113 = arith.addf %8, %112 : vector<8x32xf32>
    %c0_59 = arith.constant 0 : index
    %c0_60 = arith.constant 0 : index
    %114 = vector.load %arg13[%c0_59, %c0_60] : memref<1x32xf32, #tpu.memory_space<vmem>>, vector<1x32xf32>
    %c0_61 = arith.constant 0 : index
    %c0_62 = arith.constant 0 : index
    %115 = vector.load %arg14[%c0_61, %c0_62] : memref<1x32xf32, #tpu.memory_space<vmem>>, vector<1x32xf32>
    %cst_63 = arith.constant dense<0.000000e+00> : vector<8xf32>
    %116 = vector.multi_reduction <add>, %113, %cst_63 [1] : vector<8x32xf32> to vector<8xf32>
    %117 = vector.shape_cast %116 : vector<8xf32> to vector<8x1xf32>
    %cst_64 = arith.constant 3.200000e+01 : f32
    %118 = vector.broadcast %cst_64 : f32 to vector<8x1xf32>
    %119 = arith.divf %117, %118 : vector<8x1xf32>
    %120 = vector.broadcast %119 : vector<8x1xf32> to vector<8x32xf32>
    %121 = arith.subf %113, %120 : vector<8x32xf32>
    %122 = arith.mulf %121, %121 : vector<8x32xf32>
    %cst_65 = arith.constant dense<0.000000e+00> : vector<8xf32>
    %123 = vector.multi_reduction <add>, %122, %cst_65 [1] : vector<8x32xf32> to vector<8xf32>
    %124 = vector.shape_cast %123 : vector<8xf32> to vector<8x1xf32>
    %cst_66 = arith.constant 3.200000e+01 : f32
    %125 = vector.broadcast %cst_66 : f32 to vector<8x1xf32>
    %126 = arith.divf %124, %125 : vector<8x1xf32>
    %cst_67 = arith.constant 9.99999997E-7 : f32
    %127 = vector.broadcast %cst_67 : f32 to vector<8x1xf32>
    %128 = arith.addf %126, %127 : vector<8x1xf32>
    %129 = math.rsqrt %128 : vector<8x1xf32>
    %130 = vector.broadcast %129 : vector<8x1xf32> to vector<8x32xf32>
    %131 = arith.mulf %121, %130 : vector<8x32xf32>
    %132 = vector.broadcast %114 : vector<1x32xf32> to vector<8x32xf32>
    %133 = arith.mulf %131, %132 : vector<8x32xf32>
    %134 = vector.broadcast %115 : vector<1x32xf32> to vector<8x32xf32>
    %135 = arith.addf %133, %134 : vector<8x32xf32>
    %136 = arith.truncf %135 : vector<8x32xf32> to vector<8x32xbf16>
    %c0_68 = arith.constant 0 : index
    %c0_69 = arith.constant 0 : index
    %137 = vector.load %arg15[%c0_68, %c0_69] : memref<32x128xbf16, #tpu.memory_space<vmem>>, vector<32x128xbf16>
    %cst_70 = arith.constant dense<0.000000e+00> : vector<8x128xf32>
    %138 = tpu.matmul %136, %137, %cst_70 {dimension_numbers = #tpu.dot_dimension_numbers<[1], [0], [0], [1], [0, 0, 1, 1], [], []>} : vector<8x32xbf16>, vector<32x128xbf16>, vector<8x128xf32> -> vector<8x128xf32>
    %c0_71 = arith.constant 0 : index
    %c0_72 = arith.constant 0 : index
    %139 = vector.load %arg16[%c0_71, %c0_72] : memref<1x128xf32, #tpu.memory_space<vmem>>, vector<1x128xf32>
    %140 = vector.broadcast %139 : vector<1x128xf32> to vector<8x128xf32>
    %141 = arith.addf %138, %140 : vector<8x128xf32>
    %cst_73 = arith.constant 5.000000e-01 : f32
    %142 = vector.broadcast %cst_73 : f32 to vector<8x128xf32>
    %143 = arith.mulf %142, %141 : vector<8x128xf32>
    %cst_74 = arith.constant 4.471500e-02 : f32
    %144 = vector.broadcast %cst_74 : f32 to vector<8x128xf32>
    %145 = arith.mulf %144, %141 : vector<8x128xf32>
    %146 = arith.mulf %145, %141 : vector<8x128xf32>
    %147 = arith.mulf %146, %141 : vector<8x128xf32>
    %148 = arith.addf %141, %147 : vector<8x128xf32>
    %cst_75 = arith.constant 0.797884583 : f32
    %149 = vector.broadcast %cst_75 : f32 to vector<8x128xf32>
    %150 = arith.mulf %149, %148 : vector<8x128xf32>
    %151 = math.tanh %150 : vector<8x128xf32>
    %cst_76 = arith.constant 1.000000e+00 : f32
    %152 = vector.broadcast %cst_76 : f32 to vector<8x128xf32>
    %153 = arith.addf %152, %151 : vector<8x128xf32>
    %154 = arith.mulf %143, %153 : vector<8x128xf32>
    %155 = arith.truncf %154 : vector<8x128xf32> to vector<8x128xbf16>
    %c0_77 = arith.constant 0 : index
    %c0_78 = arith.constant 0 : index
    %156 = vector.load %arg17[%c0_77, %c0_78] : memref<128x32xbf16, #tpu.memory_space<vmem>>, vector<128x32xbf16>
    %cst_79 = arith.constant dense<0.000000e+00> : vector<8x32xf32>
    %157 = tpu.matmul %155, %156, %cst_79 {dimension_numbers = #tpu.dot_dimension_numbers<[1], [0], [0], [1], [0, 0, 1, 1], [], []>} : vector<8x128xbf16>, vector<128x32xbf16>, vector<8x32xf32> -> vector<8x32xf32>
    %c0_80 = arith.constant 0 : index
    %c0_81 = arith.constant 0 : index
    %158 = vector.load %arg18[%c0_80, %c0_81] : memref<1x32xf32, #tpu.memory_space<vmem>>, vector<1x32xf32>
    %159 = vector.broadcast %158 : vector<1x32xf32> to vector<8x32xf32>
    %160 = arith.addf %157, %159 : vector<8x32xf32>
    %161 = arith.addf %113, %160 : vector<8x32xf32>
    %c0_82 = arith.constant 0 : index
    %c0_83 = arith.constant 0 : index
    %c0_84 = arith.constant 0 : index
    %162 = vector.load %arg19[%c0_82, %c0_83, %c0_84] : memref<1x8x32xf32, #tpu.memory_space<vmem>>, vector<1x8x32xf32>
    %163 = vector.shape_cast %162 : vector<1x8x32xf32> to vector<8x32xf32>
    %164 = vector.shape_cast %161 : vector<8x32xf32> to vector<1x8x32xf32>
    tpu.vector_store %arg19[%c0_82, %c0_83, %c0_84], %164 {strides = array<i32>} : memref<1x8x32xf32, #tpu.memory_space<vmem>>, vector<1x8x32xf32>,
    return
  }
  func.func @transform_0(%arg0: i32, %arg1: i32) -> (i32, i32, i32) {
    %c0_i32 = arith.constant 0 : i32
    %c0_i32_0 = arith.constant 0 : i32
    %c0_i32_1 = arith.constant 0 : i32
    return %arg0, %c0_i32, %c0_i32_0 : i32, i32, i32
  }
  func.func @transform_1(%arg0: i32, %arg1: i32) -> (i32, i32) {
    %c0_i32 = arith.constant 0 : i32
    %c0_i32_0 = arith.constant 0 : i32
    %c0_i32_1 = arith.constant 0 : i32
    return %c0_i32, %c0_i32_0 : i32, i32
  }
  func.func @transform_2(%arg0: i32, %arg1: i32) -> (i32, i32) {
    %c0_i32 = arith.constant 0 : i32
    %c0_i32_0 = arith.constant 0 : i32
    %c0_i32_1 = arith.constant 0 : i32
    return %c0_i32, %c0_i32_0 : i32, i32
  }
  func.func @transform_3(%arg0: i32, %arg1: i32) -> (i32, i32) {
    %c0_i32 = arith.constant 0 : i32
    %c0_i32_0 = arith.constant 0 : i32
    %c0_i32_1 = arith.constant 0 : i32
    return %c0_i32, %c0_i32_0 : i32, i32
  }
  func.func @transform_4(%arg0: i32, %arg1: i32) -> (i32, i32) {
    %c0_i32 = arith.constant 0 : i32
    %c0_i32_0 = arith.constant 0 : i32
    %c0_i32_1 = arith.constant 0 : i32
    return %c0_i32, %c0_i32_0 : i32, i32
  }
  func.func @transform_5(%arg0: i32, %arg1: i32) -> (i32, i32) {
    %c0_i32 = arith.constant 0 : i32
    %c0_i32_0 = arith.constant 0 : i32
    %c0_i32_1 = arith.constant 0 : i32
    return %c0_i32, %c0_i32_0 : i32, i32
  }
  func.func @transform_6(%arg0: i32, %arg1: i32) -> (i32, i32) {
    %c0_i32 = arith.constant 0 : i32
    %c0_i32_0 = arith.constant 0 : i32
    %c0_i32_1 = arith.constant 0 : i32
    return %c0_i32, %c0_i32_0 : i32, i32
  }
  func.func @transform_7(%arg0: i32, %arg1: i32) -> (i32, i32) {
    %c0_i32 = arith.constant 0 : i32
    %c0_i32_0 = arith.constant 0 : i32
    %c0_i32_1 = arith.constant 0 : i32
    return %c0_i32, %c0_i32_0 : i32, i32
  }
  func.func @transform_8(%arg0: i32, %arg1: i32) -> (i32, i32) {
    %c0_i32 = arith.constant 0 : i32
    %c0_i32_0 = arith.constant 0 : i32
    %c0_i32_1 = arith.constant 0 : i32
    return %c0_i32, %c0_i32_0 : i32, i32
  }
  func.func @transform_9(%arg0: i32, %arg1: i32) -> (i32, i32) {
    %c0_i32 = arith.constant 0 : i32
    %c0_i32_0 = arith.constant 0 : i32
    %c0_i32_1 = arith.constant 0 : i32
    return %c0_i32, %c0_i32_0 : i32, i32
  }
  func.func @transform_10(%arg0: i32, %arg1: i32) -> (i32, i32) {
    %c0_i32 = arith.constant 0 : i32
    %c0_i32_0 = arith.constant 0 : i32
    %c0_i32_1 = arith.constant 0 : i32
    return %c0_i32, %c0_i32_0 : i32, i32
  }
  func.func @transform_11(%arg0: i32, %arg1: i32) -> (i32, i32) {
    %c0_i32 = arith.constant 0 : i32
    %c0_i32_0 = arith.constant 0 : i32
    %c0_i32_1 = arith.constant 0 : i32
    return %c0_i32, %c0_i32_0 : i32, i32
  }
  func.func @transform_12(%arg0: i32, %arg1: i32) -> (i32, i32) {
    %c0_i32 = arith.constant 0 : i32
    %c0_i32_0 = arith.constant 0 : i32
    %c0_i32_1 = arith.constant 0 : i32
    return %c0_i32, %c0_i32_0 : i32, i32
  }
  func.func @transform_13(%arg0: i32, %arg1: i32) -> (i32, i32) {
    %c0_i32 = arith.constant 0 : i32
    %c0_i32_0 = arith.constant 0 : i32
    %c0_i32_1 = arith.constant 0 : i32
    return %c0_i32, %c0_i32_0 : i32, i32
  }
  func.func @transform_14(%arg0: i32, %arg1: i32) -> (i32, i32) {
    %c0_i32 = arith.constant 0 : i32
    %c0_i32_0 = arith.constant 0 : i32
    %c0_i32_1 = arith.constant 0 : i32
    return %c0_i32, %c0_i32_0 : i32, i32
  }
  func.func @transform_15(%arg0: i32, %arg1: i32) -> (i32, i32) {
    %c0_i32 = arith.constant 0 : i32
    %c0_i32_0 = arith.constant 0 : i32
    %c0_i32_1 = arith.constant 0 : i32
    return %c0_i32, %c0_i32_0 : i32, i32
  }
  func.func @transform_16(%arg0: i32, %arg1: i32) -> (i32, i32) {
    %c0_i32 = arith.constant 0 : i32
    %c0_i32_0 = arith.constant 0 : i32
    %c0_i32_1 = arith.constant 0 : i32
    return %c0_i32, %c0_i32_0 : i32, i32
  }
  func.func @transform_17(%arg0: i32, %arg1: i32) -> (i32, i32, i32) {
    %c0_i32 = arith.constant 0 : i32
    %c0_i32_0 = arith.constant 0 : i32
    return %arg0, %arg1, %c0_i32 : i32, i32, i32
  }
}

module attributes {stable_mosaic.version = 11 : i64} {
  func.func @_mhsa_kernel(%arg0: i32, %arg1: i32, %arg2: memref<1x8x32xbf16, #tpu.memory_space<vmem>>, %arg3: memref<1x32xf32, #tpu.memory_space<vmem>>, %arg4: memref<1x32xf32, #tpu.memory_space<vmem>>, %arg5: memref<32x32xbf16, #tpu.memory_space<vmem>>, %arg6: memref<1x32xf32, #tpu.memory_space<vmem>>, %arg7: memref<32x32xbf16, #tpu.memory_space<vmem>>, %arg8: memref<1x32xf32, #tpu.memory_space<vmem>>, %arg9: memref<32x32xbf16, #tpu.memory_space<vmem>>, %arg10: memref<1x32xf32, #tpu.memory_space<vmem>>, %arg11: memref<32x32xbf16, #tpu.memory_space<vmem>>, %arg12: memref<1x32xf32, #tpu.memory_space<vmem>>, %arg13: memref<1x32xf32, #tpu.memory_space<vmem>>, %arg14: memref<1x32xf32, #tpu.memory_space<vmem>>, %arg15: memref<32x128xbf16, #tpu.memory_space<vmem>>, %arg16: memref<1x128xf32, #tpu.memory_space<vmem>>, %arg17: memref<128x32xbf16, #tpu.memory_space<vmem>>, %arg18: memref<1x32xf32, #tpu.memory_space<vmem>>, %arg19: memref<1x8x32xf32, #tpu.memory_space<vmem>>, %arg20: memref<8x32xbf16, #tpu.memory_space<vmem>>, %arg21: memref<8x32xbf16, #tpu.memory_space<vmem>>, %arg22: memref<8x32xf32, #tpu.memory_space<vmem>>) attributes {dimension_semantics = [#tpu.dimension_semantics<parallel>, #tpu.dimension_semantics<arbitrary>], iteration_bounds = array<i64: 2, 1>, scalar_prefetch = 0 : i64, scratch_operands = 3 : i64, tpu.core_type = #tpu.core_type<tc>, window_params = [{transform_indices = @transform_0, window_bounds = array<i64: 1, 8, 32>}, {pipeline_mode = #tpu.pipeline_mode<synchronous>, transform_indices = @transform_1, window_bounds = array<i64: 1, 32>}, {pipeline_mode = #tpu.pipeline_mode<synchronous>, transform_indices = @transform_2, window_bounds = array<i64: 1, 32>}, {pipeline_mode = #tpu.pipeline_mode<synchronous>, transform_indices = @transform_3, window_bounds = array<i64: 32, 32>}, {pipeline_mode = #tpu.pipeline_mode<synchronous>, transform_indices = @transform_4, window_bounds = array<i64: 1, 32>}, {pipeline_mode = #tpu.pipeline_mode<synchronous>, transform_indices = @transform_5, window_bounds = array<i64: 32, 32>}, {pipeline_mode = #tpu.pipeline_mode<synchronous>, transform_indices = @transform_6, window_bounds = array<i64: 1, 32>}, {pipeline_mode = #tpu.pipeline_mode<synchronous>, transform_indices = @transform_7, window_bounds = array<i64: 32, 32>}, {pipeline_mode = #tpu.pipeline_mode<synchronous>, transform_indices = @transform_8, window_bounds = array<i64: 1, 32>}, {pipeline_mode = #tpu.pipeline_mode<synchronous>, transform_indices = @transform_9, window_bounds = array<i64: 32, 32>}, {pipeline_mode = #tpu.pipeline_mode<synchronous>, transform_indices = @transform_10, window_bounds = array<i64: 1, 32>}, {pipeline_mode = #tpu.pipeline_mode<synchronous>, transform_indices = @transform_11, window_bounds = array<i64: 1, 32>}, {pipeline_mode = #tpu.pipeline_mode<synchronous>, transform_indices = @transform_12, window_bounds = array<i64: 1, 32>}, {pipeline_mode = #tpu.pipeline_mode<synchronous>, transform_indices = @transform_13, window_bounds = array<i64: 32, 128>}, {pipeline_mode = #tpu.pipeline_mode<synchronous>, transform_indices = @transform_14, window_bounds = array<i64: 1, 128>}, {pipeline_mode = #tpu.pipeline_mode<synchronous>, transform_indices = @transform_15, window_bounds = array<i64: 128, 32>}, {pipeline_mode = #tpu.pipeline_mode<synchronous>, transform_indices = @transform_16, window_bounds = array<i64: 1, 32>}, {transform_indices = @transform_17, window_bounds = array<i64: 1, 8, 32>}]} {
    %c0_i32 = arith.constant 0 : i32
    %0 = arith.cmpi eq, %arg1, %c0_i32 : i32
    %1 = arith.extui %0 : i1 to i32
    %c0_i32_0 = arith.constant 0 : i32
    %2 = arith.cmpi ne, %1, %c0_i32_0 : i32
    scf.if %2 {
      %c0_85 = arith.constant 0 : index
      %c0_86 = arith.constant 0 : index
      %c0_87 = arith.constant 0 : index
      %165 = vector.load %arg2[%c0_85, %c0_86, %c0_87] : memref<1x8x32xbf16, #tpu.memory_space<vmem>>, vector<1x8x32xbf16>
      %166 = vector.shape_cast %165 : vector<1x8x32xbf16> to vector<8x32xbf16>
      %167 = arith.extf %166 : vector<8x32xbf16> to vector<8x32xf32>
      %c0_88 = arith.constant 0 : index
      %c0_89 = arith.constant 0 : index
      %168 = vector.load %arg3[%c0_88, %c0_89] : memref<1x32xf32, #tpu.memory_space<vmem>>, vector<1x32xf32>
      %c0_90 = arith.constant 0 : index
      %c0_91 = arith.constant 0 : index
      %169 = vector.load %arg4[%c0_90, %c0_91] : memref<1x32xf32, #tpu.memory_space<vmem>>, vector<1x32xf32>
      %cst_92 = arith.constant dense<0.000000e+00> : vector<8xf32>
      %170 = vector.multi_reduction <add>, %167, %cst_92 [1] : vector<8x32xf32> to vector<8xf32>
      %171 = vector.shape_cast %170 : vector<8xf32> to vector<8x1xf32>
      %cst_93 = arith.constant 3.200000e+01 : f32
      %172 = vector.broadcast %cst_93 : f32 to vector<8x1xf32>
      %173 = arith.divf %171, %172 : vector<8x1xf32>
      %174 = vector.broadcast %173 : vector<8x1xf32> to vector<8x32xf32>
      %175 = arith.subf %167, %174 : vector<8x32xf32>
      %176 = arith.mulf %175, %175 : vector<8x32xf32>
      %cst_94 = arith.constant dense<0.000000e+00> : vector<8xf32>
      %177 = vector.multi_reduction <add>, %176, %cst_94 [1] : vector<8x32xf32> to vector<8xf32>
      %178 = vector.shape_cast %177 : vector<8xf32> to vector<8x1xf32>
      %cst_95 = arith.constant 3.200000e+01 : f32
      %179 = vector.broadcast %cst_95 : f32 to vector<8x1xf32>
      %180 = arith.divf %178, %179 : vector<8x1xf32>
      %cst_96 = arith.constant 9.99999997E-7 : f32
      %181 = vector.broadcast %cst_96 : f32 to vector<8x1xf32>
      %182 = arith.addf %180, %181 : vector<8x1xf32>
      %183 = math.rsqrt %182 : vector<8x1xf32>
      %184 = vector.broadcast %183 : vector<8x1xf32> to vector<8x32xf32>
      %185 = arith.mulf %175, %184 : vector<8x32xf32>
      %186 = vector.broadcast %168 : vector<1x32xf32> to vector<8x32xf32>
      %187 = arith.mulf %185, %186 : vector<8x32xf32>
      %188 = vector.broadcast %169 : vector<1x32xf32> to vector<8x32xf32>
      %189 = arith.addf %187, %188 : vector<8x32xf32>
      %190 = arith.truncf %189 : vector<8x32xf32> to vector<8x32xbf16>
      %c0_97 = arith.constant 0 : index
      %c0_98 = arith.constant 0 : index
      %191 = vector.load %arg7[%c0_97, %c0_98] : memref<32x32xbf16, #tpu.memory_space<vmem>>, vector<32x32xbf16>
      %cst_99 = arith.constant dense<0.000000e+00> : vector<8x32xf32>
      %192 = tpu.matmul %190, %191, %cst_99 {dimension_numbers = #tpu.dot_dimension_numbers<[1], [0], [0], [1], [0, 0, 1, 1], [], []>} : vector<8x32xbf16>, vector<32x32xbf16>, vector<8x32xf32> -> vector<8x32xf32>
      %c0_100 = arith.constant 0 : index
      %c0_101 = arith.constant 0 : index
      %193 = vector.load %arg8[%c0_100, %c0_101] : memref<1x32xf32, #tpu.memory_space<vmem>>, vector<1x32xf32>
      %194 = vector.broadcast %193 : vector<1x32xf32> to vector<8x32xf32>
      %195 = arith.addf %192, %194 : vector<8x32xf32>
      %c0_102 = arith.constant 0 : index
      %c0_103 = arith.constant 0 : index
      %196 = vector.load %arg9[%c0_102, %c0_103] : memref<32x32xbf16, #tpu.memory_space<vmem>>, vector<32x32xbf16>
      %cst_104 = arith.constant dense<0.000000e+00> : vector<8x32xf32>
      %197 = tpu.matmul %190, %196, %cst_104 {dimension_numbers = #tpu.dot_dimension_numbers<[1], [0], [0], [1], [0, 0, 1, 1], [], []>} : vector<8x32xbf16>, vector<32x32xbf16>, vector<8x32xf32> -> vector<8x32xf32>
      %c0_105 = arith.constant 0 : index
      %c0_106 = arith.constant 0 : index
      %198 = vector.load %arg10[%c0_105, %c0_106] : memref<1x32xf32, #tpu.memory_space<vmem>>, vector<1x32xf32>
      %199 = vector.broadcast %198 : vector<1x32xf32> to vector<8x32xf32>
      %200 = arith.addf %197, %199 : vector<8x32xf32>
      %201 = arith.truncf %195 : vector<8x32xf32> to vector<8x32xbf16>
      %c0_107 = arith.constant 0 : index
      %c0_108 = arith.constant 0 : index
      %202 = vector.load %arg20[%c0_107, %c0_108] : memref<8x32xbf16, #tpu.memory_space<vmem>>, vector<8x32xbf16>
      tpu.vector_store %arg20[%c0_107, %c0_108], %201 {strides = array<i32>} : memref<8x32xbf16, #tpu.memory_space<vmem>>, vector<8x32xbf16>,
      %203 = arith.truncf %200 : vector<8x32xf32> to vector<8x32xbf16>
      %c0_109 = arith.constant 0 : index
      %c0_110 = arith.constant 0 : index
      %204 = vector.load %arg21[%c0_109, %c0_110] : memref<8x32xbf16, #tpu.memory_space<vmem>>, vector<8x32xbf16>
      tpu.vector_store %arg21[%c0_109, %c0_110], %203 {strides = array<i32>} : memref<8x32xbf16, #tpu.memory_space<vmem>>, vector<8x32xbf16>,
    } else {
    }
    %c8_i32 = arith.constant 8 : i32
    %3 = arith.muli %arg1, %c8_i32 : i32
    %4 = tpu.assume_multiple %3, 8 : i32
    %c0 = arith.constant 0 : index
    %5 = arith.index_cast %4 : i32 to index
    %c0_1 = arith.constant 0 : index
    %6 = vector.load %arg2[%c0, %5, %c0_1] : memref<1x8x32xbf16, #tpu.memory_space<vmem>>, vector<1x8x32xbf16>
    %7 = vector.shape_cast %6 : vector<1x8x32xbf16> to vector<8x32xbf16>
    %8 = arith.extf %7 : vector<8x32xbf16> to vector<8x32xf32>
    %c0_2 = arith.constant 0 : index
    %c0_3 = arith.constant 0 : index
    %9 = vector.load %arg3[%c0_2, %c0_3] : memref<1x32xf32, #tpu.memory_space<vmem>>, vector<1x32xf32>
    %c0_4 = arith.constant 0 : index
    %c0_5 = arith.constant 0 : index
    %10 = vector.load %arg4[%c0_4, %c0_5] : memref<1x32xf32, #tpu.memory_space<vmem>>, vector<1x32xf32>
    %cst = arith.constant dense<0.000000e+00> : vector<8xf32>
    %11 = vector.multi_reduction <add>, %8, %cst [1] : vector<8x32xf32> to vector<8xf32>
    %12 = vector.shape_cast %11 : vector<8xf32> to vector<8x1xf32>
    %cst_6 = arith.constant 3.200000e+01 : f32
    %13 = vector.broadcast %cst_6 : f32 to vector<8x1xf32>
    %14 = arith.divf %12, %13 : vector<8x1xf32>
    %15 = vector.broadcast %14 : vector<8x1xf32> to vector<8x32xf32>
    %16 = arith.subf %8, %15 : vector<8x32xf32>
    %17 = arith.mulf %16, %16 : vector<8x32xf32>
    %cst_7 = arith.constant dense<0.000000e+00> : vector<8xf32>
    %18 = vector.multi_reduction <add>, %17, %cst_7 [1] : vector<8x32xf32> to vector<8xf32>
    %19 = vector.shape_cast %18 : vector<8xf32> to vector<8x1xf32>
    %cst_8 = arith.constant 3.200000e+01 : f32
    %20 = vector.broadcast %cst_8 : f32 to vector<8x1xf32>
    %21 = arith.divf %19, %20 : vector<8x1xf32>
    %cst_9 = arith.constant 9.99999997E-7 : f32
    %22 = vector.broadcast %cst_9 : f32 to vector<8x1xf32>
    %23 = arith.addf %21, %22 : vector<8x1xf32>
    %24 = math.rsqrt %23 : vector<8x1xf32>
    %25 = vector.broadcast %24 : vector<8x1xf32> to vector<8x32xf32>
    %26 = arith.mulf %16, %25 : vector<8x32xf32>
    %27 = vector.broadcast %9 : vector<1x32xf32> to vector<8x32xf32>
    %28 = arith.mulf %26, %27 : vector<8x32xf32>
    %29 = vector.broadcast %10 : vector<1x32xf32> to vector<8x32xf32>
    %30 = arith.addf %28, %29 : vector<8x32xf32>
    %31 = arith.truncf %30 : vector<8x32xf32> to vector<8x32xbf16>
    %c0_10 = arith.constant 0 : index
    %c0_11 = arith.constant 0 : index
    %32 = vector.load %arg5[%c0_10, %c0_11] : memref<32x32xbf16, #tpu.memory_space<vmem>>, vector<32x32xbf16>
    %cst_12 = arith.constant dense<0.000000e+00> : vector<8x32xf32>
    %33 = tpu.matmul %31, %32, %cst_12 {dimension_numbers = #tpu.dot_dimension_numbers<[1], [0], [0], [1], [0, 0, 1, 1], [], []>} : vector<8x32xbf16>, vector<32x32xbf16>, vector<8x32xf32> -> vector<8x32xf32>
    %c0_13 = arith.constant 0 : index
    %c0_14 = arith.constant 0 : index
    %34 = vector.load %arg6[%c0_13, %c0_14] : memref<1x32xf32, #tpu.memory_space<vmem>>, vector<1x32xf32>
    %35 = vector.broadcast %34 : vector<1x32xf32> to vector<8x32xf32>
    %36 = arith.addf %33, %35 : vector<8x32xf32>
    %37 = arith.truncf %36 : vector<8x32xf32> to vector<8x32xbf16>
    %38 = vector.extract_strided_slice %37 {offsets = [0, 0], sizes = [8, 8], strides = [1, 1]} : vector<8x32xbf16> to vector<8x8xbf16>
    %c0_15 = arith.constant 0 : index
    %c0_16 = arith.constant 0 : index
    %39 = vector.load %arg20[%c0_15, %c0_16] : memref<8x32xbf16, #tpu.memory_space<vmem>>, vector<8x8xbf16>
    %cst_17 = arith.constant dense<0.000000e+00> : vector<8x8xf32>
    %40 = tpu.matmul %38, %39, %cst_17 {dimension_numbers = #tpu.dot_dimension_numbers<[1], [1], [0], [0], [0, 0, 1, 0], [], []>} : vector<8x8xbf16>, vector<8x8xbf16>, vector<8x8xf32> -> vector<8x8xf32>
    %cst_18 = arith.constant dense<0xFF800000> : vector<8xf32>
    %41 = vector.multi_reduction <maximumf>, %40, %cst_18 [1] : vector<8x8xf32> to vector<8xf32>
    %42 = vector.shape_cast %41 : vector<8xf32> to vector<8x1xf32>
    %43 = vector.broadcast %42 : vector<8x1xf32> to vector<8x8xf32>
    %44 = arith.subf %40, %43 : vector<8x8xf32>
    %45 = math.exp %44 : vector<8x8xf32>
    %cst_19 = arith.constant dense<0.000000e+00> : vector<8xf32>
    %46 = vector.multi_reduction <add>, %45, %cst_19 [1] : vector<8x8xf32> to vector<8xf32>
    %47 = vector.shape_cast %46 : vector<8xf32> to vector<8x1xf32>
    %48 = arith.truncf %45 : vector<8x8xf32> to vector<8x8xbf16>
    %c0_20 = arith.constant 0 : index
    %c0_21 = arith.constant 0 : index
    %49 = vector.load %arg21[%c0_20, %c0_21] : memref<8x32xbf16, #tpu.memory_space<vmem>>, vector<8x8xbf16>
    %cst_22 = arith.constant dense<0.000000e+00> : vector<8x8xf32>
    %50 = tpu.matmul %48, %49, %cst_22 {dimension_numbers = #tpu.dot_dimension_numbers<[1], [0], [0], [1], [0, 0, 1, 1], [], []>} : vector<8x8xbf16>, vector<8x8xbf16>, vector<8x8xf32> -> vector<8x8xf32>
    %51 = tpu.reciprocal %47 {approx = true} : vector<8x1xf32> -> vector<8x1xf32>
    %52 = vector.broadcast %51 : vector<8x1xf32> to vector<8x8xf32>
    %53 = arith.mulf %50, %52 : vector<8x8xf32>
    %c0_23 = arith.constant 0 : index
    %c0_24 = arith.constant 0 : index
    %54 = vector.load %arg22[%c0_23, %c0_24] : memref<8x32xf32, #tpu.memory_space<vmem>>, vector<8x8xf32>
    tpu.vector_store %arg22[%c0_23, %c0_24], %53 {strides = array<i32>} : memref<8x32xf32, #tpu.memory_space<vmem>>, vector<8x8xf32>,
    %55 = vector.extract_strided_slice %37 {offsets = [0, 8], sizes = [8, 8], strides = [1, 1]} : vector<8x32xbf16> to vector<8x8xbf16>
    %c0_25 = arith.constant 0 : index
    %c8 = arith.constant 8 : index
    %56 = vector.load %arg20[%c0_25, %c8] : memref<8x32xbf16, #tpu.memory_space<vmem>>, vector<8x8xbf16>
    %cst_26 = arith.constant dense<0.000000e+00> : vector<8x8xf32>
    %57 = tpu.matmul %55, %56, %cst_26 {dimension_numbers = #tpu.dot_dimension_numbers<[1], [1], [0], [0], [0, 0, 1, 0], [], []>} : vector<8x8xbf16>, vector<8x8xbf16>, vector<8x8xf32> -> vector<8x8xf32>
    %cst_27 = arith.constant dense<0xFF800000> : vector<8xf32>
    %58 = vector.multi_reduction <maximumf>, %57, %cst_27 [1] : vector<8x8xf32> to vector<8xf32>
    %59 = vector.shape_cast %58 : vector<8xf32> to vector<8x1xf32>
    %60 = vector.broadcast %59 : vector<8x1xf32> to vector<8x8xf32>
    %61 = arith.subf %57, %60 : vector<8x8xf32>
    %62 = math.exp %61 : vector<8x8xf32>
    %cst_28 = arith.constant dense<0.000000e+00> : vector<8xf32>
    %63 = vector.multi_reduction <add>, %62, %cst_28 [1] : vector<8x8xf32> to vector<8xf32>
    %64 = vector.shape_cast %63 : vector<8xf32> to vector<8x1xf32>
    %65 = arith.truncf %62 : vector<8x8xf32> to vector<8x8xbf16>
    %c0_29 = arith.constant 0 : index
    %c8_30 = arith.constant 8 : index
    %66 = vector.load %arg21[%c0_29, %c8_30] : memref<8x32xbf16, #tpu.memory_space<vmem>>, vector<8x8xbf16>
    %cst_31 = arith.constant dense<0.000000e+00> : vector<8x8xf32>
    %67 = tpu.matmul %65, %66, %cst_31 {dimension_numbers = #tpu.dot_dimension_numbers<[1], [0], [0], [1], [0, 0, 1, 1], [], []>} : vector<8x8xbf16>, vector<8x8xbf16>, vector<8x8xf32> -> vector<8x8xf32>
    %68 = tpu.reciprocal %64 {approx = true} : vector<8x1xf32> -> vector<8x1xf32>
    %69 = vector.broadcast %68 : vector<8x1xf32> to vector<8x8xf32>
    %70 = arith.mulf %67, %69 : vector<8x8xf32>
    %c0_32 = arith.constant 0 : index
    %c8_33 = arith.constant 8 : index
    %71 = vector.load %arg22[%c0_32, %c8_33] : memref<8x32xf32, #tpu.memory_space<vmem>>, vector<8x8xf32>
    tpu.vector_store %arg22[%c0_32, %c8_33], %70 {strides = array<i32>} : memref<8x32xf32, #tpu.memory_space<vmem>>, vector<8x8xf32>,
    %72 = vector.extract_strided_slice %37 {offsets = [0, 16], sizes = [8, 8], strides = [1, 1]} : vector<8x32xbf16> to vector<8x8xbf16>
    %c0_34 = arith.constant 0 : index
    %c16 = arith.constant 16 : index
    %73 = vector.load %arg20[%c0_34, %c16] : memref<8x32xbf16, #tpu.memory_space<vmem>>, vector<8x8xbf16>
    %cst_35 = arith.constant dense<0.000000e+00> : vector<8x8xf32>
    %74 = tpu.matmul %72, %73, %cst_35 {dimension_numbers = #tpu.dot_dimension_numbers<[1], [1], [0], [0], [0, 0, 1, 0], [], []>} : vector<8x8xbf16>, vector<8x8xbf16>, vector<8x8xf32> -> vector<8x8xf32>
    %cst_36 = arith.constant dense<0xFF800000> : vector<8xf32>
    %75 = vector.multi_reduction <maximumf>, %74, %cst_36 [1] : vector<8x8xf32> to vector<8xf32>
    %76 = vector.shape_cast %75 : vector<8xf32> to vector<8x1xf32>
    %77 = vector.broadcast %76 : vector<8x1xf32> to vector<8x8xf32>
    %78 = arith.subf %74, %77 : vector<8x8xf32>
    %79 = math.exp %78 : vector<8x8xf32>
    %cst_37 = arith.constant dense<0.000000e+00> : vector<8xf32>
    %80 = vector.multi_reduction <add>, %79, %cst_37 [1] : vector<8x8xf32> to vector<8xf32>
    %81 = vector.shape_cast %80 : vector<8xf32> to vector<8x1xf32>
    %82 = arith.truncf %79 : vector<8x8xf32> to vector<8x8xbf16>
    %c0_38 = arith.constant 0 : index
    %c16_39 = arith.constant 16 : index
    %83 = vector.load %arg21[%c0_38, %c16_39] : memref<8x32xbf16, #tpu.memory_space<vmem>>, vector<8x8xbf16>
    %cst_40 = arith.constant dense<0.000000e+00> : vector<8x8xf32>
    %84 = tpu.matmul %82, %83, %cst_40 {dimension_numbers = #tpu.dot_dimension_numbers<[1], [0], [0], [1], [0, 0, 1, 1], [], []>} : vector<8x8xbf16>, vector<8x8xbf16>, vector<8x8xf32> -> vector<8x8xf32>
    %85 = tpu.reciprocal %81 {approx = true} : vector<8x1xf32> -> vector<8x1xf32>
    %86 = vector.broadcast %85 : vector<8x1xf32> to vector<8x8xf32>
    %87 = arith.mulf %84, %86 : vector<8x8xf32>
    %c0_41 = arith.constant 0 : index
    %c16_42 = arith.constant 16 : index
    %88 = vector.load %arg22[%c0_41, %c16_42] : memref<8x32xf32, #tpu.memory_space<vmem>>, vector<8x8xf32>
    tpu.vector_store %arg22[%c0_41, %c16_42], %87 {strides = array<i32>} : memref<8x32xf32, #tpu.memory_space<vmem>>, vector<8x8xf32>,
    %89 = vector.extract_strided_slice %37 {offsets = [0, 24], sizes = [8, 8], strides = [1, 1]} : vector<8x32xbf16> to vector<8x8xbf16>
    %c0_43 = arith.constant 0 : index
    %c24 = arith.constant 24 : index
    %90 = vector.load %arg20[%c0_43, %c24] : memref<8x32xbf16, #tpu.memory_space<vmem>>, vector<8x8xbf16>
    %cst_44 = arith.constant dense<0.000000e+00> : vector<8x8xf32>
    %91 = tpu.matmul %89, %90, %cst_44 {dimension_numbers = #tpu.dot_dimension_numbers<[1], [1], [0], [0], [0, 0, 1, 0], [], []>} : vector<8x8xbf16>, vector<8x8xbf16>, vector<8x8xf32> -> vector<8x8xf32>
    %cst_45 = arith.constant dense<0xFF800000> : vector<8xf32>
    %92 = vector.multi_reduction <maximumf>, %91, %cst_45 [1] : vector<8x8xf32> to vector<8xf32>
    %93 = vector.shape_cast %92 : vector<8xf32> to vector<8x1xf32>
    %94 = vector.broadcast %93 : vector<8x1xf32> to vector<8x8xf32>
    %95 = arith.subf %91, %94 : vector<8x8xf32>
    %96 = math.exp %95 : vector<8x8xf32>
    %cst_46 = arith.constant dense<0.000000e+00> : vector<8xf32>
    %97 = vector.multi_reduction <add>, %96, %cst_46 [1] : vector<8x8xf32> to vector<8xf32>
    %98 = vector.shape_cast %97 : vector<8xf32> to vector<8x1xf32>
    %99 = arith.truncf %96 : vector<8x8xf32> to vector<8x8xbf16>
    %c0_47 = arith.constant 0 : index
    %c24_48 = arith.constant 24 : index
    %100 = vector.load %arg21[%c0_47, %c24_48] : memref<8x32xbf16, #tpu.memory_space<vmem>>, vector<8x8xbf16>
    %cst_49 = arith.constant dense<0.000000e+00> : vector<8x8xf32>
    %101 = tpu.matmul %99, %100, %cst_49 {dimension_numbers = #tpu.dot_dimension_numbers<[1], [0], [0], [1], [0, 0, 1, 1], [], []>} : vector<8x8xbf16>, vector<8x8xbf16>, vector<8x8xf32> -> vector<8x8xf32>
    %102 = tpu.reciprocal %98 {approx = true} : vector<8x1xf32> -> vector<8x1xf32>
    %103 = vector.broadcast %102 : vector<8x1xf32> to vector<8x8xf32>
    %104 = arith.mulf %101, %103 : vector<8x8xf32>
    %c0_50 = arith.constant 0 : index
    %c24_51 = arith.constant 24 : index
    %105 = vector.load %arg22[%c0_50, %c24_51] : memref<8x32xf32, #tpu.memory_space<vmem>>, vector<8x8xf32>
    tpu.vector_store %arg22[%c0_50, %c24_51], %104 {strides = array<i32>} : memref<8x32xf32, #tpu.memory_space<vmem>>, vector<8x8xf32>,
    %c0_52 = arith.constant 0 : index
    %c0_53 = arith.constant 0 : index
    %106 = vector.load %arg22[%c0_52, %c0_53] : memref<8x32xf32, #tpu.memory_space<vmem>>, vector<8x32xf32>
    %107 = arith.truncf %106 : vector<8x32xf32> to vector<8x32xbf16>
    %c0_54 = arith.constant 0 : index
    %c0_55 = arith.constant 0 : index
    %108 = vector.load %arg11[%c0_54, %c0_55] : memref<32x32xbf16, #tpu.memory_space<vmem>>, vector<32x32xbf16>
    %cst_56 = arith.constant dense<0.000000e+00> : vector<8x32xf32>
    %109 = tpu.matmul %107, %108, %cst_56 {dimension_numbers = #tpu.dot_dimension_numbers<[1], [0], [0], [1], [0, 0, 1, 1], [], []>} : vector<8x32xbf16>, vector<32x32xbf16>, vector<8x32xf32> -> vector<8x32xf32>
    %c0_57 = arith.constant 0 : index
    %c0_58 = arith.constant 0 : index
    %110 = vector.load %arg12[%c0_57, %c0_58] : memref<1x32xf32, #tpu.memory_space<vmem>>, vector<1x32xf32>
    %111 = vector.broadcast %110 : vector<1x32xf32> to vector<8x32xf32>
    %112 = arith.addf %109, %111 : vector<8x32xf32>
    %113 = arith.addf %8, %112 : vector<8x32xf32>
    %c0_59 = arith.constant 0 : index
    %c0_60 = arith.constant 0 : index
    %114 = vector.load %arg13[%c0_59, %c0_60] : memref<1x32xf32, #tpu.memory_space<vmem>>, vector<1x32xf32>
    %c0_61 = arith.constant 0 : index
    %c0_62 = arith.constant 0 : index
    %115 = vector.load %arg14[%c0_61, %c0_62] : memref<1x32xf32, #tpu.memory_space<vmem>>, vector<1x32xf32>
    %cst_63 = arith.constant dense<0.000000e+00> : vector<8xf32>
    %116 = vector.multi_reduction <add>, %113, %cst_63 [1] : vector<8x32xf32> to vector<8xf32>
    %117 = vector.shape_cast %116 : vector<8xf32> to vector<8x1xf32>
    %cst_64 = arith.constant 3.200000e+01 : f32
    %118 = vector.broadcast %cst_64 : f32 to vector<8x1xf32>
    %119 = arith.divf %117, %118 : vector<8x1xf32>
    %120 = vector.broadcast %119 : vector<8x1xf32> to vector<8x32xf32>
    %121 = arith.subf %113, %120 : vector<8x32xf32>
    %122 = arith.mulf %121, %121 : vector<8x32xf32>
    %cst_65 = arith.constant dense<0.000000e+00> : vector<8xf32>
    %123 = vector.multi_reduction <add>, %122, %cst_65 [1] : vector<8x32xf32> to vector<8xf32>
    %124 = vector.shape_cast %123 : vector<8xf32> to vector<8x1xf32>
    %cst_66 = arith.constant 3.200000e+01 : f32
    %125 = vector.broadcast %cst_66 : f32 to vector<8x1xf32>
    %126 = arith.divf %124, %125 : vector<8x1xf32>
    %cst_67 = arith.constant 9.99999997E-7 : f32
    %127 = vector.broadcast %cst_67 : f32 to vector<8x1xf32>
    %128 = arith.addf %126, %127 : vector<8x1xf32>
    %129 = math.rsqrt %128 : vector<8x1xf32>
    %130 = vector.broadcast %129 : vector<8x1xf32> to vector<8x32xf32>
    %131 = arith.mulf %121, %130 : vector<8x32xf32>
    %132 = vector.broadcast %114 : vector<1x32xf32> to vector<8x32xf32>
    %133 = arith.mulf %131, %132 : vector<8x32xf32>
    %134 = vector.broadcast %115 : vector<1x32xf32> to vector<8x32xf32>
    %135 = arith.addf %133, %134 : vector<8x32xf32>
    %136 = arith.truncf %135 : vector<8x32xf32> to vector<8x32xbf16>
    %c0_68 = arith.constant 0 : index
    %c0_69 = arith.constant 0 : index
    %137 = vector.load %arg15[%c0_68, %c0_69] : memref<32x128xbf16, #tpu.memory_space<vmem>>, vector<32x128xbf16>
    %cst_70 = arith.constant dense<0.000000e+00> : vector<8x128xf32>
    %138 = tpu.matmul %136, %137, %cst_70 {dimension_numbers = #tpu.dot_dimension_numbers<[1], [0], [0], [1], [0, 0, 1, 1], [], []>} : vector<8x32xbf16>, vector<32x128xbf16>, vector<8x128xf32> -> vector<8x128xf32>
    %c0_71 = arith.constant 0 : index
    %c0_72 = arith.constant 0 : index
    %139 = vector.load %arg16[%c0_71, %c0_72] : memref<1x128xf32, #tpu.memory_space<vmem>>, vector<1x128xf32>
    %140 = vector.broadcast %139 : vector<1x128xf32> to vector<8x128xf32>
    %141 = arith.addf %138, %140 : vector<8x128xf32>
    %cst_73 = arith.constant 5.000000e-01 : f32
    %142 = vector.broadcast %cst_73 : f32 to vector<8x128xf32>
    %143 = arith.mulf %142, %141 : vector<8x128xf32>
    %cst_74 = arith.constant 4.471500e-02 : f32
    %144 = vector.broadcast %cst_74 : f32 to vector<8x128xf32>
    %145 = arith.mulf %144, %141 : vector<8x128xf32>
    %146 = arith.mulf %145, %141 : vector<8x128xf32>
    %147 = arith.mulf %146, %141 : vector<8x128xf32>
    %148 = arith.addf %141, %147 : vector<8x128xf32>
    %cst_75 = arith.constant 0.797884583 : f32
    %149 = vector.broadcast %cst_75 : f32 to vector<8x128xf32>
    %150 = arith.mulf %149, %148 : vector<8x128xf32>
    %151 = math.tanh %150 : vector<8x128xf32>
    %cst_76 = arith.constant 1.000000e+00 : f32
    %152 = vector.broadcast %cst_76 : f32 to vector<8x128xf32>
    %153 = arith.addf %152, %151 : vector<8x128xf32>
    %154 = arith.mulf %143, %153 : vector<8x128xf32>
    %155 = arith.truncf %154 : vector<8x128xf32> to vector<8x128xbf16>
    %c0_77 = arith.constant 0 : index
    %c0_78 = arith.constant 0 : index
    %156 = vector.load %arg17[%c0_77, %c0_78] : memref<128x32xbf16, #tpu.memory_space<vmem>>, vector<128x32xbf16>
    %cst_79 = arith.constant dense<0.000000e+00> : vector<8x32xf32>
    %157 = tpu.matmul %155, %156, %cst_79 {dimension_numbers = #tpu.dot_dimension_numbers<[1], [0], [0], [1], [0, 0, 1, 1], [], []>} : vector<8x128xbf16>, vector<128x32xbf16>, vector<8x32xf32> -> vector<8x32xf32>
    %c0_80 = arith.constant 0 : index
    %c0_81 = arith.constant 0 : index
    %158 = vector.load %arg18[%c0_80, %c0_81] : memref<1x32xf32, #tpu.memory_space<vmem>>, vector<1x32xf32>
    %159 = vector.broadcast %158 : vector<1x32xf32> to vector<8x32xf32>
    %160 = arith.addf %157, %159 : vector<8x32xf32>
    %161 = arith.addf %113, %160 : vector<8x32xf32>
    %c0_82 = arith.constant 0 : index
    %c0_83 = arith.constant 0 : index
    %c0_84 = arith.constant 0 : index
    %162 = vector.load %arg19[%c0_82, %c0_83, %c0_84] : memref<1x8x32xf32, #tpu.memory_space<vmem>>, vector<1x8x32xf32>
    %163 = vector.shape_cast %162 : vector<1x8x32xf32> to vector<8x32xf32>
    %164 = vector.shape_cast %161 : vector<8x32xf32> to vector<1x8x32xf32>
    tpu.vector_store %arg19[%c0_82, %c0_83, %c0_84], %164 {strides = array<i32>} : memref<1x8x32xf32, #tpu.memory_space<vmem>>, vector<1x8x32xf32>,
    return
  }
  func.func @transform_0(%arg0: i32, %arg1: i32) -> (i32, i32, i32) {
    %c0_i32 = arith.constant 0 : i32
    %c0_i32_0 = arith.constant 0 : i32
    %c0_i32_1 = arith.constant 0 : i32
    return %arg0, %c0_i32, %c0_i32_0 : i32, i32, i32
  }
  func.func @transform_1(%arg0: i32, %arg1: i32) -> (i32, i32) {
    %c0_i32 = arith.constant 0 : i32
    %c0_i32_0 = arith.constant 0 : i32
    %c0_i32_1 = arith.constant 0 : i32
    return %c0_i32, %c0_i32_0 : i32, i32
  }
  func.func @transform_2(%arg0: i32, %arg1: i32) -> (i32, i32) {
    %c0_i32 = arith.constant 0 : i32
    %c0_i32_0 = arith.constant 0 : i32
    %c0_i32_1 = arith.constant 0 : i32
    return %c0_i32, %c0_i32_0 : i32, i32
  }
  func.func @transform_3(%arg0: i32, %arg1: i32) -> (i32, i32) {
    %c0_i32 = arith.constant 0 : i32
    %c0_i32_0 = arith.constant 0 : i32
    %c0_i32_1 = arith.constant 0 : i32
    return %c0_i32, %c0_i32_0 : i32, i32
  }
  func.func @transform_4(%arg0: i32, %arg1: i32) -> (i32, i32) {
    %c0_i32 = arith.constant 0 : i32
    %c0_i32_0 = arith.constant 0 : i32
    %c0_i32_1 = arith.constant 0 : i32
    return %c0_i32, %c0_i32_0 : i32, i32
  }
  func.func @transform_5(%arg0: i32, %arg1: i32) -> (i32, i32) {
    %c0_i32 = arith.constant 0 : i32
    %c0_i32_0 = arith.constant 0 : i32
    %c0_i32_1 = arith.constant 0 : i32
    return %c0_i32, %c0_i32_0 : i32, i32
  }
  func.func @transform_6(%arg0: i32, %arg1: i32) -> (i32, i32) {
    %c0_i32 = arith.constant 0 : i32
    %c0_i32_0 = arith.constant 0 : i32
    %c0_i32_1 = arith.constant 0 : i32
    return %c0_i32, %c0_i32_0 : i32, i32
  }
  func.func @transform_7(%arg0: i32, %arg1: i32) -> (i32, i32) {
    %c0_i32 = arith.constant 0 : i32
    %c0_i32_0 = arith.constant 0 : i32
    %c0_i32_1 = arith.constant 0 : i32
    return %c0_i32, %c0_i32_0 : i32, i32
  }
  func.func @transform_8(%arg0: i32, %arg1: i32) -> (i32, i32) {
    %c0_i32 = arith.constant 0 : i32
    %c0_i32_0 = arith.constant 0 : i32
    %c0_i32_1 = arith.constant 0 : i32
    return %c0_i32, %c0_i32_0 : i32, i32
  }
  func.func @transform_9(%arg0: i32, %arg1: i32) -> (i32, i32) {
    %c0_i32 = arith.constant 0 : i32
    %c0_i32_0 = arith.constant 0 : i32
    %c0_i32_1 = arith.constant 0 : i32
    return %c0_i32, %c0_i32_0 : i32, i32
  }
  func.func @transform_10(%arg0: i32, %arg1: i32) -> (i32, i32) {
    %c0_i32 = arith.constant 0 : i32
    %c0_i32_0 = arith.constant 0 : i32
    %c0_i32_1 = arith.constant 0 : i32
    return %c0_i32, %c0_i32_0 : i32, i32
  }
  func.func @transform_11(%arg0: i32, %arg1: i32) -> (i32, i32) {
    %c0_i32 = arith.constant 0 : i32
    %c0_i32_0 = arith.constant 0 : i32
    %c0_i32_1 = arith.constant 0 : i32
    return %c0_i32, %c0_i32_0 : i32, i32
  }
  func.func @transform_12(%arg0: i32, %arg1: i32) -> (i32, i32) {
    %c0_i32 = arith.constant 0 : i32
    %c0_i32_0 = arith.constant 0 : i32
    %c0_i32_1 = arith.constant 0 : i32
    return %c0_i32, %c0_i32_0 : i32, i32
  }
  func.func @transform_13(%arg0: i32, %arg1: i32) -> (i32, i32) {
    %c0_i32 = arith.constant 0 : i32
    %c0_i32_0 = arith.constant 0 : i32
    %c0_i32_1 = arith.constant 0 : i32
    return %c0_i32, %c0_i32_0 : i32, i32
  }
  func.func @transform_14(%arg0: i32, %arg1: i32) -> (i32, i32) {
    %c0_i32 = arith.constant 0 : i32
    %c0_i32_0 = arith.constant 0 : i32
    %c0_i32_1 = arith.constant 0 : i32
    return %c0_i32, %c0_i32_0 : i32, i32
  }
  func.func @transform_15(%arg0: i32, %arg1: i32) -> (i32, i32) {
    %c0_i32 = arith.constant 0 : i32
    %c0_i32_0 = arith.constant 0 : i32
    %c0_i32_1 = arith.constant 0 : i32
    return %c0_i32, %c0_i32_0 : i32, i32
  }
  func.func @transform_16(%arg0: i32, %arg1: i32) -> (i32, i32) {
    %c0_i32 = arith.constant 0 : i32
    %c0_i32_0 = arith.constant 0 : i32
    %c0_i32_1 = arith.constant 0 : i32
    return %c0_i32, %c0_i32_0 : i32, i32
  }
  func.func @transform_17(%arg0: i32, %arg1: i32) -> (i32, i32, i32) {
    %c0_i32 = arith.constant 0 : i32
    %c0_i32_0 = arith.constant 0 : i32
    return %arg0, %arg1, %c0_i32 : i32, i32, i32
  }
}

</mosaic_0001>

<llo_original>
// kernel: tpu_custom_call.1
$region0: #{tpu_custom_call.1}
  #allocation0 [shape = 'u32[]', space=smem, size = 0x4, offset = 0x4, fixed_abs, tag = 'smem constant byte address 0x4 - core index']
  #allocation1 [shape = 'u32[144,128]{1,0:T(1,128)}', space=vmem, size = 0x12000, scoped, tag = 'internal scratch']
  #allocation2 [shape = 'bf16[8,32]{1,0:T(8,128)(2,1)}', space=vmem, size = 0x800, scoped, tag = 'scratch operand']
  #allocation3 [shape = 'bf16[8,32]{1,0:T(8,128)(2,1)}', space=vmem, size = 0x800, scoped, tag = 'scratch operand']
  #allocation4 [shape = 'f32[8,32]{1,0:T(8,128)}', space=vmem, size = 0x1000, scoped, tag = 'scratch operand']
  %s0 = inlined_call_operand.hbm [shape: bf16[2,8,32], index: 0, kind: input, shape index: {}]
  %s1 = inlined_call_operand.hbm [shape: f32[1,32], index: 1, kind: input, shape index: {}]
  %s2 = inlined_call_operand.hbm [shape: f32[1,32], index: 2, kind: input, shape index: {}]
  %s3 = inlined_call_operand.hbm [shape: bf16[32,32], index: 3, kind: input, shape index: {}]
  %s4 = inlined_call_operand.hbm [shape: f32[1,32], index: 4, kind: input, shape index: {}]
  %s5 = inlined_call_operand.hbm [shape: bf16[32,32], index: 5, kind: input, shape index: {}]
  %s6 = inlined_call_operand.hbm [shape: f32[1,32], index: 6, kind: input, shape index: {}]
  %s7 = inlined_call_operand.hbm [shape: bf16[32,32], index: 7, kind: input, shape index: {}]
  %s8 = inlined_call_operand.hbm [shape: f32[1,32], index: 8, kind: input, shape index: {}]
  %s9 = inlined_call_operand.hbm [shape: bf16[32,32], index: 9, kind: input, shape index: {}]
  %s10 = inlined_call_operand.hbm [shape: f32[1,32], index: 10, kind: input, shape index: {}]
  %s11 = inlined_call_operand.hbm [shape: f32[1,32], index: 11, kind: input, shape index: {}]
  %s12 = inlined_call_operand.hbm [shape: f32[1,32], index: 12, kind: input, shape index: {}]
  %s13 = inlined_call_operand.hbm [shape: bf16[32,128], index: 13, kind: input, shape index: {}]
  %s14 = inlined_call_operand.hbm [shape: f32[1,128], index: 14, kind: input, shape index: {}]
  %s15 = inlined_call_operand.hbm [shape: bf16[128,32], index: 15, kind: input, shape index: {}]
  %s16 = inlined_call_operand.hbm [shape: f32[1,32], index: 16, kind: input, shape index: {}]
  %s17 = inlined_call_operand.hbm [shape: f32[2,8,32], index: 17, kind: output, shape index: {}]
  %s18 = sld [smem:[#allocation0]]
  $region173: #{tpu_custom_call.1} parent=0
    _
  %s20 = ssub.s32 1, %s18
  %s21 = scalar_select 0, %s20, %s18
  $region1: #{tpu_custom_call.1} parent=0
    #allocation5 [shape = 'u8[4096]{0}', space=vmem, size = 0x1000, scoped, tag = 'input window, operand 0']
    #allocation6 [shape = 's32[2]{0}', space=sflag, size = 0x8, scoped, tag = 'scoped memory for tpu_custom_call.1']
    #allocation7 [shape = 's32[2]{0}', space=sflag, size = 0x8, scoped, tag = 'scoped memory for tpu_custom_call.1']
    #allocation8 [shape = 'u8[512]{0}', space=vmem, size = 0x400, scoped, tag = 'input window, operand 1, single buffered']
    #allocation9 [shape = 's32[1]{0}', space=sflag, size = 0x4, scoped, tag = 'scoped memory for tpu_custom_call.1']
    #allocation10 [shape = 'u8[512]{0}', space=vmem, size = 0x400, scoped, tag = 'input window, operand 2, single buffered']
    #allocation11 [shape = 'u8[8192]{0}', space=vmem, size = 0x2000, scoped, tag = 'input window, operand 3, single buffered']
    #allocation12 [shape = 's32[1]{0}', space=sflag, size = 0x4, scoped, tag = 'scoped memory for tpu_custom_call.1']
    #allocation13 [shape = 'u8[512]{0}', space=vmem, size = 0x400, scoped, tag = 'input window, operand 4, single buffered']
    #allocation14 [shape = 'u8[8192]{0}', space=vmem, size = 0x2000, scoped, tag = 'input window, operand 5, single buffered']
    #allocation15 [shape = 's32[1]{0}', space=sflag, size = 0x4, scoped, tag = 'scoped memory for tpu_custom_call.1']
    #allocation16 [shape = 'u8[512]{0}', space=vmem, size = 0x400, scoped, tag = 'input window, operand 6, single buffered']
    #allocation17 [shape = 'u8[8192]{0}', space=vmem, size = 0x2000, scoped, tag = 'input window, operand 7, single buffered']
    #allocation18 [shape = 's32[1]{0}', space=sflag, size = 0x4, scoped, tag = 'scoped memory for tpu_custom_call.1']
    #allocation19 [shape = 'u8[512]{0}', space=vmem, size = 0x400, scoped, tag = 'input window, operand 8, single buffered']
    #allocation20 [shape = 'u8[8192]{0}', space=vmem, size = 0x2000, scoped, tag = 'input window, operand 9, single buffered']
    #allocation21 [shape = 's32[1]{0}', space=sflag, size = 0x4, scoped, tag = 'scoped memory for tpu_custom_call.1']
    #allocation22 [shape = 'u8[512]{0}', space=vmem, size = 0x400, scoped, tag = 'input window, operand 10, single buffered']
    #allocation23 [shape = 'u8[512]{0}', space=vmem, size = 0x400, scoped, tag = 'input window, operand 11, single buffered']
    #allocation24 [shape = 's32[1]{0}', space=sflag, size = 0x4, scoped, tag = 'scoped memory for tpu_custom_call.1']
    #allocation25 [shape = 'u8[512]{0}', space=vmem, size = 0x400, scoped, tag = 'input window, operand 12, single buffered']
    #allocation26 [shape = 'u8[8192]{0}', space=vmem, size = 0x2000, scoped, tag = 'input window, operand 13, single buffered']
    #allocation27 [shape = 's32[1]{0}', space=sflag, size = 0x4, scoped, tag = 'scoped memory for tpu_custom_call.1']
    #allocation28 [shape = 'u8[512]{0}', space=vmem, size = 0x400, scoped, tag = 'input window, operand 14, single buffered']
    #allocation29 [shape = 'u8[32768]{0}', space=vmem, size = 0x8000, scoped, tag = 'input window, operand 15, single buffered']
    #allocation30 [shape = 's32[1]{0}', space=sflag, size = 0x4, scoped, tag = 'scoped memory for tpu_custom_call.1']
    #allocation31 [shape = 'u8[512]{0}', space=vmem, size = 0x400, scoped, tag = 'input window, operand 16, single buffered']
    #allocation32 [shape = 'u8[8192]{0}', space=vmem, size = 0x2000, scoped, tag = 'output window, operand 0']
    %22 = vsyncpa [#allocation6], 0
    %s23 = scalar_lea.sflag [#allocation6], 1
    %24 = vsyncpa %s23, 0
    %25 = vsyncpa [#allocation9], 0
    %26 = vsyncpa [#allocation12], 0
    %27 = vsyncpa [#allocation15], 0
    %28 = vsyncpa [#allocation18], 0
    %29 = vsyncpa [#allocation21], 0
    %30 = vsyncpa [#allocation24], 0
    %31 = vsyncpa [#allocation27], 0
    %32 = vsyncpa [#allocation30], 0
    %33 = vsyncpa [#allocation7], 0
    %s34 = scalar_lea.sflag [#allocation7], 1
    %35 = vsyncpa %s34, 0
    loop: start=0, step=1, limit=4
    $region2: #{tpu_custom_call.1} parent=1 // loop_pre_header
      _
    $region3: #{tpu_custom_call.1} parent=1 // loop_header
      %s37 = sphi 0, %s41
      %p38 = scmp.ge.s32.totalorder %s37, 4
      %s44 = sphi 0, %s56
      %s45 = sphi 0, %s52
      %s46 = sphi 0, %s44
      %s47 = sphi 0, %s45
      %s48 = sphi 0, %s46
      %s49 = sphi 0, %s47
      %s59 = sphi 0, %s61
      %s62 = sphi 0, %s59
      %s63 = sphi 0, %s62
      %s79 = sphi 0, %s63
      %s83 = sphi 0, %s83
      %s85 = sphi 0, %s83
      %s86 = sphi 0, %s85
      %s100 = sphi 0, %s86
      %s104 = sphi 0, %s104
      %s106 = sphi 0, %s104
      %s107 = sphi 0, %s106
      %s121 = sphi 0, %s107
      %s125 = sphi 0, %s125
      %s127 = sphi 0, %s125
      %s128 = sphi 0, %s127
      %s142 = sphi 0, %s128
      %s146 = sphi 0, %s146
      %s148 = sphi 0, %s146
      %s149 = sphi 0, %s148
      %s163 = sphi 0, %s149
      %s167 = sphi 0, %s167
      %s169 = sphi 0, %s167
      %s170 = sphi 0, %s169
      %s184 = sphi 0, %s170
      %s188 = sphi 0, %s188
      %s190 = sphi 0, %s188
      %s191 = sphi 0, %s190
      %s205 = sphi 0, %s191
      %s209 = sphi 0, %s209
      %s211 = sphi 0, %s209
      %s212 = sphi 0, %s211
      %s226 = sphi 0, %s212
      %s230 = sphi 0, %s230
      %s232 = sphi 0, %s230
      %s233 = sphi 0, %s232
      %s247 = sphi 0, %s233
      %s251 = sphi 0, %s251
      %s253 = sphi 0, %s251
      %s254 = sphi 0, %s253
      %s268 = sphi 0, %s254
      %s272 = sphi 0, %s272
      %s274 = sphi 0, %s272
      %s275 = sphi 0, %s274
      %s289 = sphi 0, %s275
      %s293 = sphi 0, %s293
      %s295 = sphi 0, %s293
      %s296 = sphi 0, %s295
      %s310 = sphi 0, %s296
      %s314 = sphi 0, %s314
      %s316 = sphi 0, %s314
      %s317 = sphi 0, %s316
      %s331 = sphi 0, %s317
      %s335 = sphi 0, %s335
      %s337 = sphi 0, %s335
      %s338 = sphi 0, %s337
      %s352 = sphi 0, %s338
      %s356 = sphi 0, %s356
      %s358 = sphi 0, %s356
      %s359 = sphi 0, %s358
      %s373 = sphi 0, %s359
      %s377 = sphi 0, %s377
      %s379 = sphi 0, %s377
      %s380 = sphi 0, %s379
      %s394 = sphi 0, %s380
      %s398 = sphi 0, %s398
      %s400 = sphi 0, %s398
      %s401 = sphi 0, %s400
      %s415 = sphi 0, %s401
      %s423 = sphi 0, %s425
      %s426 = sphi 0, %s423
      %s427 = sphi 0, %s426
      %s443 = sphi 0, %s427
    $region4: #{tpu_custom_call.1} parent=1 // loop_header_branch
      %40 = sbr.rel (%p38) target = $region8
    $region5: #{tpu_custom_call.1} parent=1 // loop_body
      %s42 = ssub.s32 %s37, 1
      %s43 = ssub.s32 %s37, 2
      %s50 = sadd.s32 1, %s45
      %p51 = scmp.ge.s32.totalorder %s50, 1
      %s52 = scalar_select %p51, 0, %s50
      %s53 = sadd.s32 1, %s44
      %s54 = scalar_select %p51, %s53, %s44
      %p55 = scmp.ge.s32.totalorder %s54, 2
      %s56 = scalar_select %p55, 0, %s54
      %s57 = ssub.s32 %s44, %s56
      %p58 = scmp.eq.s32.totalorder %s57, 0
      %s60 = sadd.s32 %s59, 1
      %s61 = scalar_select %p58, %s59, %s60
      %p64 = pneg %p58
      %p65 = scmp.eq.s32.totalorder %s37, 1
      %p66 = por %p64, %p65
      %p67 = scmp.ne.s32.totalorder %s59, %s62
      %p68 = scmp.eq.s32.totalorder %s37, 0
      %p69 = por %p67, %p68
      %p70 = scmp.ne.s32.totalorder %s59, %s62
      %p71 = scmp.eq.s32.totalorder %s42, 1
      %p72 = por %p70, %p71
      %p73 = scmp.ne.s32.totalorder %s62, %s63
      %p74 = scmp.eq.s32.totalorder %s42, 0
      %p75 = por %p73, %p74
      %p76 = scmp.ne.s32.totalorder %s62, %s63
      %p77 = scmp.eq.s32.totalorder %s43, 1
      %p78 = por %p76, %p77
      %p80 = scmp.ne.s32.totalorder %s63, %s79
      %p81 = scmp.eq.s32.totalorder %s43, 0
      %p82 = por %p80, %p81
      %s84 = sadd.s32 %s83, 1
      %p87 = scmp.eq.s32.totalorder %s37, 1
      %p88 = scmp.ne.s32.totalorder %s83, %s85
      %p89 = scmp.eq.s32.totalorder %s37, 0
      %p90 = por %p88, %p89
      %p91 = scmp.ne.s32.totalorder %s83, %s85
      %p92 = scmp.eq.s32.totalorder %s42, 1
      %p93 = por %p91, %p92
      %p94 = scmp.ne.s32.totalorder %s85, %s86
      %p95 = scmp.eq.s32.totalorder %s42, 0
      %p96 = por %p94, %p95
      %p97 = scmp.ne.s32.totalorder %s85, %s86
      %p98 = scmp.eq.s32.totalorder %s43, 1
      %p99 = por %p97, %p98
      %p101 = scmp.ne.s32.totalorder %s86, %s100
      %p102 = scmp.eq.s32.totalorder %s43, 0
      %p103 = por %p101, %p102
      %s105 = sadd.s32 %s104, 1
      %p108 = scmp.eq.s32.totalorder %s37, 1
      %p109 = scmp.ne.s32.totalorder %s104, %s106
      %p110 = scmp.eq.s32.totalorder %s37, 0
      %p111 = por %p109, %p110
      %p112 = scmp.ne.s32.totalorder %s104, %s106
      %p113 = scmp.eq.s32.totalorder %s42, 1
      %p114 = por %p112, %p113
      %p115 = scmp.ne.s32.totalorder %s106, %s107
      %p116 = scmp.eq.s32.totalorder %s42, 0
      %p117 = por %p115, %p116
      %p118 = scmp.ne.s32.totalorder %s106, %s107
      %p119 = scmp.eq.s32.totalorder %s43, 1
      %p120 = por %p118, %p119
      %p122 = scmp.ne.s32.totalorder %s107, %s121
      %p123 = scmp.eq.s32.totalorder %s43, 0
      %p124 = por %p122, %p123
      %s126 = sadd.s32 %s125, 1
      %p129 = scmp.eq.s32.totalorder %s37, 1
      %p130 = scmp.ne.s32.totalorder %s125, %s127
      %p131 = scmp.eq.s32.totalorder %s37, 0
      %p132 = por %p130, %p131
      %p133 = scmp.ne.s32.totalorder %s125, %s127
      %p134 = scmp.eq.s32.totalorder %s42, 1
      %p135 = por %p133, %p134
      %p136 = scmp.ne.s32.totalorder %s127, %s128
      %p137 = scmp.eq.s32.totalorder %s42, 0
      %p138 = por %p136, %p137
      %p139 = scmp.ne.s32.totalorder %s127, %s128
      %p140 = scmp.eq.s32.totalorder %s43, 1
      %p141 = por %p139, %p140
      %p143 = scmp.ne.s32.totalorder %s128, %s142
      %p144 = scmp.eq.s32.totalorder %s43, 0
      %p145 = por %p143, %p144
      %s147 = sadd.s32 %s146, 1
      %p150 = scmp.eq.s32.totalorder %s37, 1
      %p151 = scmp.ne.s32.totalorder %s146, %s148
      %p152 = scmp.eq.s32.totalorder %s37, 0
      %p153 = por %p151, %p152
      %p154 = scmp.ne.s32.totalorder %s146, %s148
      %p155 = scmp.eq.s32.totalorder %s42, 1
      %p156 = por %p154, %p155
      %p157 = scmp.ne.s32.totalorder %s148, %s149
      %p158 = scmp.eq.s32.totalorder %s42, 0
      %p159 = por %p157, %p158
      %p160 = scmp.ne.s32.totalorder %s148, %s149
      %p161 = scmp.eq.s32.totalorder %s43, 1
      %p162 = por %p160, %p161
      %p164 = scmp.ne.s32.totalorder %s149, %s163
      %p165 = scmp.eq.s32.totalorder %s43, 0
      %p166 = por %p164, %p165
      %s168 = sadd.s32 %s167, 1
      %p171 = scmp.eq.s32.totalorder %s37, 1
      %p172 = scmp.ne.s32.totalorder %s167, %s169
      %p173 = scmp.eq.s32.totalorder %s37, 0
      %p174 = por %p172, %p173
      %p175 = scmp.ne.s32.totalorder %s167, %s169
      %p176 = scmp.eq.s32.totalorder %s42, 1
      %p177 = por %p175, %p176
      %p178 = scmp.ne.s32.totalorder %s169, %s170
      %p179 = scmp.eq.s32.totalorder %s42, 0
      %p180 = por %p178, %p179
      %p181 = scmp.ne.s32.totalorder %s169, %s170
      %p182 = scmp.eq.s32.totalorder %s43, 1
      %p183 = por %p181, %p182
      %p185 = scmp.ne.s32.totalorder %s170, %s184
      %p186 = scmp.eq.s32.totalorder %s43, 0
      %p187 = por %p185, %p186
      %s189 = sadd.s32 %s188, 1
      %p192 = scmp.eq.s32.totalorder %s37, 1
      %p193 = scmp.ne.s32.totalorder %s188, %s190
      %p194 = scmp.eq.s32.totalorder %s37, 0
      %p195 = por %p193, %p194
      %p196 = scmp.ne.s32.totalorder %s188, %s190
      %p197 = scmp.eq.s32.totalorder %s42, 1
      %p198 = por %p196, %p197
      %p199 = scmp.ne.s32.totalorder %s190, %s191
      %p200 = scmp.eq.s32.totalorder %s42, 0
      %p201 = por %p199, %p200
      %p202 = scmp.ne.s32.totalorder %s190, %s191
      %p203 = scmp.eq.s32.totalorder %s43, 1
      %p204 = por %p202, %p203
      %p206 = scmp.ne.s32.totalorder %s191, %s205
      %p207 = scmp.eq.s32.totalorder %s43, 0
      %p208 = por %p206, %p207
      %s210 = sadd.s32 %s209, 1
      %p213 = scmp.eq.s32.totalorder %s37, 1
      %p214 = scmp.ne.s32.totalorder %s209, %s211
      %p215 = scmp.eq.s32.totalorder %s37, 0
      %p216 = por %p214, %p215
      %p217 = scmp.ne.s32.totalorder %s209, %s211
      %p218 = scmp.eq.s32.totalorder %s42, 1
      %p219 = por %p217, %p218
      %p220 = scmp.ne.s32.totalorder %s211, %s212
      %p221 = scmp.eq.s32.totalorder %s42, 0
      %p222 = por %p220, %p221
      %p223 = scmp.ne.s32.totalorder %s211, %s212
      %p224 = scmp.eq.s32.totalorder %s43, 1
      %p225 = por %p223, %p224
      %p227 = scmp.ne.s32.totalorder %s212, %s226
      %p228 = scmp.eq.s32.totalorder %s43, 0
      %p229 = por %p227, %p228
      %s231 = sadd.s32 %s230, 1
      %p234 = scmp.eq.s32.totalorder %s37, 1
      %p235 = scmp.ne.s32.totalorder %s230, %s232
      %p236 = scmp.eq.s32.totalorder %s37, 0
      %p237 = por %p235, %p236
      %p238 = scmp.ne.s32.totalorder %s230, %s232
      %p239 = scmp.eq.s32.totalorder %s42, 1
      %p240 = por %p238, %p239
      %p241 = scmp.ne.s32.totalorder %s232, %s233
      %p242 = scmp.eq.s32.totalorder %s42, 0
      %p243 = por %p241, %p242
      %p244 = scmp.ne.s32.totalorder %s232, %s233
      %p245 = scmp.eq.s32.totalorder %s43, 1
      %p246 = por %p244, %p245
      %p248 = scmp.ne.s32.totalorder %s233, %s247
      %p249 = scmp.eq.s32.totalorder %s43, 0
      %p250 = por %p248, %p249
      %s252 = sadd.s32 %s251, 1
      %p255 = scmp.eq.s32.totalorder %s37, 1
      %p256 = scmp.ne.s32.totalorder %s251, %s253
      %p257 = scmp.eq.s32.totalorder %s37, 0
      %p258 = por %p256, %p257
      %p259 = scmp.ne.s32.totalorder %s251, %s253
      %p260 = scmp.eq.s32.totalorder %s42, 1
      %p261 = por %p259, %p260
      %p262 = scmp.ne.s32.totalorder %s253, %s254
      %p263 = scmp.eq.s32.totalorder %s42, 0
      %p264 = por %p262, %p263
      %p265 = scmp.ne.s32.totalorder %s253, %s254
      %p266 = scmp.eq.s32.totalorder %s43, 1
      %p267 = por %p265, %p266
      %p269 = scmp.ne.s32.totalorder %s254, %s268
      %p270 = scmp.eq.s32.totalorder %s43, 0
      %p271 = por %p269, %p270
      %s273 = sadd.s32 %s272, 1
      %p276 = scmp.eq.s32.totalorder %s37, 1
      %p277 = scmp.ne.s32.totalorder %s272, %s274
      %p278 = scmp.eq.s32.totalorder %s37, 0
      %p279 = por %p277, %p278
      %p280 = scmp.ne.s32.totalorder %s272, %s274
      %p281 = scmp.eq.s32.totalorder %s42, 1
      %p282 = por %p280, %p281
      %p283 = scmp.ne.s32.totalorder %s274, %s275
      %p284 = scmp.eq.s32.totalorder %s42, 0
      %p285 = por %p283, %p284
      %p286 = scmp.ne.s32.totalorder %s274, %s275
      %p287 = scmp.eq.s32.totalorder %s43, 1
      %p288 = por %p286, %p287
      %p290 = scmp.ne.s32.totalorder %s275, %s289
      %p291 = scmp.eq.s32.totalorder %s43, 0
      %p292 = por %p290, %p291
      %s294 = sadd.s32 %s293, 1
      %p297 = scmp.eq.s32.totalorder %s37, 1
      %p298 = scmp.ne.s32.totalorder %s293, %s295
      %p299 = scmp.eq.s32.totalorder %s37, 0
      %p300 = por %p298, %p299
      %p301 = scmp.ne.s32.totalorder %s293, %s295
      %p302 = scmp.eq.s32.totalorder %s42, 1
      %p303 = por %p301, %p302
      %p304 = scmp.ne.s32.totalorder %s295, %s296
      %p305 = scmp.eq.s32.totalorder %s42, 0
      %p306 = por %p304, %p305
      %p307 = scmp.ne.s32.totalorder %s295, %s296
      %p308 = scmp.eq.s32.totalorder %s43, 1
      %p309 = por %p307, %p308
      %p311 = scmp.ne.s32.totalorder %s296, %s310
      %p312 = scmp.eq.s32.totalorder %s43, 0
      %p313 = por %p311, %p312
      %s315 = sadd.s32 %s314, 1
      %p318 = scmp.eq.s32.totalorder %s37, 1
      %p319 = scmp.ne.s32.totalorder %s314, %s316
      %p320 = scmp.eq.s32.totalorder %s37, 0
      %p321 = por %p319, %p320
      %p322 = scmp.ne.s32.totalorder %s314, %s316
      %p323 = scmp.eq.s32.totalorder %s42, 1
      %p324 = por %p322, %p323
      %p325 = scmp.ne.s32.totalorder %s316, %s317
      %p326 = scmp.eq.s32.totalorder %s42, 0
      %p327 = por %p325, %p326
      %p328 = scmp.ne.s32.totalorder %s316, %s317
      %p329 = scmp.eq.s32.totalorder %s43, 1
      %p330 = por %p328, %p329
      %p332 = scmp.ne.s32.totalorder %s317, %s331
      %p333 = scmp.eq.s32.totalorder %s43, 0
      %p334 = por %p332, %p333
      %s336 = sadd.s32 %s335, 1
      %p339 = scmp.eq.s32.totalorder %s37, 1
      %p340 = scmp.ne.s32.totalorder %s335, %s337
      %p341 = scmp.eq.s32.totalorder %s37, 0
      %p342 = por %p340, %p341
      %p343 = scmp.ne.s32.totalorder %s335, %s337
      %p344 = scmp.eq.s32.totalorder %s42, 1
      %p345 = por %p343, %p344
      %p346 = scmp.ne.s32.totalorder %s337, %s338
      %p347 = scmp.eq.s32.totalorder %s42, 0
      %p348 = por %p346, %p347
      %p349 = scmp.ne.s32.totalorder %s337, %s338
      %p350 = scmp.eq.s32.totalorder %s43, 1
      %p351 = por %p349, %p350
      %p353 = scmp.ne.s32.totalorder %s338, %s352
      %p354 = scmp.eq.s32.totalorder %s43, 0
      %p355 = por %p353, %p354
      %s357 = sadd.s32 %s356, 1
      %p360 = scmp.eq.s32.totalorder %s37, 1
      %p361 = scmp.ne.s32.totalorder %s356, %s358
      %p362 = scmp.eq.s32.totalorder %s37, 0
      %p363 = por %p361, %p362
      %p364 = scmp.ne.s32.totalorder %s356, %s358
      %p365 = scmp.eq.s32.totalorder %s42, 1
      %p366 = por %p364, %p365
      %p367 = scmp.ne.s32.totalorder %s358, %s359
      %p368 = scmp.eq.s32.totalorder %s42, 0
      %p369 = por %p367, %p368
      %p370 = scmp.ne.s32.totalorder %s358, %s359
      %p371 = scmp.eq.s32.totalorder %s43, 1
      %p372 = por %p370, %p371
      %p374 = scmp.ne.s32.totalorder %s359, %s373
      %p375 = scmp.eq.s32.totalorder %s43, 0
      %p376 = por %p374, %p375
      %s378 = sadd.s32 %s377, 1
      %p381 = scmp.eq.s32.totalorder %s37, 1
      %p382 = scmp.ne.s32.totalorder %s377, %s379
      %p383 = scmp.eq.s32.totalorder %s37, 0
      %p384 = por %p382, %p383
      %p385 = scmp.ne.s32.totalorder %s377, %s379
      %p386 = scmp.eq.s32.totalorder %s42, 1
      %p387 = por %p385, %p386
      %p388 = scmp.ne.s32.totalorder %s379, %s380
      %p389 = scmp.eq.s32.totalorder %s42, 0
      %p390 = por %p388, %p389
      %p391 = scmp.ne.s32.totalorder %s379, %s380
      %p392 = scmp.eq.s32.totalorder %s43, 1
      %p393 = por %p391, %p392
      %p395 = scmp.ne.s32.totalorder %s380, %s394
      %p396 = scmp.eq.s32.totalorder %s43, 0
      %p397 = por %p395, %p396
      %s399 = sadd.s32 %s398, 1
      %p402 = scmp.eq.s32.totalorder %s37, 1
      %p403 = scmp.ne.s32.totalorder %s398, %s400
      %p404 = scmp.eq.s32.totalorder %s37, 0
      %p405 = por %p403, %p404
      %p406 = scmp.ne.s32.totalorder %s398, %s400
      %p407 = scmp.eq.s32.totalorder %s42, 1
      %p408 = por %p406, %p407
      %p409 = scmp.ne.s32.totalorder %s400, %s401
      %p410 = scmp.eq.s32.totalorder %s42, 0
      %p411 = por %p409, %p410
      %p412 = scmp.ne.s32.totalorder %s400, %s401
      %p413 = scmp.eq.s32.totalorder %s43, 1
      %p414 = por %p412, %p413
      %p416 = scmp.ne.s32.totalorder %s401, %s415
      %p417 = scmp.eq.s32.totalorder %s43, 0
      %p418 = por %p416, %p417
      %s419 = ssub.s32 %s44, %s56
      %s420 = ssub.s32 %s45, %s52
      %s421 = sor.u32 %s419, %s420
      %p422 = scmp.eq.s32.totalorder %s421, 0
      %s424 = sadd.s32 %s423, 1
      %s425 = scalar_select %p422, %s423, %s424
      %p428 = pneg %p422
      %p429 = scmp.eq.s32.totalorder %s37, 1
      %p430 = por %p428, %p429
      %p431 = scmp.ne.s32.totalorder %s423, %s426
      %p432 = scmp.eq.s32.totalorder %s37, 0
      %p433 = por %p431, %p432
      %p434 = scmp.ne.s32.totalorder %s423, %s426
      %p435 = scmp.eq.s32.totalorder %s42, 1
      %p436 = por %p434, %p435
      %p437 = scmp.ne.s32.totalorder %s426, %s427
      %p438 = scmp.eq.s32.totalorder %s42, 0
      %p439 = por %p437, %p438
      %p440 = scmp.ne.s32.totalorder %s426, %s427
      %p441 = scmp.eq.s32.totalorder %s43, 1
      %p442 = por %p440, %p441
      %p444 = scmp.ne.s32.totalorder %s427, %s443
      %p445 = scmp.eq.s32.totalorder %s43, 0
      %p446 = por %p444, %p445
      %p447 = scmp.le.s32.totalorder 1, %s37
      %p448 = scmp.lt.s32.totalorder %s37, 3
      %p449 = pnand %p447, %p448
      %p450 = pneg %p449
      // Predicated region
      $region9: #{tpu_custom_call.1} parent=5 // pred_check
        _
      $region10: #{tpu_custom_call.1} parent=5 // pred_check_branch
        %452 = sbr.rel (%p449) target = $region12
      $region11: #{tpu_custom_call.1} parent=5 // pred_region
        %s453 = ssub.s32 %s37, 1
        // Predicated region
        $region13: #{tpu_custom_call.1} parent=11 // pred_check
          %p454 = pneg %p96
        $region14: #{tpu_custom_call.1} parent=11 // pred_check_branch
          %456 = sbr.rel (%p454) target = $region16
        $region15: #{tpu_custom_call.1} parent=11 // pred_region
          %s458 = ssub.s32 16, 16
          %459 = vsyncadd [#allocation9], %s458
          %s461 = sshll.u32 [#allocation8], 4
          %s462 = int_to_ptr.vmem [resolvable:$true] %s461
          %464 = dma.hbm_to_vmem [thread:$0]  %s1, 16, %s462, [#allocation9]
        $region16: #{tpu_custom_call.1} parent=11 // pred_fallthru
          _
        // Predicated region
        $region17: #{tpu_custom_call.1} parent=11 // pred_check
          %p465 = pneg %p117
        $region18: #{tpu_custom_call.1} parent=11 // pred_check_branch
          %467 = sbr.rel (%p465) target = $region20
        $region19: #{tpu_custom_call.1} parent=11 // pred_region
          %s469 = ssub.s32 16, 16
          %470 = vsyncadd [#allocation9], %s469
          %s472 = sshll.u32 [#allocation10], 4
          %s473 = int_to_ptr.vmem [resolvable:$true] %s472
          %475 = dma.hbm_to_vmem [thread:$0]  %s2, 16, %s473, [#allocation9]
        $region20: #{tpu_custom_call.1} parent=11 // pred_fallthru
          _
        // Predicated region
        $region21: #{tpu_custom_call.1} parent=11 // pred_check
          %p476 = pneg %p138
        $region22: #{tpu_custom_call.1} parent=11 // pred_check_branch
          %478 = sbr.rel (%p476) target = $region24
        $region23: #{tpu_custom_call.1} parent=11 // pred_region
          %s480 = ssub.s32 256, 256
          %481 = vsyncadd [#allocation12], %s480
          %s482 = sshll.u32 [#allocation11], 4
          %s483 = int_to_ptr.vmem [resolvable:$true] %s482
          %488 = dma.hbm_to_vmem [thread:$0]  %s3, 256, %s483, [#allocation12], 64, 64, 4
        $region24: #{tpu_custom_call.1} parent=11 // pred_fallthru
          _
        // Predicated region
        $region25: #{tpu_custom_call.1} parent=11 // pred_check
          %p489 = pneg %p159
        $region26: #{tpu_custom_call.1} parent=11 // pred_check_branch
          %491 = sbr.rel (%p489) target = $region28
        $region27: #{tpu_custom_call.1} parent=11 // pred_region
          %s493 = ssub.s32 16, 16
          %494 = vsyncadd [#allocation12], %s493
          %s496 = sshll.u32 [#allocation13], 4
          %s497 = int_to_ptr.vmem [resolvable:$true] %s496
          %499 = dma.hbm_to_vmem [thread:$0]  %s4, 16, %s497, [#allocation12]
        $region28: #{tpu_custom_call.1} parent=11 // pred_fallthru
          _
        // Predicated region
        $region29: #{tpu_custom_call.1} parent=11 // pred_check
          %p500 = pneg %p180
        $region30: #{tpu_custom_call.1} parent=11 // pred_check_branch
          %502 = sbr.rel (%p500) target = $region32
        $region31: #{tpu_custom_call.1} parent=11 // pred_region
          %s504 = ssub.s32 256, 256
          %505 = vsyncadd [#allocation15], %s504
          %s506 = sshll.u32 [#allocation14], 4
          %s507 = int_to_ptr.vmem [resolvable:$true] %s506
          %512 = dma.hbm_to_vmem [thread:$0]  %s5, 256, %s507, [#allocation15], 64, 64, 4
        $region32: #{tpu_custom_call.1} parent=11 // pred_fallthru
          _
        // Predicated region
        $region33: #{tpu_custom_call.1} parent=11 // pred_check
          %p513 = pneg %p201
        $region34: #{tpu_custom_call.1} parent=11 // pred_check_branch
          %515 = sbr.rel (%p513) target = $region36
        $region35: #{tpu_custom_call.1} parent=11 // pred_region
          %s517 = ssub.s32 16, 16
          %518 = vsyncadd [#allocation15], %s517
          %s520 = sshll.u32 [#allocation16], 4
          %s521 = int_to_ptr.vmem [resolvable:$true] %s520
          %523 = dma.hbm_to_vmem [thread:$0]  %s6, 16, %s521, [#allocation15]
        $region36: #{tpu_custom_call.1} parent=11 // pred_fallthru
          _
        // Predicated region
        $region37: #{tpu_custom_call.1} parent=11 // pred_check
          %p524 = pneg %p222
        $region38: #{tpu_custom_call.1} parent=11 // pred_check_branch
          %526 = sbr.rel (%p524) target = $region40
        $region39: #{tpu_custom_call.1} parent=11 // pred_region
          %s528 = ssub.s32 256, 256
          %529 = vsyncadd [#allocation18], %s528
          %s530 = sshll.u32 [#allocation17], 4
          %s531 = int_to_ptr.vmem [resolvable:$true] %s530
          %536 = dma.hbm_to_vmem [thread:$0]  %s7, 256, %s531, [#allocation18], 64, 64, 4
        $region40: #{tpu_custom_call.1} parent=11 // pred_fallthru
          _
        // Predicated region
        $region41: #{tpu_custom_call.1} parent=11 // pred_check
          %p537 = pneg %p243
        $region42: #{tpu_custom_call.1} parent=11 // pred_check_branch
          %539 = sbr.rel (%p537) target = $region44
        $region43: #{tpu_custom_call.1} parent=11 // pred_region
          %s541 = ssub.s32 16, 16
          %542 = vsyncadd [#allocation18], %s541
          %s544 = sshll.u32 [#allocation19], 4
          %s545 = int_to_ptr.vmem [resolvable:$true] %s544
          %547 = dma.hbm_to_vmem [thread:$0]  %s8, 16, %s545, [#allocation18]
        $region44: #{tpu_custom_call.1} parent=11 // pred_fallthru
          _
        // Predicated region
        $region45: #{tpu_custom_call.1} parent=11 // pred_check
          %p548 = pneg %p264
        $region46: #{tpu_custom_call.1} parent=11 // pred_check_branch
          %550 = sbr.rel (%p548) target = $region48
        $region47: #{tpu_custom_call.1} parent=11 // pred_region
          %s552 = ssub.s32 256, 256
          %553 = vsyncadd [#allocation21], %s552
          %s554 = sshll.u32 [#allocation20], 4
          %s555 = int_to_ptr.vmem [resolvable:$true] %s554
          %560 = dma.hbm_to_vmem [thread:$0]  %s9, 256, %s555, [#allocation21], 64, 64, 4
        $region48: #{tpu_custom_call.1} parent=11 // pred_fallthru
          _
        // Predicated region
        $region49: #{tpu_custom_call.1} parent=11 // pred_check
          %p561 = pneg %p285
        $region50: #{tpu_custom_call.1} parent=11 // pred_check_branch
          %563 = sbr.rel (%p561) target = $region52
        $region51: #{tpu_custom_call.1} parent=11 // pred_region
          %s565 = ssub.s32 16, 16
          %566 = vsyncadd [#allocation21], %s565
          %s568 = sshll.u32 [#allocation22], 4
          %s569 = int_to_ptr.vmem [resolvable:$true] %s568
          %571 = dma.hbm_to_vmem [thread:$0]  %s10, 16, %s569, [#allocation21]
        $region52: #{tpu_custom_call.1} parent=11 // pred_fallthru
          _
        // Predicated region
        $region53: #{tpu_custom_call.1} parent=11 // pred_check
          %p572 = pneg %p306
        $region54: #{tpu_custom_call.1} parent=11 // pred_check_branch
          %574 = sbr.rel (%p572) target = $region56
        $region55: #{tpu_custom_call.1} parent=11 // pred_region
          %s576 = ssub.s32 16, 16
          %577 = vsyncadd [#allocation24], %s576
          %s579 = sshll.u32 [#allocation23], 4
          %s580 = int_to_ptr.vmem [resolvable:$true] %s579
          %582 = dma.hbm_to_vmem [thread:$0]  %s11, 16, %s580, [#allocation24]
        $region56: #{tpu_custom_call.1} parent=11 // pred_fallthru
          _
        // Predicated region
        $region57: #{tpu_custom_call.1} parent=11 // pred_check
          %p583 = pneg %p327
        $region58: #{tpu_custom_call.1} parent=11 // pred_check_branch
          %585 = sbr.rel (%p583) target = $region60
        $region59: #{tpu_custom_call.1} parent=11 // pred_region
          %s587 = ssub.s32 16, 16
          %588 = vsyncadd [#allocation24], %s587
          %s590 = sshll.u32 [#allocation25], 4
          %s591 = int_to_ptr.vmem [resolvable:$true] %s590
          %593 = dma.hbm_to_vmem [thread:$0]  %s12, 16, %s591, [#allocation24]
        $region60: #{tpu_custom_call.1} parent=11 // pred_fallthru
          _
        // Predicated region
        $region61: #{tpu_custom_call.1} parent=11 // pred_check
          %p594 = pneg %p348
        $region62: #{tpu_custom_call.1} parent=11 // pred_check_branch
          %596 = sbr.rel (%p594) target = $region64
        $region63: #{tpu_custom_call.1} parent=11 // pred_region
          %s598 = ssub.s32 256, 256
          %599 = vsyncadd [#allocation27], %s598
          %s600 = sshll.u32 [#allocation26], 4
          %s601 = int_to_ptr.vmem [resolvable:$true] %s600
          %606 = dma.hbm_to_vmem [thread:$0]  %s13, 256, %s601, [#allocation27], 64, 64, 4
        $region64: #{tpu_custom_call.1} parent=11 // pred_fallthru
          _
        // Predicated region
        $region65: #{tpu_custom_call.1} parent=11 // pred_check
          %p607 = pneg %p369
        $region66: #{tpu_custom_call.1} parent=11 // pred_check_branch
          %609 = sbr.rel (%p607) target = $region68
        $region67: #{tpu_custom_call.1} parent=11 // pred_region
          %s611 = ssub.s32 16, 16
          %612 = vsyncadd [#allocation27], %s611
          %s614 = sshll.u32 [#allocation28], 4
          %s615 = int_to_ptr.vmem [resolvable:$true] %s614
          %617 = dma.hbm_to_vmem [thread:$0]  %s14, 16, %s615, [#allocation27]
        $region68: #{tpu_custom_call.1} parent=11 // pred_fallthru
          _
        // Predicated region
        $region69: #{tpu_custom_call.1} parent=11 // pred_check
          %p618 = pneg %p390
        $region70: #{tpu_custom_call.1} parent=11 // pred_check_branch
          %620 = sbr.rel (%p618) target = $region72
        $region71: #{tpu_custom_call.1} parent=11 // pred_region
          %s622 = ssub.s32 1024, 1024
          %623 = vsyncadd [#allocation30], %s622
          %s624 = sshll.u32 [#allocation29], 4
          %s625 = int_to_ptr.vmem [resolvable:$true] %s624
          %630 = dma.hbm_to_vmem [thread:$0]  %s15, 1024, %s625, [#allocation30], 64, 64, 4
        $region72: #{tpu_custom_call.1} parent=11 // pred_fallthru
          _
        // Predicated region
        $region73: #{tpu_custom_call.1} parent=11 // pred_check
          %p631 = pneg %p411
        $region74: #{tpu_custom_call.1} parent=11 // pred_check_branch
          %633 = sbr.rel (%p631) target = $region76
        $region75: #{tpu_custom_call.1} parent=11 // pred_region
          %s635 = ssub.s32 16, 16
          %636 = vsyncadd [#allocation30], %s635
          %s638 = sshll.u32 [#allocation31], 4
          %s639 = int_to_ptr.vmem [resolvable:$true] %s638
          %641 = dma.hbm_to_vmem [thread:$0]  %s16, 16, %s639, [#allocation30]
        $region76: #{tpu_custom_call.1} parent=11 // pred_fallthru
          _
      $region12: #{tpu_custom_call.1} parent=5 // pred_fallthru
        _
      %p642 = scmp.lt.s32.totalorder %s37, 2
      // Predicated region
      $region77: #{tpu_custom_call.1} parent=5 // pred_check
        %p643 = pneg %p642
      $region78: #{tpu_custom_call.1} parent=5 // pred_check_branch
        %645 = sbr.rel (%p643) target = $region80
      $region79: #{tpu_custom_call.1} parent=5 // pred_region
        // Predicated region
        $region81: #{tpu_custom_call.1} parent=79 // pred_check
          %p646 = pneg %p69
        $region82: #{tpu_custom_call.1} parent=79 // pred_check_branch
          %648 = sbr.rel (%p646) target = $region84
        $region83: #{tpu_custom_call.1} parent=79 // pred_region
          %s649 = sand.u32 %s59, 1
          %s650 = scalar_lea.sflag [#allocation6], %s649
          %s651 = sand.u32 %s59, 1
          %s652 = smul.addr %s651, 4
          %s653 = scalar_lea.vmem [#allocation5], %s652
          %s655 = ssub.s32 64, 64
          %656 = vsyncadd %s650, %s655
          %s657 = smul.addr %s44, 64
          %s658 = scalar_lea.hbm %s0, %s657
          %s660 = sshll.u32 %s653, 4
          %s661 = int_to_ptr.vmem [resolvable:$true] %s660
          %663 = dma.hbm_to_vmem [thread:$0]  %s658, 64, %s661, %s650
        $region84: #{tpu_custom_call.1} parent=79 // pred_fallthru
          _
      $region80: #{tpu_custom_call.1} parent=5 // pred_fallthru
        _
      %p664 = scmp.le.s32.totalorder 1, %s37
      %p665 = scmp.lt.s32.totalorder %s37, 3
      %p666 = pnand %p664, %p665
      %p667 = pneg %p666
      // Predicated region
      $region85: #{tpu_custom_call.1} parent=5 // pred_check
        _
      $region86: #{tpu_custom_call.1} parent=5 // pred_check_branch
        %669 = sbr.rel (%p666) target = $region88
      $region87: #{tpu_custom_call.1} parent=5 // pred_region
        %s670 = ssub.s32 %s37, 1
        %s671 = sand.u32 %s62, 1
        %s672 = scalar_lea.sflag [#allocation6], %s671
        %s673 = sand.u32 %s62, 1
        %s674 = smul.addr %s673, 4
        %s675 = scalar_lea.vmem [#allocation5], %s674
        // Predicated region
        $region89: #{tpu_custom_call.1} parent=87 // pred_check
          %p676 = pneg %p75
        $region90: #{tpu_custom_call.1} parent=87 // pred_check_branch
          %678 = sbr.rel (%p676) target = $region92
        $region91: #{tpu_custom_call.1} parent=87 // pred_region
          %679 = dma.done %s672, 64
        $region92: #{tpu_custom_call.1} parent=87 // pred_fallthru
          _
        // Predicated region
        $region93: #{tpu_custom_call.1} parent=87 // pred_check
          %p680 = pneg %p96
        $region94: #{tpu_custom_call.1} parent=87 // pred_check_branch
          %682 = sbr.rel (%p680) target = $region96
        $region95: #{tpu_custom_call.1} parent=87 // pred_region
          %683 = dma.done [#allocation9], 16
        $region96: #{tpu_custom_call.1} parent=87 // pred_fallthru
          _
        // Predicated region
        $region97: #{tpu_custom_call.1} parent=87 // pred_check
          %p684 = pneg %p117
        $region98: #{tpu_custom_call.1} parent=87 // pred_check_branch
          %686 = sbr.rel (%p684) target = $region100
        $region99: #{tpu_custom_call.1} parent=87 // pred_region
          %687 = dma.done [#allocation9], 16
        $region100: #{tpu_custom_call.1} parent=87 // pred_fallthru
          _
        // Predicated region
        $region101: #{tpu_custom_call.1} parent=87 // pred_check
          %p688 = pneg %p138
        $region102: #{tpu_custom_call.1} parent=87 // pred_check_branch
          %690 = sbr.rel (%p688) target = $region104
        $region103: #{tpu_custom_call.1} parent=87 // pred_region
          %691 = dma.done [#allocation12], 256
        $region104: #{tpu_custom_call.1} parent=87 // pred_fallthru
          _
        // Predicated region
        $region105: #{tpu_custom_call.1} parent=87 // pred_check
          %p692 = pneg %p159
        $region106: #{tpu_custom_call.1} parent=87 // pred_check_branch
          %694 = sbr.rel (%p692) target = $region108
        $region107: #{tpu_custom_call.1} parent=87 // pred_region
          %695 = dma.done [#allocation12], 16
        $region108: #{tpu_custom_call.1} parent=87 // pred_fallthru
          _
        // Predicated region
        $region109: #{tpu_custom_call.1} parent=87 // pred_check
          %p696 = pneg %p180
        $region110: #{tpu_custom_call.1} parent=87 // pred_check_branch
          %698 = sbr.rel (%p696) target = $region112
        $region111: #{tpu_custom_call.1} parent=87 // pred_region
          %699 = dma.done [#allocation15], 256
        $region112: #{tpu_custom_call.1} parent=87 // pred_fallthru
          _
        // Predicated region
        $region113: #{tpu_custom_call.1} parent=87 // pred_check
          %p700 = pneg %p201
        $region114: #{tpu_custom_call.1} parent=87 // pred_check_branch
          %702 = sbr.rel (%p700) target = $region116
        $region115: #{tpu_custom_call.1} parent=87 // pred_region
          %703 = dma.done [#allocation15], 16
        $region116: #{tpu_custom_call.1} parent=87 // pred_fallthru
          _
        // Predicated region
        $region117: #{tpu_custom_call.1} parent=87 // pred_check
          %p704 = pneg %p222
        $region118: #{tpu_custom_call.1} parent=87 // pred_check_branch
          %706 = sbr.rel (%p704) target = $region120
        $region119: #{tpu_custom_call.1} parent=87 // pred_region
          %707 = dma.done [#allocation18], 256
        $region120: #{tpu_custom_call.1} parent=87 // pred_fallthru
          _
        // Predicated region
        $region121: #{tpu_custom_call.1} parent=87 // pred_check
          %p708 = pneg %p243
        $region122: #{tpu_custom_call.1} parent=87 // pred_check_branch
          %710 = sbr.rel (%p708) target = $region124
        $region123: #{tpu_custom_call.1} parent=87 // pred_region
          %711 = dma.done [#allocation18], 16
        $region124: #{tpu_custom_call.1} parent=87 // pred_fallthru
          _
        // Predicated region
        $region125: #{tpu_custom_call.1} parent=87 // pred_check
          %p712 = pneg %p264
        $region126: #{tpu_custom_call.1} parent=87 // pred_check_branch
          %714 = sbr.rel (%p712) target = $region128
        $region127: #{tpu_custom_call.1} parent=87 // pred_region
          %715 = dma.done [#allocation21], 256
        $region128: #{tpu_custom_call.1} parent=87 // pred_fallthru
          _
        // Predicated region
        $region129: #{tpu_custom_call.1} parent=87 // pred_check
          %p716 = pneg %p285
        $region130: #{tpu_custom_call.1} parent=87 // pred_check_branch
          %718 = sbr.rel (%p716) target = $region132
        $region131: #{tpu_custom_call.1} parent=87 // pred_region
          %719 = dma.done [#allocation21], 16
        $region132: #{tpu_custom_call.1} parent=87 // pred_fallthru
          _
        // Predicated region
        $region133: #{tpu_custom_call.1} parent=87 // pred_check
          %p720 = pneg %p306
        $region134: #{tpu_custom_call.1} parent=87 // pred_check_branch
          %722 = sbr.rel (%p720) target = $region136
        $region135: #{tpu_custom_call.1} parent=87 // pred_region
          %723 = dma.done [#allocation24], 16
        $region136: #{tpu_custom_call.1} parent=87 // pred_fallthru
          _
        // Predicated region
        $region137: #{tpu_custom_call.1} parent=87 // pred_check
          %p724 = pneg %p327
        $region138: #{tpu_custom_call.1} parent=87 // pred_check_branch
          %726 = sbr.rel (%p724) target = $region140
        $region139: #{tpu_custom_call.1} parent=87 // pred_region
          %727 = dma.done [#allocation24], 16
        $region140: #{tpu_custom_call.1} parent=87 // pred_fallthru
          _
        // Predicated region
        $region141: #{tpu_custom_call.1} parent=87 // pred_check
          %p728 = pneg %p348
        $region142: #{tpu_custom_call.1} parent=87 // pred_check_branch
          %730 = sbr.rel (%p728) target = $region144
        $region143: #{tpu_custom_call.1} parent=87 // pred_region
          %731 = dma.done [#allocation27], 256
        $region144: #{tpu_custom_call.1} parent=87 // pred_fallthru
          _
        // Predicated region
        $region145: #{tpu_custom_call.1} parent=87 // pred_check
          %p732 = pneg %p369
        $region146: #{tpu_custom_call.1} parent=87 // pred_check_branch
          %734 = sbr.rel (%p732) target = $region148
        $region147: #{tpu_custom_call.1} parent=87 // pred_region
          %735 = dma.done [#allocation27], 16
        $region148: #{tpu_custom_call.1} parent=87 // pred_fallthru
          _
        // Predicated region
        $region149: #{tpu_custom_call.1} parent=87 // pred_check
          %p736 = pneg %p390
        $region150: #{tpu_custom_call.1} parent=87 // pred_check_branch
          %738 = sbr.rel (%p736) target = $region152
        $region151: #{tpu_custom_call.1} parent=87 // pred_region
          %739 = dma.done [#allocation30], 1024
        $region152: #{tpu_custom_call.1} parent=87 // pred_fallthru
          _
        // Predicated region
        $region153: #{tpu_custom_call.1} parent=87 // pred_check
          %p740 = pneg %p411
        $region154: #{tpu_custom_call.1} parent=87 // pred_check_branch
          %742 = sbr.rel (%p740) target = $region156
        $region155: #{tpu_custom_call.1} parent=87 // pred_region
          %743 = dma.done [#allocation30], 16
        $region156: #{tpu_custom_call.1} parent=87 // pred_fallthru
          _
        %s744 = sand.u32 %s62, 1
        %s745 = scalar_lea.sflag [#allocation6], %s744
        %s746 = sand.u32 %s62, 1
        %s747 = smul.addr %s746, 4
        %s748 = scalar_lea.vmem [#allocation5], %s747
        %p749 = pneg %p75
        %p750 = pneg %p72
        %p751 = pneg %p96
        %p752 = pneg %p93
        %p753 = pneg %p117
        %p754 = pneg %p114
        %p755 = pneg %p138
        %p756 = pneg %p135
        %p757 = pneg %p159
        %p758 = pneg %p156
        %p759 = pneg %p180
        %p760 = pneg %p177
        %p761 = pneg %p201
        %p762 = pneg %p198
        %p763 = pneg %p222
        %p764 = pneg %p219
        %p765 = pneg %p243
        %p766 = pneg %p240
        %p767 = pneg %p264
        %p768 = pneg %p261
        %p769 = pneg %p285
        %p770 = pneg %p282
        %p771 = pneg %p306
        %p772 = pneg %p303
        %p773 = pneg %p327
        %p774 = pneg %p324
        %p775 = pneg %p348
        %p776 = pneg %p345
        %p777 = pneg %p369
        %p778 = pneg %p366
        %p779 = pneg %p390
        %p780 = pneg %p387
        %p781 = pneg %p411
        %p782 = pneg %p408
        %p783 = pneg %p439
        %p784 = pneg %p436
        %s785 = sand.u32 %s426, 1
        %s786 = scalar_lea.sflag [#allocation7], %s785
        %s787 = sand.u32 %s426, 1
        %s788 = smul.addr %s787, 8
        %s789 = scalar_lea.vmem [#allocation32], %s788
        %p791 = scmp.eq.s32.totalorder %s47, 0
        // Predicated region
        $region157: #{tpu_custom_call.1} parent=87 // pred_check
          %p792 = pneg %p791
        $region158: #{tpu_custom_call.1} parent=87 // pred_check_branch
          %794 = sbr.rel (%p792) target = $region160
        $region159: #{tpu_custom_call.1} parent=87 // pred_region
          %v795 = vld [vmem:[%s675] sm:$0xf]
          %v796 = vunpack.c.l.bf16 %v795
          %v797 = vld [vmem:[#allocation8] sm:$0x1]
          %v798 = vld [vmem:[#allocation10] sm:$0x1]
          %vm799 = vcmask 261120
          %v800 = vsel %vm799, %v796, 0.0
          %801 = vadd.xlane.f32.xlu0 %v800
          %v802 = vpop.xlane.xlu0 %801
          %v803 = vrcp.pop 32.0
          %v804 = vmul.f32 %v802, %v803
          %v805 = vsub.f32 %v796, %v804
          %v806 = vmul.f32 %v805, %v805
          %v807 = vsel %vm799, %v806, 0.0
          %808 = vadd.xlane.f32.xlu0 %v807
          %v809 = vpop.xlane.xlu0 %808
          %v810 = vmul.f32 %v809, %v803
          %v811 = vadd.f32 %v810, 1e-06
          %v812 = vrsqrt.pop %v811
          %v813 = vmul.f32 %v805, %v812
          %v815 = vlaneseq
          %v816 = vshrl.u32 %v815, 7
          %v817 = vsub.s32 0, %v816
          %v818 = vrot.slane %v797, %v817
          %v820 = vmul.f32 %v813, %v818
          %v822 = vlaneseq
          %v823 = vshrl.u32 %v822, 7
          %v824 = vsub.s32 0, %v823
          %v825 = vrot.slane %v798, %v824
          %v827 = vadd.f32 %v820, %v825
          %v828 = vpack.c.bf16 %v827, %v827
          %v829 = vld [vmem:[#allocation14] sm:$0xf]
          %v830 = vld [vmem:[#allocation14 + $0x4] sm:$0xf]
          %v831 = vld [vmem:[#allocation14 + $0x8] sm:$0xf]
          %v832 = vld [vmem:[#allocation14 + $0xc] sm:$0xf]
          %v833 = vld [vmem:[#allocation16] sm:$0x1]
          %v835 = vlaneseq
          %v836 = vshrl.u32 %v835, 7
          %v837 = vsub.s32 0, %v836
          %v838 = vrot.slane %v833, %v837
          %v844 = vunpack.c.l.b16 %v829
          %v845 = vunpack.c.l.b16 %v830
          %v846 = vunpack.c.l.b16 %v831
          %v847 = vunpack.c.l.b16 %v832
          %v848 = vpack.c.b16 %v845, %v844
          %v849 = vpack.c.b16 %v847, %v846
          %v853 = vsel %vm799, %v828, 0
          %855 = vmatprep.subr.bf16.mxu0 0
          %856 = vmatpush1.bf16.msra.mxu0 %v848
          %857 = vmatprep.subr.bf16.mxu0 0
          %858 = vmatpush1.bf16.msra.mxu0 %v849
          %859 = vmatprep.subr.bf16.mxu0 0
          %860 = vmatpush1.bf16.msra.mxu0 0
          %861 = vmatprep.subr.bf16.mxu0 0
          %862 = vmatpush1.bf16.msra.mxu0 0
          %863 = vmatprep.subr.bf16.mxu0 0
          %864 = vmatpush1.bf16.msra.mxu0 0
          %865 = vmatprep.subr.bf16.mxu0 0
          %866 = vmatpush1.bf16.msra.mxu0 0
          %867 = vmatprep.subr.bf16.mxu0 0
          %868 = vmatpush1.bf16.msra.mxu0 0
          %869 = vmatprep.subr.bf16.mxu0 0
          %870 = vmatpush1.bf16.msra.mxu0 0
          %871 = vmatprep.subr.bf16.mxu0 0
          %872 = vmatpush1.bf16.msra.mxu0 0
          %873 = vmatprep.subr.bf16.mxu0 0
          %874 = vmatpush1.bf16.msra.mxu0 0
          %875 = vmatprep.subr.bf16.mxu0 0
          %876 = vmatpush1.bf16.msra.mxu0 0
          %877 = vmatprep.subr.bf16.mxu0 0
          %878 = vmatpush1.bf16.msra.mxu0 0
          %879 = vmatprep.subr.bf16.mxu0 0
          %880 = vmatpush1.bf16.msra.mxu0 0
          %881 = vmatprep.subr.bf16.mxu0 0
          %882 = vmatpush1.bf16.msra.mxu0 0
          %883 = vmatprep.subr.bf16.mxu0 0
          %884 = vmatpush1.bf16.msra.mxu0 0
          %885 = vmatprep.subr.bf16.mxu0 0
          %886 = vmatpush1.bf16.msra.mxu0 0
          %887 = vmatprep.mubr.bf16.mxu0 0
          %888 = vmatmul.mubr.bf16.gmra.mrb[0].mxu0 %v853
          %v889 = vpop.f32.mrb[0].mxu0
          %v890 = vadd.f32 %v838, %v889
          %v891 = vpop.f32.mrb[0].mxu0
          %v892 = vpop.f32.mrb[0].mxu0
          %v893 = vpop.f32.mrb[0].mxu0
          %894 = vdwg.mxu0
          %v895 = vld [vmem:[#allocation17] sm:$0xf]
          %v896 = vld [vmem:[#allocation17 + $0x4] sm:$0xf]
          %v897 = vld [vmem:[#allocation17 + $0x8] sm:$0xf]
          %v898 = vld [vmem:[#allocation17 + $0xc] sm:$0xf]
          %v899 = vld [vmem:[#allocation19] sm:$0x1]
          %v901 = vlaneseq
          %v902 = vshrl.u32 %v901, 7
          %v903 = vsub.s32 0, %v902
          %v904 = vrot.slane %v899, %v903
          %v910 = vunpack.c.l.b16 %v895
          %v911 = vunpack.c.l.b16 %v896
          %v912 = vunpack.c.l.b16 %v897
          %v913 = vunpack.c.l.b16 %v898
          %v914 = vpack.c.b16 %v911, %v910
          %v915 = vpack.c.b16 %v913, %v912
          %918 = vmatprep.subr.bf16.mxu0 0
          %919 = vmatpush1.bf16.msra.mxu0 %v914
          %920 = vmatprep.subr.bf16.mxu0 0
          %921 = vmatpush1.bf16.msra.mxu0 %v915
          %922 = vmatprep.subr.bf16.mxu0 0
          %923 = vmatpush1.bf16.msra.mxu0 0
          %924 = vmatprep.subr.bf16.mxu0 0
          %925 = vmatpush1.bf16.msra.mxu0 0
          %926 = vmatprep.subr.bf16.mxu0 0
          %927 = vmatpush1.bf16.msra.mxu0 0
          %928 = vmatprep.subr.bf16.mxu0 0
          %929 = vmatpush1.bf16.msra.mxu0 0
          %930 = vmatprep.subr.bf16.mxu0 0
          %931 = vmatpush1.bf16.msra.mxu0 0
          %932 = vmatprep.subr.bf16.mxu0 0
          %933 = vmatpush1.bf16.msra.mxu0 0
          %934 = vmatprep.subr.bf16.mxu0 0
          %935 = vmatpush1.bf16.msra.mxu0 0
          %936 = vmatprep.subr.bf16.mxu0 0
          %937 = vmatpush1.bf16.msra.mxu0 0
          %938 = vmatprep.subr.bf16.mxu0 0
          %939 = vmatpush1.bf16.msra.mxu0 0
          %940 = vmatprep.subr.bf16.mxu0 0
          %941 = vmatpush1.bf16.msra.mxu0 0
          %942 = vmatprep.subr.bf16.mxu0 0
          %943 = vmatpush1.bf16.msra.mxu0 0
          %944 = vmatprep.subr.bf16.mxu0 0
          %945 = vmatpush1.bf16.msra.mxu0 0
          %946 = vmatprep.subr.bf16.mxu0 0
          %947 = vmatpush1.bf16.msra.mxu0 0
          %948 = vmatprep.subr.bf16.mxu0 0
          %949 = vmatpush1.bf16.msra.mxu0 0
          %950 = vmatprep.mubr.bf16.mxu0 0
          %951 = vmatmul.mubr.bf16.gmra.mrb[0].mxu0 %v853
          %v952 = vpop.f32.mrb[0].mxu0
          %v953 = vadd.f32 %v904, %v952
          %v954 = vpop.f32.mrb[0].mxu0
          %v955 = vpop.f32.mrb[0].mxu0
          %v956 = vpop.f32.mrb[0].mxu0
          %957 = vdwg.mxu0
          %v958 = vpack.c.bf16 %v890, %v890
          %vm959 = vcmask 257024
          %960 = vst.msk [vmem:[#allocation2] sm:$0xf] %vm959, %v958
          %v961 = vpack.c.bf16 %v953, %v953
          %962 = vst.msk [vmem:[#allocation3] sm:$0xf] %vm959, %v961
        $region160: #{tpu_custom_call.1} parent=87 // pred_fallthru
          _
        %s963 = smul.u32 %s47, 8
        %s964 = sshra.s32 %s963, 3
        %s965 = sand.u32 %s963, 7
        %s966 = smul.addr %s964, 4
        %s967 = scalar_lea.vmem %s675, %s966 [#allocation5]
        %v968 = vld [vmem:[%s967] sm:$0xf]
        %v969 = vunpack.c.l.bf16 %v968
        %v970 = vld [vmem:[#allocation8] sm:$0x1]
        %v971 = vld [vmem:[#allocation10] sm:$0x1]
        %vm972 = vcmask 261120
        %v973 = vsel %vm972, %v969, 0.0
        %974 = vadd.xlane.f32.xlu0 %v973
        %v975 = vpop.xlane.xlu0 %974
        %v976 = vrcp.pop 32.0
        %v977 = vmul.f32 %v975, %v976
        %v978 = vsub.f32 %v969, %v977
        %v979 = vmul.f32 %v978, %v978
        %v980 = vsel %vm972, %v979, 0.0
        %981 = vadd.xlane.f32.xlu0 %v980
        %v982 = vpop.xlane.xlu0 %981
        %v983 = vmul.f32 %v982, %v976
        %v984 = vadd.f32 %v983, 1e-06
        %v985 = vrsqrt.pop %v984
        %v986 = vmul.f32 %v978, %v985
        %v988 = vlaneseq
        %v989 = vshrl.u32 %v988, 7
        %v990 = vsub.s32 0, %v989
        %v991 = vrot.slane %v970, %v990
        %v993 = vmul.f32 %v986, %v991
        %v995 = vlaneseq
        %v996 = vshrl.u32 %v995, 7
        %v997 = vsub.s32 0, %v996
        %v998 = vrot.slane %v971, %v997
        %v1000 = vadd.f32 %v993, %v998
        %v1001 = vpack.c.bf16 %v1000, %v1000
        %v1002 = vld [vmem:[#allocation11] sm:$0xf]
        %v1003 = vld [vmem:[#allocation11 + $0x4] sm:$0xf]
        %v1004 = vld [vmem:[#allocation11 + $0x8] sm:$0xf]
        %v1005 = vld [vmem:[#allocation11 + $0xc] sm:$0xf]
        %v1006 = vld [vmem:[#allocation13] sm:$0x1]
        %v1008 = vlaneseq
        %v1009 = vshrl.u32 %v1008, 7
        %v1010 = vsub.s32 0, %v1009
        %v1011 = vrot.slane %v1006, %v1010
        %v1017 = vunpack.c.l.b16 %v1002
        %v1018 = vunpack.c.l.b16 %v1003
        %v1019 = vunpack.c.l.b16 %v1004
        %v1020 = vunpack.c.l.b16 %v1005
        %v1021 = vpack.c.b16 %v1018, %v1017
        %v1022 = vpack.c.b16 %v1020, %v1019
        %v1026 = vsel %vm972, %v1001, 0
        %1028 = vmatprep.subr.bf16.mxu0 0
        %1029 = vmatpush1.bf16.msra.mxu0 %v1021
        %1030 = vmatprep.subr.bf16.mxu0 0
        %1031 = vmatpush1.bf16.msra.mxu0 %v1022
        %1032 = vmatprep.subr.bf16.mxu0 0
        %1033 = vmatpush1.bf16.msra.mxu0 0
        %1034 = vmatprep.subr.bf16.mxu0 0
        %1035 = vmatpush1.bf16.msra.mxu0 0
        %1036 = vmatprep.subr.bf16.mxu0 0
        %1037 = vmatpush1.bf16.msra.mxu0 0
        %1038 = vmatprep.subr.bf16.mxu0 0
        %1039 = vmatpush1.bf16.msra.mxu0 0
        %1040 = vmatprep.subr.bf16.mxu0 0
        %1041 = vmatpush1.bf16.msra.mxu0 0
        %1042 = vmatprep.subr.bf16.mxu0 0
        %1043 = vmatpush1.bf16.msra.mxu0 0
        %1044 = vmatprep.subr.bf16.mxu0 0
        %1045 = vmatpush1.bf16.msra.mxu0 0
        %1046 = vmatprep.subr.bf16.mxu0 0
        %1047 = vmatpush1.bf16.msra.mxu0 0
        %1048 = vmatprep.subr.bf16.mxu0 0
        %1049 = vmatpush1.bf16.msra.mxu0 0
        %1050 = vmatprep.subr.bf16.mxu0 0
        %1051 = vmatpush1.bf16.msra.mxu0 0
        %1052 = vmatprep.subr.bf16.mxu0 0
        %1053 = vmatpush1.bf16.msra.mxu0 0
        %1054 = vmatprep.subr.bf16.mxu0 0
        %1055 = vmatpush1.bf16.msra.mxu0 0
        %1056 = vmatprep.subr.bf16.mxu0 0
        %1057 = vmatpush1.bf16.msra.mxu0 0
        %1058 = vmatprep.subr.bf16.mxu0 0
        %1059 = vmatpush1.bf16.msra.mxu0 0
        %1060 = vmatprep.mubr.bf16.mxu0 0
        %1061 = vmatmul.mubr.bf16.gmra.mrb[0].mxu0 %v1026
        %v1062 = vpop.f32.mrb[0].mxu0
        %v1063 = vadd.f32 %v1011, %v1062
        %v1064 = vpop.f32.mrb[0].mxu0
        %v1065 = vpop.f32.mrb[0].mxu0
        %v1066 = vpop.f32.mrb[0].mxu0
        %1067 = vdwg.mxu0
        %v1068 = vpack.c.bf16 %v1063, %v1063
        %v1069 = vld [vmem:[#allocation2] sm:$0xf]
        %vm1070 = vcmask 64512
        %v1072 = vsel %vm1070, %v1068, 0
        %v1075 = vsel %vm1070, %v1069, 0
        %1077 = vmatprep.subr.bf16.mxu0 0
        %1078 = vmatpush1.bf16.xpose.msra.mxu0 %v1075
        %1079 = vmatprep.subr.bf16.mxu0 0
        %1080 = vmatpush1.bf16.xpose.msra.mxu0 0
        %1081 = vmatprep.subr.bf16.mxu0 0
        %1082 = vmatpush1.bf16.xpose.msra.mxu0 0
        %1083 = vmatprep.subr.bf16.mxu0 0
        %1084 = vmatpush1.bf16.xpose.msra.mxu0 0
        %1085 = vmatprep.subr.bf16.mxu0 0
        %1086 = vmatpush1.bf16.xpose.msra.mxu0 0
        %1087 = vmatprep.subr.bf16.mxu0 0
        %1088 = vmatpush1.bf16.xpose.msra.mxu0 0
        %1089 = vmatprep.subr.bf16.mxu0 0
        %1090 = vmatpush1.bf16.xpose.msra.mxu0 0
        %1091 = vmatprep.subr.bf16.mxu0 0
        %1092 = vmatpush1.bf16.xpose.msra.mxu0 0
        %1093 = vmatprep.subr.bf16.mxu0 0
        %1094 = vmatpush1.bf16.xpose.msra.mxu0 0
        %1095 = vmatprep.subr.bf16.mxu0 0
        %1096 = vmatpush1.bf16.xpose.msra.mxu0 0
        %1097 = vmatprep.subr.bf16.mxu0 0
        %1098 = vmatpush1.bf16.xpose.msra.mxu0 0
        %1099 = vmatprep.subr.bf16.mxu0 0
        %1100 = vmatpush1.bf16.xpose.msra.mxu0 0
        %1101 = vmatprep.subr.bf16.mxu0 0
        %1102 = vmatpush1.bf16.xpose.msra.mxu0 0
        %1103 = vmatprep.subr.bf16.mxu0 0
        %1104 = vmatpush1.bf16.xpose.msra.mxu0 0
        %1105 = vmatprep.subr.bf16.mxu0 0
        %1106 = vmatpush1.bf16.xpose.msra.mxu0 0
        %1107 = vmatprep.subr.bf16.mxu0 0
        %1108 = vmatpush1.bf16.xpose.msra.mxu0 0
        %1109 = vmatprep.mubr.bf16.mxu0 0
        %1110 = vmatmul.mubr.bf16.gmra.mrb[0].mxu0 %v1072
        %v1111 = vpop.f32.mrb[0].mxu0
        %v1112 = vadd.f32 0.0, %v1111
        %v1113 = vpop.f32.mrb[0].mxu0
        %v1114 = vpop.f32.mrb[0].mxu0
        %v1115 = vpop.f32.mrb[0].mxu0
        %1116 = vdwg.mxu0
        %v1117 = vsel %vm1070, %v1112, -inf
        %1118 = vmax.xlane.f32.xlu0 %v1117
        %v1119 = vpop.xlane.xlu0 %1118
        %v1120 = vsub.f32 %v1112, %v1119
        %v1121 = vmul.f32 %v1120, 1.442695
        %v1122 = vpow.pop %v1121
        %v1123 = vsel %vm1070, %v1122, 0.0
        %1124 = vadd.xlane.f32.xlu0 %v1123
        %v1125 = vpop.xlane.xlu0 %1124
        %v1126 = vpack.c.bf16 %v1122, %v1122
        %v1127 = vld [vmem:[#allocation3] sm:$0xf]
        %v1129 = vsel %vm1070, %v1126, 0
        %vm1131 = vcmask 1043456
        %v1133 = vsel %vm1131, %v1127, 0
        %1135 = vmatprep.subr.bf16.mxu0 0
        %1136 = vmatpush1.bf16.msra.mxu0 %v1133
        %1137 = vmatprep.subr.bf16.mxu0 0
        %1138 = vmatpush1.bf16.msra.mxu0 0
        %1139 = vmatprep.subr.bf16.mxu0 0
        %1140 = vmatpush1.bf16.msra.mxu0 0
        %1141 = vmatprep.subr.bf16.mxu0 0
        %1142 = vmatpush1.bf16.msra.mxu0 0
        %1143 = vmatprep.subr.bf16.mxu0 0
        %1144 = vmatpush1.bf16.msra.mxu0 0
        %1145 = vmatprep.subr.bf16.mxu0 0
        %1146 = vmatpush1.bf16.msra.mxu0 0
        %1147 = vmatprep.subr.bf16.mxu0 0
        %1148 = vmatpush1.bf16.msra.mxu0 0
        %1149 = vmatprep.subr.bf16.mxu0 0
        %1150 = vmatpush1.bf16.msra.mxu0 0
        %1151 = vmatprep.subr.bf16.mxu0 0
        %1152 = vmatpush1.bf16.msra.mxu0 0
        %1153 = vmatprep.subr.bf16.mxu0 0
        %1154 = vmatpush1.bf16.msra.mxu0 0
        %1155 = vmatprep.subr.bf16.mxu0 0
        %1156 = vmatpush1.bf16.msra.mxu0 0
        %1157 = vmatprep.subr.bf16.mxu0 0
        %1158 = vmatpush1.bf16.msra.mxu0 0
        %1159 = vmatprep.subr.bf16.mxu0 0
        %1160 = vmatpush1.bf16.msra.mxu0 0
        %1161 = vmatprep.subr.bf16.mxu0 0
        %1162 = vmatpush1.bf16.msra.mxu0 0
        %1163 = vmatprep.subr.bf16.mxu0 0
        %1164 = vmatpush1.bf16.msra.mxu0 0
        %1165 = vmatprep.subr.bf16.mxu0 0
        %1166 = vmatpush1.bf16.msra.mxu0 0
        %1167 = vmatprep.mubr.bf16.mxu0 0
        %1168 = vmatmul.mubr.bf16.gmra.mrb[0].mxu0 %v1129
        %v1169 = vpop.f32.mrb[0].mxu0
        %v1170 = vadd.f32 0.0, %v1169
        %v1171 = vpop.f32.mrb[0].mxu0
        %v1172 = vpop.f32.mrb[0].mxu0
        %v1173 = vpop.f32.mrb[0].mxu0
        %1174 = vdwg.mxu0
        %v1175 = vrcp.pop %v1125
        %v1176 = vmul.f32 %v1170, %v1175
        %1177 = vst.msk [vmem:[#allocation4] sm:$0xff] %vm1070, %v1176
        %v1178 = vld [vmem:[#allocation2] sm:$0xf]
        %1180 = vrot.lane.b32.xlu0 %v1068, 120
        %v1181 = vpop.permute.xlu0 %1180
        %v1183 = vunpack.c.l.b16 %v1178
        %v1184 = vpack.c.b16 %v1183, %v1183
        %1185 = vrot.lane.b32.xlu0 %v1184, 120
        %v1186 = vpop.permute.xlu0 %1185
        %v1188 = vsel %vm1070, %v1181, 0
        %v1191 = vsel %vm1070, %v1186, 0
        %1193 = vmatprep.subr.bf16.mxu0 0
        %1194 = vmatpush1.bf16.xpose.msra.mxu0 %v1191
        %1195 = vmatprep.subr.bf16.mxu0 0
        %1196 = vmatpush1.bf16.xpose.msra.mxu0 0
        %1197 = vmatprep.subr.bf16.mxu0 0
        %1198 = vmatpush1.bf16.xpose.msra.mxu0 0
        %1199 = vmatprep.subr.bf16.mxu0 0
        %1200 = vmatpush1.bf16.xpose.msra.mxu0 0
        %1201 = vmatprep.subr.bf16.mxu0 0
        %1202 = vmatpush1.bf16.xpose.msra.mxu0 0
        %1203 = vmatprep.subr.bf16.mxu0 0
        %1204 = vmatpush1.bf16.xpose.msra.mxu0 0
        %1205 = vmatprep.subr.bf16.mxu0 0
        %1206 = vmatpush1.bf16.xpose.msra.mxu0 0
        %1207 = vmatprep.subr.bf16.mxu0 0
        %1208 = vmatpush1.bf16.xpose.msra.mxu0 0
        %1209 = vmatprep.subr.bf16.mxu0 0
        %1210 = vmatpush1.bf16.xpose.msra.mxu0 0
        %1211 = vmatprep.subr.bf16.mxu0 0
        %1212 = vmatpush1.bf16.xpose.msra.mxu0 0
        %1213 = vmatprep.subr.bf16.mxu0 0
        %1214 = vmatpush1.bf16.xpose.msra.mxu0 0
        %1215 = vmatprep.subr.bf16.mxu0 0
        %1216 = vmatpush1.bf16.xpose.msra.mxu0 0
        %1217 = vmatprep.subr.bf16.mxu0 0
        %1218 = vmatpush1.bf16.xpose.msra.mxu0 0
        %1219 = vmatprep.subr.bf16.mxu0 0
        %1220 = vmatpush1.bf16.xpose.msra.mxu0 0
        %1221 = vmatprep.subr.bf16.mxu0 0
        %1222 = vmatpush1.bf16.xpose.msra.mxu0 0
        %1223 = vmatprep.subr.bf16.mxu0 0
        %1224 = vmatpush1.bf16.xpose.msra.mxu0 0
        %1225 = vmatprep.mubr.bf16.mxu0 0
        %1226 = vmatmul.mubr.bf16.gmra.mrb[0].mxu0 %v1188
        %v1227 = vpop.f32.mrb[0].mxu0
        %v1228 = vadd.f32 0.0, %v1227
        %v1229 = vpop.f32.mrb[0].mxu0
        %v1230 = vpop.f32.mrb[0].mxu0
        %v1231 = vpop.f32.mrb[0].mxu0
        %1232 = vdwg.mxu0
        %v1233 = vsel %vm1070, %v1228, -inf
        %1234 = vmax.xlane.f32.xlu0 %v1233
        %v1235 = vpop.xlane.xlu0 %1234
        %v1236 = vsub.f32 %v1228, %v1235
        %v1237 = vmul.f32 %v1236, 1.442695
        %v1238 = vpow.pop %v1237
        %v1239 = vsel %vm1070, %v1238, 0.0
        %1240 = vadd.xlane.f32.xlu0 %v1239
        %v1241 = vpop.xlane.xlu0 %1240
        %v1242 = vpack.c.bf16 %v1238, %v1238
        %v1243 = vld [vmem:[#allocation3] sm:$0xf]
        %v1245 = vunpack.c.l.b16 %v1243
        %v1246 = vpack.c.b16 %v1245, %v1245
        %1247 = vrot.lane.b32.xlu0 %v1246, 120
        %v1248 = vpop.permute.xlu0 %1247
        %v1250 = vsel %vm1070, %v1242, 0
        %v1253 = vsel %vm1131, %v1248, 0
        %1255 = vmatprep.subr.bf16.mxu0 0
        %1256 = vmatpush1.bf16.msra.mxu0 %v1253
        %1257 = vmatprep.subr.bf16.mxu0 0
        %1258 = vmatpush1.bf16.msra.mxu0 0
        %1259 = vmatprep.subr.bf16.mxu0 0
        %1260 = vmatpush1.bf16.msra.mxu0 0
        %1261 = vmatprep.subr.bf16.mxu0 0
        %1262 = vmatpush1.bf16.msra.mxu0 0
        %1263 = vmatprep.subr.bf16.mxu0 0
        %1264 = vmatpush1.bf16.msra.mxu0 0
        %1265 = vmatprep.subr.bf16.mxu0 0
        %1266 = vmatpush1.bf16.msra.mxu0 0
        %1267 = vmatprep.subr.bf16.mxu0 0
        %1268 = vmatpush1.bf16.msra.mxu0 0
        %1269 = vmatprep.subr.bf16.mxu0 0
        %1270 = vmatpush1.bf16.msra.mxu0 0
        %1271 = vmatprep.subr.bf16.mxu0 0
        %1272 = vmatpush1.bf16.msra.mxu0 0
        %1273 = vmatprep.subr.bf16.mxu0 0
        %1274 = vmatpush1.bf16.msra.mxu0 0
        %1275 = vmatprep.subr.bf16.mxu0 0
        %1276 = vmatpush1.bf16.msra.mxu0 0
        %1277 = vmatprep.subr.bf16.mxu0 0
        %1278 = vmatpush1.bf16.msra.mxu0 0
        %1279 = vmatprep.subr.bf16.mxu0 0
        %1280 = vmatpush1.bf16.msra.mxu0 0
        %1281 = vmatprep.subr.bf16.mxu0 0
        %1282 = vmatpush1.bf16.msra.mxu0 0
        %1283 = vmatprep.subr.bf16.mxu0 0
        %1284 = vmatpush1.bf16.msra.mxu0 0
        %1285 = vmatprep.subr.bf16.mxu0 0
        %1286 = vmatpush1.bf16.msra.mxu0 0
        %1287 = vmatprep.mubr.bf16.mxu0 0
        %1288 = vmatmul.mubr.bf16.gmra.mrb[0].mxu0 %v1250
        %v1289 = vpop.f32.mrb[0].mxu0
        %v1290 = vadd.f32 0.0, %v1289
        %v1291 = vpop.f32.mrb[0].mxu0
        %v1292 = vpop.f32.mrb[0].mxu0
        %v1293 = vpop.f32.mrb[0].mxu0
        %1294 = vdwg.mxu0
        %v1295 = vrcp.pop %v1241
        %v1296 = vmul.f32 %v1290, %v1295
        %1298 = vrot.lane.b32.xlu0 %v1296, 8
        %v1299 = vpop.permute.xlu0 %1298
        %vm1301 = vcmask 130112
        %1302 = vst.msk [vmem:[#allocation4] sm:$0xff] %vm1301, %v1299
        %v1303 = vld [vmem:[#allocation2] sm:$0xf]
        %1304 = vrot.lane.b32.xlu0 %v1068, 112
        %v1305 = vpop.permute.xlu0 %1304
        %v1307 = vunpack.c.l.b16 %v1303
        %v1308 = vpack.c.b16 %v1307, %v1307
        %1309 = vrot.lane.b32.xlu0 %v1308, 112
        %v1310 = vpop.permute.xlu0 %1309
        %v1312 = vsel %vm1070, %v1305, 0
        %v1315 = vsel %vm1070, %v1310, 0
        %1317 = vmatprep.subr.bf16.mxu0 0
        %1318 = vmatpush1.bf16.xpose.msra.mxu0 %v1315
        %1319 = vmatprep.subr.bf16.mxu0 0
        %1320 = vmatpush1.bf16.xpose.msra.mxu0 0
        %1321 = vmatprep.subr.bf16.mxu0 0
        %1322 = vmatpush1.bf16.xpose.msra.mxu0 0
        %1323 = vmatprep.subr.bf16.mxu0 0
        %1324 = vmatpush1.bf16.xpose.msra.mxu0 0
        %1325 = vmatprep.subr.bf16.mxu0 0
        %1326 = vmatpush1.bf16.xpose.msra.mxu0 0
        %1327 = vmatprep.subr.bf16.mxu0 0
        %1328 = vmatpush1.bf16.xpose.msra.mxu0 0
        %1329 = vmatprep.subr.bf16.mxu0 0
        %1330 = vmatpush1.bf16.xpose.msra.mxu0 0
        %1331 = vmatprep.subr.bf16.mxu0 0
        %1332 = vmatpush1.bf16.xpose.msra.mxu0 0
        %1333 = vmatprep.subr.bf16.mxu0 0
        %1334 = vmatpush1.bf16.xpose.msra.mxu0 0
        %1335 = vmatprep.subr.bf16.mxu0 0
        %1336 = vmatpush1.bf16.xpose.msra.mxu0 0
        %1337 = vmatprep.subr.bf16.mxu0 0
        %1338 = vmatpush1.bf16.xpose.msra.mxu0 0
        %1339 = vmatprep.subr.bf16.mxu0 0
        %1340 = vmatpush1.bf16.xpose.msra.mxu0 0
        %1341 = vmatprep.subr.bf16.mxu0 0
        %1342 = vmatpush1.bf16.xpose.msra.mxu0 0
        %1343 = vmatprep.subr.bf16.mxu0 0
        %1344 = vmatpush1.bf16.xpose.msra.mxu0 0
        %1345 = vmatprep.subr.bf16.mxu0 0
        %1346 = vmatpush1.bf16.xpose.msra.mxu0 0
        %1347 = vmatprep.subr.bf16.mxu0 0
        %1348 = vmatpush1.bf16.xpose.msra.mxu0 0
        %1349 = vmatprep.mubr.bf16.mxu0 0
        %1350 = vmatmul.mubr.bf16.gmra.mrb[0].mxu0 %v1312
        %v1351 = vpop.f32.mrb[0].mxu0
        %v1352 = vadd.f32 0.0, %v1351
        %v1353 = vpop.f32.mrb[0].mxu0
        %v1354 = vpop.f32.mrb[0].mxu0
        %v1355 = vpop.f32.mrb[0].mxu0
        %1356 = vdwg.mxu0
        %v1357 = vsel %vm1070, %v1352, -inf
        %1358 = vmax.xlane.f32.xlu0 %v1357
        %v1359 = vpop.xlane.xlu0 %1358
        %v1360 = vsub.f32 %v1352, %v1359
        %v1361 = vmul.f32 %v1360, 1.442695
        %v1362 = vpow.pop %v1361
        %v1363 = vsel %vm1070, %v1362, 0.0
        %1364 = vadd.xlane.f32.xlu0 %v1363
        %v1365 = vpop.xlane.xlu0 %1364
        %v1366 = vpack.c.bf16 %v1362, %v1362
        %v1367 = vld [vmem:[#allocation3] sm:$0xf]
        %v1369 = vunpack.c.l.b16 %v1367
        %v1370 = vpack.c.b16 %v1369, %v1369
        %1371 = vrot.lane.b32.xlu0 %v1370, 112
        %v1372 = vpop.permute.xlu0 %1371
        %v1374 = vsel %vm1070, %v1366, 0
        %v1377 = vsel %vm1131, %v1372, 0
        %1379 = vmatprep.subr.bf16.mxu0 0
        %1380 = vmatpush1.bf16.msra.mxu0 %v1377
        %1381 = vmatprep.subr.bf16.mxu0 0
        %1382 = vmatpush1.bf16.msra.mxu0 0
        %1383 = vmatprep.subr.bf16.mxu0 0
        %1384 = vmatpush1.bf16.msra.mxu0 0
        %1385 = vmatprep.subr.bf16.mxu0 0
        %1386 = vmatpush1.bf16.msra.mxu0 0
        %1387 = vmatprep.subr.bf16.mxu0 0
        %1388 = vmatpush1.bf16.msra.mxu0 0
        %1389 = vmatprep.subr.bf16.mxu0 0
        %1390 = vmatpush1.bf16.msra.mxu0 0
        %1391 = vmatprep.subr.bf16.mxu0 0
        %1392 = vmatpush1.bf16.msra.mxu0 0
        %1393 = vmatprep.subr.bf16.mxu0 0
        %1394 = vmatpush1.bf16.msra.mxu0 0
        %1395 = vmatprep.subr.bf16.mxu0 0
        %1396 = vmatpush1.bf16.msra.mxu0 0
        %1397 = vmatprep.subr.bf16.mxu0 0
        %1398 = vmatpush1.bf16.msra.mxu0 0
        %1399 = vmatprep.subr.bf16.mxu0 0
        %1400 = vmatpush1.bf16.msra.mxu0 0
        %1401 = vmatprep.subr.bf16.mxu0 0
        %1402 = vmatpush1.bf16.msra.mxu0 0
        %1403 = vmatprep.subr.bf16.mxu0 0
        %1404 = vmatpush1.bf16.msra.mxu0 0
        %1405 = vmatprep.subr.bf16.mxu0 0
        %1406 = vmatpush1.bf16.msra.mxu0 0
        %1407 = vmatprep.subr.bf16.mxu0 0
        %1408 = vmatpush1.bf16.msra.mxu0 0
        %1409 = vmatprep.subr.bf16.mxu0 0
        %1410 = vmatpush1.bf16.msra.mxu0 0
        %1411 = vmatprep.mubr.bf16.mxu0 0
        %1412 = vmatmul.mubr.bf16.gmra.mrb[0].mxu0 %v1374
        %v1413 = vpop.f32.mrb[0].mxu0
        %v1414 = vadd.f32 0.0, %v1413
        %v1415 = vpop.f32.mrb[0].mxu0
        %v1416 = vpop.f32.mrb[0].mxu0
        %v1417 = vpop.f32.mrb[0].mxu0
        %1418 = vdwg.mxu0
        %v1419 = vrcp.pop %v1365
        %v1420 = vmul.f32 %v1414, %v1419
        %1422 = vrot.lane.b32.xlu0 %v1420, 16
        %v1423 = vpop.permute.xlu0 %1422
        %vm1425 = vcmask 195712
        %1426 = vst.msk [vmem:[#allocation4] sm:$0xff] %vm1425, %v1423
        %v1427 = vld [vmem:[#allocation2] sm:$0xf]
        %1428 = vrot.lane.b32.xlu0 %v1068, 104
        %v1429 = vpop.permute.xlu0 %1428
        %v1431 = vunpack.c.l.b16 %v1427
        %v1432 = vpack.c.b16 %v1431, %v1431
        %1433 = vrot.lane.b32.xlu0 %v1432, 104
        %v1434 = vpop.permute.xlu0 %1433
        %v1436 = vsel %vm1070, %v1429, 0
        %v1439 = vsel %vm1070, %v1434, 0
        %1441 = vmatprep.subr.bf16.mxu0 0
        %1442 = vmatpush1.bf16.xpose.msra.mxu0 %v1439
        %1443 = vmatprep.subr.bf16.mxu0 0
        %1444 = vmatpush1.bf16.xpose.msra.mxu0 0
        %1445 = vmatprep.subr.bf16.mxu0 0
        %1446 = vmatpush1.bf16.xpose.msra.mxu0 0
        %1447 = vmatprep.subr.bf16.mxu0 0
        %1448 = vmatpush1.bf16.xpose.msra.mxu0 0
        %1449 = vmatprep.subr.bf16.mxu0 0
        %1450 = vmatpush1.bf16.xpose.msra.mxu0 0
        %1451 = vmatprep.subr.bf16.mxu0 0
        %1452 = vmatpush1.bf16.xpose.msra.mxu0 0
        %1453 = vmatprep.subr.bf16.mxu0 0
        %1454 = vmatpush1.bf16.xpose.msra.mxu0 0
        %1455 = vmatprep.subr.bf16.mxu0 0
        %1456 = vmatpush1.bf16.xpose.msra.mxu0 0
        %1457 = vmatprep.subr.bf16.mxu0 0
        %1458 = vmatpush1.bf16.xpose.msra.mxu0 0
        %1459 = vmatprep.subr.bf16.mxu0 0
        %1460 = vmatpush1.bf16.xpose.msra.mxu0 0
        %1461 = vmatprep.subr.bf16.mxu0 0
        %1462 = vmatpush1.bf16.xpose.msra.mxu0 0
        %1463 = vmatprep.subr.bf16.mxu0 0
        %1464 = vmatpush1.bf16.xpose.msra.mxu0 0
        %1465 = vmatprep.subr.bf16.mxu0 0
        %1466 = vmatpush1.bf16.xpose.msra.mxu0 0
        %1467 = vmatprep.subr.bf16.mxu0 0
        %1468 = vmatpush1.bf16.xpose.msra.mxu0 0
        %1469 = vmatprep.subr.bf16.mxu0 0
        %1470 = vmatpush1.bf16.xpose.msra.mxu0 0
        %1471 = vmatprep.subr.bf16.mxu0 0
        %1472 = vmatpush1.bf16.xpose.msra.mxu0 0
        %1473 = vmatprep.mubr.bf16.mxu0 0
        %1474 = vmatmul.mubr.bf16.gmra.mrb[0].mxu0 %v1436
        %v1475 = vpop.f32.mrb[0].mxu0
        %v1476 = vadd.f32 0.0, %v1475
        %v1477 = vpop.f32.mrb[0].mxu0
        %v1478 = vpop.f32.mrb[0].mxu0
        %v1479 = vpop.f32.mrb[0].mxu0
        %1480 = vdwg.mxu0
        %v1481 = vsel %vm1070, %v1476, -inf
        %1482 = vmax.xlane.f32.xlu0 %v1481
        %v1483 = vpop.xlane.xlu0 %1482
        %v1484 = vsub.f32 %v1476, %v1483
        %v1485 = vmul.f32 %v1484, 1.442695
        %v1486 = vpow.pop %v1485
        %v1487 = vsel %vm1070, %v1486, 0.0
        %1488 = vadd.xlane.f32.xlu0 %v1487
        %v1489 = vpop.xlane.xlu0 %1488
        %v1490 = vpack.c.bf16 %v1486, %v1486
        %v1491 = vld [vmem:[#allocation3] sm:$0xf]
        %v1493 = vunpack.c.l.b16 %v1491
        %v1494 = vpack.c.b16 %v1493, %v1493
        %1495 = vrot.lane.b32.xlu0 %v1494, 104
        %v1496 = vpop.permute.xlu0 %1495
        %v1498 = vsel %vm1070, %v1490, 0
        %v1501 = vsel %vm1131, %v1496, 0
        %1503 = vmatprep.subr.bf16.mxu0 0
        %1504 = vmatpush1.bf16.msra.mxu0 %v1501
        %1505 = vmatprep.subr.bf16.mxu0 0
        %1506 = vmatpush1.bf16.msra.mxu0 0
        %1507 = vmatprep.subr.bf16.mxu0 0
        %1508 = vmatpush1.bf16.msra.mxu0 0
        %1509 = vmatprep.subr.bf16.mxu0 0
        %1510 = vmatpush1.bf16.msra.mxu0 0
        %1511 = vmatprep.subr.bf16.mxu0 0
        %1512 = vmatpush1.bf16.msra.mxu0 0
        %1513 = vmatprep.subr.bf16.mxu0 0
        %1514 = vmatpush1.bf16.msra.mxu0 0
        %1515 = vmatprep.subr.bf16.mxu0 0
        %1516 = vmatpush1.bf16.msra.mxu0 0
        %1517 = vmatprep.subr.bf16.mxu0 0
        %1518 = vmatpush1.bf16.msra.mxu0 0
        %1519 = vmatprep.subr.bf16.mxu0 0
        %1520 = vmatpush1.bf16.msra.mxu0 0
        %1521 = vmatprep.subr.bf16.mxu0 0
        %1522 = vmatpush1.bf16.msra.mxu0 0
        %1523 = vmatprep.subr.bf16.mxu0 0
        %1524 = vmatpush1.bf16.msra.mxu0 0
        %1525 = vmatprep.subr.bf16.mxu0 0
        %1526 = vmatpush1.bf16.msra.mxu0 0
        %1527 = vmatprep.subr.bf16.mxu0 0
        %1528 = vmatpush1.bf16.msra.mxu0 0
        %1529 = vmatprep.subr.bf16.mxu0 0
        %1530 = vmatpush1.bf16.msra.mxu0 0
        %1531 = vmatprep.subr.bf16.mxu0 0
        %1532 = vmatpush1.bf16.msra.mxu0 0
        %1533 = vmatprep.subr.bf16.mxu0 0
        %1534 = vmatpush1.bf16.msra.mxu0 0
        %1535 = vmatprep.mubr.bf16.mxu0 0
        %1536 = vmatmul.mubr.bf16.gmra.mrb[0].mxu0 %v1498
        %v1537 = vpop.f32.mrb[0].mxu0
        %v1538 = vadd.f32 0.0, %v1537
        %v1539 = vpop.f32.mrb[0].mxu0
        %v1540 = vpop.f32.mrb[0].mxu0
        %v1541 = vpop.f32.mrb[0].mxu0
        %1542 = vdwg.mxu0
        %v1543 = vrcp.pop %v1489
        %v1544 = vmul.f32 %v1538, %v1543
        %1546 = vrot.lane.b32.xlu0 %v1544, 24
        %v1547 = vpop.permute.xlu0 %1546
        %vm1549 = vcmask 261312
        %1550 = vst.msk [vmem:[#allocation4] sm:$0xff] %vm1549, %v1547
        %v1551 = vld [vmem:[#allocation4] sm:$0xff]
        %v1552 = vpack.c.bf16 %v1551, %v1551
        %v1553 = vld [vmem:[#allocation20] sm:$0xf]
        %v1554 = vld [vmem:[#allocation20 + $0x4] sm:$0xf]
        %v1555 = vld [vmem:[#allocation20 + $0x8] sm:$0xf]
        %v1556 = vld [vmem:[#allocation20 + $0xc] sm:$0xf]
        %v1557 = vld [vmem:[#allocation22] sm:$0x1]
        %v1559 = vlaneseq
        %v1560 = vshrl.u32 %v1559, 7
        %v1561 = vsub.s32 0, %v1560
        %v1562 = vrot.slane %v1557, %v1561
        %v1568 = vunpack.c.l.b16 %v1553
        %v1569 = vunpack.c.l.b16 %v1554
        %v1570 = vunpack.c.l.b16 %v1555
        %v1571 = vunpack.c.l.b16 %v1556
        %v1572 = vpack.c.b16 %v1569, %v1568
        %v1573 = vpack.c.b16 %v1571, %v1570
        %v1577 = vsel %vm972, %v1552, 0
        %1579 = vmatprep.subr.bf16.mxu0 0
        %1580 = vmatpush1.bf16.msra.mxu0 %v1572
        %1581 = vmatprep.subr.bf16.mxu0 0
        %1582 = vmatpush1.bf16.msra.mxu0 %v1573
        %1583 = vmatprep.subr.bf16.mxu0 0
        %1584 = vmatpush1.bf16.msra.mxu0 0
        %1585 = vmatprep.subr.bf16.mxu0 0
        %1586 = vmatpush1.bf16.msra.mxu0 0
        %1587 = vmatprep.subr.bf16.mxu0 0
        %1588 = vmatpush1.bf16.msra.mxu0 0
        %1589 = vmatprep.subr.bf16.mxu0 0
        %1590 = vmatpush1.bf16.msra.mxu0 0
        %1591 = vmatprep.subr.bf16.mxu0 0
        %1592 = vmatpush1.bf16.msra.mxu0 0
        %1593 = vmatprep.subr.bf16.mxu0 0
        %1594 = vmatpush1.bf16.msra.mxu0 0
        %1595 = vmatprep.subr.bf16.mxu0 0
        %1596 = vmatpush1.bf16.msra.mxu0 0
        %1597 = vmatprep.subr.bf16.mxu0 0
        %1598 = vmatpush1.bf16.msra.mxu0 0
        %1599 = vmatprep.subr.bf16.mxu0 0
        %1600 = vmatpush1.bf16.msra.mxu0 0
        %1601 = vmatprep.subr.bf16.mxu0 0
        %1602 = vmatpush1.bf16.msra.mxu0 0
        %1603 = vmatprep.subr.bf16.mxu0 0
        %1604 = vmatpush1.bf16.msra.mxu0 0
        %1605 = vmatprep.subr.bf16.mxu0 0
        %1606 = vmatpush1.bf16.msra.mxu0 0
        %1607 = vmatprep.subr.bf16.mxu0 0
        %1608 = vmatpush1.bf16.msra.mxu0 0
        %1609 = vmatprep.subr.bf16.mxu0 0
        %1610 = vmatpush1.bf16.msra.mxu0 0
        %1611 = vmatprep.mubr.bf16.mxu0 0
        %1612 = vmatmul.mubr.bf16.gmra.mrb[0].mxu0 %v1577
        %v1613 = vpop.f32.mrb[0].mxu0
        %v1614 = vadd.f32 %v1562, %v1613
        %v1615 = vpop.f32.mrb[0].mxu0
        %v1616 = vpop.f32.mrb[0].mxu0
        %v1617 = vpop.f32.mrb[0].mxu0
        %1618 = vdwg.mxu0
        %v1619 = vadd.f32 %v969, %v1614
        %v1620 = vld [vmem:[#allocation23] sm:$0x1]
        %v1621 = vld [vmem:[#allocation25] sm:$0x1]
        %v1622 = vsel %vm972, %v1619, 0.0
        %1623 = vadd.xlane.f32.xlu0 %v1622
        %v1624 = vpop.xlane.xlu0 %1623
        %v1625 = vmul.f32 %v1624, %v976
        %v1626 = vsub.f32 %v1619, %v1625
        %v1627 = vmul.f32 %v1626, %v1626
        %v1628 = vsel %vm972, %v1627, 0.0
        %1629 = vadd.xlane.f32.xlu0 %v1628
        %v1630 = vpop.xlane.xlu0 %1629
        %v1631 = vmul.f32 %v1630, %v976
        %v1632 = vadd.f32 %v1631, 1e-06
        %v1633 = vrsqrt.pop %v1632
        %v1634 = vmul.f32 %v1626, %v1633
        %v1636 = vlaneseq
        %v1637 = vshrl.u32 %v1636, 7
        %v1638 = vsub.s32 0, %v1637
        %v1639 = vrot.slane %v1620, %v1638
        %v1641 = vmul.f32 %v1634, %v1639
        %v1643 = vlaneseq
        %v1644 = vshrl.u32 %v1643, 7
        %v1645 = vsub.s32 0, %v1644
        %v1646 = vrot.slane %v1621, %v1645
        %v1648 = vadd.f32 %v1641, %v1646
        %v1649 = vpack.c.bf16 %v1648, %v1648
        %v1650 = vld [vmem:[#allocation26] sm:$0xf]
        %v1651 = vld [vmem:[#allocation26 + $0x4] sm:$0xf]
        %v1652 = vld [vmem:[#allocation26 + $0x8] sm:$0xf]
        %v1653 = vld [vmem:[#allocation26 + $0xc] sm:$0xf]
        %v1654 = vld [vmem:[#allocation28] sm:$0x1]
        %v1656 = vlaneseq
        %v1657 = vshrl.u32 %v1656, 7
        %v1658 = vsub.s32 0, %v1657
        %v1659 = vrot.slane %v1654, %v1658
        %v1665 = vunpack.c.l.b16 %v1650
        %v1666 = vunpack.c.l.b16 %v1651
        %v1667 = vunpack.c.l.b16 %v1652
        %v1668 = vunpack.c.l.b16 %v1653
        %v1669 = vpack.c.b16 %v1666, %v1665
        %v1670 = vpack.c.b16 %v1668, %v1667
        %v1674 = vsel %vm972, %v1649, 0
        %1676 = vmatprep.subr.bf16.mxu0 0
        %1677 = vmatpush1.bf16.msra.mxu0 %v1669
        %1678 = vmatprep.subr.bf16.mxu0 0
        %1679 = vmatpush1.bf16.msra.mxu0 %v1670
        %1680 = vmatprep.subr.bf16.mxu0 0
        %1681 = vmatpush1.bf16.msra.mxu0 0
        %1682 = vmatprep.subr.bf16.mxu0 0
        %1683 = vmatpush1.bf16.msra.mxu0 0
        %1684 = vmatprep.subr.bf16.mxu0 0
        %1685 = vmatpush1.bf16.msra.mxu0 0
        %1686 = vmatprep.subr.bf16.mxu0 0
        %1687 = vmatpush1.bf16.msra.mxu0 0
        %1688 = vmatprep.subr.bf16.mxu0 0
        %1689 = vmatpush1.bf16.msra.mxu0 0
        %1690 = vmatprep.subr.bf16.mxu0 0
        %1691 = vmatpush1.bf16.msra.mxu0 0
        %1692 = vmatprep.subr.bf16.mxu0 0
        %1693 = vmatpush1.bf16.msra.mxu0 0
        %1694 = vmatprep.subr.bf16.mxu0 0
        %1695 = vmatpush1.bf16.msra.mxu0 0
        %1696 = vmatprep.subr.bf16.mxu0 0
        %1697 = vmatpush1.bf16.msra.mxu0 0
        %1698 = vmatprep.subr.bf16.mxu0 0
        %1699 = vmatpush1.bf16.msra.mxu0 0
        %1700 = vmatprep.subr.bf16.mxu0 0
        %1701 = vmatpush1.bf16.msra.mxu0 0
        %1702 = vmatprep.subr.bf16.mxu0 0
        %1703 = vmatpush1.bf16.msra.mxu0 0
        %1704 = vmatprep.subr.bf16.mxu0 0
        %1705 = vmatpush1.bf16.msra.mxu0 0
        %1706 = vmatprep.subr.bf16.mxu0 0
        %1707 = vmatpush1.bf16.msra.mxu0 0
        %1708 = vmatprep.mubr.bf16.mxu0 0
        %1709 = vmatmul.mubr.bf16.gmra.mrb[0].mxu0 %v1674
        %v1710 = vpop.f32.mrb[0].mxu0
        %v1711 = vadd.f32 %v1659, %v1710
        %v1712 = vpop.f32.mrb[0].mxu0
        %v1713 = vpop.f32.mrb[0].mxu0
        %v1714 = vpop.f32.mrb[0].mxu0
        %1715 = vdwg.mxu0
        %v1716 = vmul.f32 %v1711, 0.5
        %v1717 = vmul.f32 %v1711, 0.044715
        %v1718 = vmul.f32 %v1717, %v1711
        %v1719 = vmul.f32 %v1718, %v1711
        %v1720 = vadd.f32 %v1711, %v1719
        %v1721 = vmul.f32 %v1720, 0.7978846
        %v1722 = vtanh.pop %v1721
        %v1723 = vadd.f32 %v1722, 1.0
        %v1724 = vmul.f32 %v1716, %v1723
        %v1725 = vpack.c.bf16 %v1724, %v1724
        %v1726 = vld [vmem:[#allocation29] sm:$0xf]
        %v1727 = vld [vmem:[#allocation29 + $0x4] sm:$0xf]
        %v1728 = vld [vmem:[#allocation29 + $0x8] sm:$0xf]
        %v1729 = vld [vmem:[#allocation29 + $0xc] sm:$0xf]
        %v1730 = vld [vmem:[#allocation29 + $0x10] sm:$0xf]
        %v1731 = vld [vmem:[#allocation29 + $0x14] sm:$0xf]
        %v1732 = vld [vmem:[#allocation29 + $0x18] sm:$0xf]
        %v1733 = vld [vmem:[#allocation29 + $0x1c] sm:$0xf]
        %v1734 = vld [vmem:[#allocation29 + $0x20] sm:$0xf]
        %v1735 = vld [vmem:[#allocation29 + $0x24] sm:$0xf]
        %v1736 = vld [vmem:[#allocation29 + $0x28] sm:$0xf]
        %v1737 = vld [vmem:[#allocation29 + $0x2c] sm:$0xf]
        %v1738 = vld [vmem:[#allocation29 + $0x30] sm:$0xf]
        %v1739 = vld [vmem:[#allocation29 + $0x34] sm:$0xf]
        %v1740 = vld [vmem:[#allocation29 + $0x38] sm:$0xf]
        %v1741 = vld [vmem:[#allocation29 + $0x3c] sm:$0xf]
        %v1742 = vld [vmem:[#allocation31] sm:$0x1]
        %v1744 = vlaneseq
        %v1745 = vshrl.u32 %v1744, 7
        %v1746 = vsub.s32 0, %v1745
        %v1747 = vrot.slane %v1742, %v1746
        %v1765 = vunpack.c.l.b16 %v1726
        %v1766 = vunpack.c.l.b16 %v1727
        %v1767 = vunpack.c.l.b16 %v1728
        %v1768 = vunpack.c.l.b16 %v1729
        %v1769 = vunpack.c.l.b16 %v1730
        %v1770 = vunpack.c.l.b16 %v1731
        %v1771 = vunpack.c.l.b16 %v1732
        %v1772 = vunpack.c.l.b16 %v1733
        %v1773 = vunpack.c.l.b16 %v1734
        %v1774 = vunpack.c.l.b16 %v1735
        %v1775 = vunpack.c.l.b16 %v1736
        %v1776 = vunpack.c.l.b16 %v1737
        %v1777 = vunpack.c.l.b16 %v1738
        %v1778 = vunpack.c.l.b16 %v1739
        %v1779 = vunpack.c.l.b16 %v1740
        %v1780 = vunpack.c.l.b16 %v1741
        %v1781 = vpack.c.b16 %v1766, %v1765
        %v1782 = vpack.c.b16 %v1768, %v1767
        %v1783 = vpack.c.b16 %v1770, %v1769
        %v1784 = vpack.c.b16 %v1772, %v1771
        %v1785 = vpack.c.b16 %v1774, %v1773
        %v1786 = vpack.c.b16 %v1776, %v1775
        %v1787 = vpack.c.b16 %v1778, %v1777
        %v1788 = vpack.c.b16 %v1780, %v1779
        %1797 = vmatprep.subr.bf16.mxu0 0
        %1798 = vmatpush1.bf16.msra.mxu0 %v1781
        %1799 = vmatprep.subr.bf16.mxu0 0
        %1800 = vmatpush1.bf16.msra.mxu0 %v1782
        %1801 = vmatprep.subr.bf16.mxu0 0
        %1802 = vmatpush1.bf16.msra.mxu0 %v1783
        %1803 = vmatprep.subr.bf16.mxu0 0
        %1804 = vmatpush1.bf16.msra.mxu0 %v1784
        %1805 = vmatprep.subr.bf16.mxu0 0
        %1806 = vmatpush1.bf16.msra.mxu0 %v1785
        %1807 = vmatprep.subr.bf16.mxu0 0
        %1808 = vmatpush1.bf16.msra.mxu0 %v1786
        %1809 = vmatprep.subr.bf16.mxu0 0
        %1810 = vmatpush1.bf16.msra.mxu0 %v1787
        %1811 = vmatprep.subr.bf16.mxu0 0
        %1812 = vmatpush1.bf16.msra.mxu0 %v1788
        %1813 = vmatprep.subr.bf16.mxu0 0
        %1814 = vmatpush1.bf16.msra.mxu0 0
        %1815 = vmatprep.subr.bf16.mxu0 0
        %1816 = vmatpush1.bf16.msra.mxu0 0
        %1817 = vmatprep.subr.bf16.mxu0 0
        %1818 = vmatpush1.bf16.msra.mxu0 0
        %1819 = vmatprep.subr.bf16.mxu0 0
        %1820 = vmatpush1.bf16.msra.mxu0 0
        %1821 = vmatprep.subr.bf16.mxu0 0
        %1822 = vmatpush1.bf16.msra.mxu0 0
        %1823 = vmatprep.subr.bf16.mxu0 0
        %1824 = vmatpush1.bf16.msra.mxu0 0
        %1825 = vmatprep.subr.bf16.mxu0 0
        %1826 = vmatpush1.bf16.msra.mxu0 0
        %1827 = vmatprep.subr.bf16.mxu0 0
        %1828 = vmatpush1.bf16.msra.mxu0 0
        %1829 = vmatprep.mubr.bf16.mxu0 0
        %1830 = vmatmul.mubr.bf16.gmra.mrb[0].mxu0 %v1725
        %v1831 = vpop.f32.mrb[0].mxu0
        %v1832 = vadd.f32 %v1747, %v1831
        %v1833 = vpop.f32.mrb[0].mxu0
        %v1834 = vpop.f32.mrb[0].mxu0
        %v1835 = vpop.f32.mrb[0].mxu0
        %1836 = vdwg.mxu0
        %v1837 = vadd.f32 %v1619, %v1832
        %1838 = vst.msk [vmem:[%s789] sm:$0xff] %vm972, %v1837
        %s1839 = sand.u32 %s426, 1
        %s1840 = scalar_lea.sflag [#allocation7], %s1839
        %s1841 = sand.u32 %s426, 1
        %s1842 = smul.addr %s1841, 8
        %s1843 = scalar_lea.vmem [#allocation32], %s1842
        // Predicated region
        $region161: #{tpu_custom_call.1} parent=87 // pred_check
          %p1844 = pneg %p436
        $region162: #{tpu_custom_call.1} parent=87 // pred_check_branch
          %1846 = sbr.rel (%p1844) target = $region164
        $region163: #{tpu_custom_call.1} parent=87 // pred_region
          %s1848 = ssub.s32 128, 128
          %1849 = vsyncadd %s1840, %s1848
          %s1850 = sadd.s32 %s47, %s46
          %s1851 = smul.addr %s1850, 128
          %s1852 = scalar_lea.hbm %s17, %s1851
          %s1854 = sshll.u32 %s1843, 4
          %s1855 = int_to_ptr.vmem [resolvable:$true] %s1854
          %1857 = dma.vmem_to_hbm [thread:$0]  %s1855, 128, %s1852, %s1840
        $region164: #{tpu_custom_call.1} parent=87 // pred_fallthru
          _
      $region88: #{tpu_custom_call.1} parent=5 // pred_fallthru
        _
      %p1858 = scmp.le.s32.totalorder 2, %s37
      // Predicated region
      $region165: #{tpu_custom_call.1} parent=5 // pred_check
        %p1859 = pneg %p1858
      $region166: #{tpu_custom_call.1} parent=5 // pred_check_branch
        %1861 = sbr.rel (%p1859) target = $region168
      $region167: #{tpu_custom_call.1} parent=5 // pred_region
        %s1862 = ssub.s32 %s37, 2
        // Predicated region
        $region169: #{tpu_custom_call.1} parent=167 // pred_check
          %p1863 = pneg %p442
        $region170: #{tpu_custom_call.1} parent=167 // pred_check_branch
          %1865 = sbr.rel (%p1863) target = $region172
        $region171: #{tpu_custom_call.1} parent=167 // pred_region
          %s1866 = sand.u32 %s427, 1
          %s1867 = scalar_lea.sflag [#allocation7], %s1866
          %s1868 = sand.u32 %s427, 1
          %s1869 = smul.addr %s1868, 8
          %s1870 = scalar_lea.vmem [#allocation32], %s1869
          %1871 = dma.done %s1867, 128
        $region172: #{tpu_custom_call.1} parent=167 // pred_fallthru
          _
      $region168: #{tpu_custom_call.1} parent=5 // pred_fallthru
        _
    $region6: #{tpu_custom_call.1} parent=1 // loop_footer
      %s41 = sadd.s32 1, %s37
    $region7: #{tpu_custom_call.1} parent=1 // loop_footer_branch
      %36 = sbr.rel target = $region3
    $region8: #{tpu_custom_call.1} parent=1 // loop_exit
      _
    %1872 = vsyncpa [#allocation6], 1
    %s1873 = scalar_lea.sflag [#allocation6], 1
    %1874 = vsyncpa %s1873, 1
    %1875 = vsyncpa [#allocation9], 1
    %1876 = vsyncpa [#allocation12], 1
    %1877 = vsyncpa [#allocation15], 1
    %1878 = vsyncpa [#allocation18], 1
    %1879 = vsyncpa [#allocation21], 1
    %1880 = vsyncpa [#allocation24], 1
    %1881 = vsyncpa [#allocation27], 1
    %1882 = vsyncpa [#allocation30], 1
    %1883 = vsyncpa [#allocation7], 1
    %s1884 = scalar_lea.sflag [#allocation7], 1
    %1885 = vsyncpa %s1884, 1

// kernel: tpu_custom_call.1
$region0: #{tpu_custom_call.1}
  #allocation0 [shape = 'u32[]', space=smem, size = 0x4, offset = 0x4, fixed_abs, tag = 'smem constant byte address 0x4 - core index']
  #allocation1 [shape = 'u32[144,128]{1,0:T(1,128)}', space=vmem, size = 0x12000, scoped, tag = 'internal scratch']
  #allocation2 [shape = 'bf16[8,32]{1,0:T(8,128)(2,1)}', space=vmem, size = 0x800, scoped, tag = 'scratch operand']
  #allocation3 [shape = 'bf16[8,32]{1,0:T(8,128)(2,1)}', space=vmem, size = 0x800, scoped, tag = 'scratch operand']
  #allocation4 [shape = 'f32[8,32]{1,0:T(8,128)}', space=vmem, size = 0x1000, scoped, tag = 'scratch operand']
  %s0 = inlined_call_operand.hbm [shape: bf16[2,8,32], index: 0, kind: input, shape index: {}]
  %s1 = inlined_call_operand.hbm [shape: f32[1,32], index: 1, kind: input, shape index: {}]
  %s2 = inlined_call_operand.hbm [shape: f32[1,32], index: 2, kind: input, shape index: {}]
  %s3 = inlined_call_operand.hbm [shape: bf16[32,32], index: 3, kind: input, shape index: {}]
  %s4 = inlined_call_operand.hbm [shape: f32[1,32], index: 4, kind: input, shape index: {}]
  %s5 = inlined_call_operand.hbm [shape: bf16[32,32], index: 5, kind: input, shape index: {}]
  %s6 = inlined_call_operand.hbm [shape: f32[1,32], index: 6, kind: input, shape index: {}]
  %s7 = inlined_call_operand.hbm [shape: bf16[32,32], index: 7, kind: input, shape index: {}]
  %s8 = inlined_call_operand.hbm [shape: f32[1,32], index: 8, kind: input, shape index: {}]
  %s9 = inlined_call_operand.hbm [shape: bf16[32,32], index: 9, kind: input, shape index: {}]
  %s10 = inlined_call_operand.hbm [shape: f32[1,32], index: 10, kind: input, shape index: {}]
  %s11 = inlined_call_operand.hbm [shape: f32[1,32], index: 11, kind: input, shape index: {}]
  %s12 = inlined_call_operand.hbm [shape: f32[1,32], index: 12, kind: input, shape index: {}]
  %s13 = inlined_call_operand.hbm [shape: bf16[32,128], index: 13, kind: input, shape index: {}]
  %s14 = inlined_call_operand.hbm [shape: f32[1,128], index: 14, kind: input, shape index: {}]
  %s15 = inlined_call_operand.hbm [shape: bf16[128,32], index: 15, kind: input, shape index: {}]
  %s16 = inlined_call_operand.hbm [shape: f32[1,32], index: 16, kind: input, shape index: {}]
  %s17 = inlined_call_operand.hbm [shape: f32[2,8,32], index: 17, kind: output, shape index: {}]
  %s18 = sld [smem:[#allocation0]]
  $region173: #{tpu_custom_call.1} parent=0
    _
  %s20 = ssub.s32 1, %s18
  %s21 = scalar_select 0, %s20, %s18
  $region1: #{tpu_custom_call.1} parent=0
    #allocation5 [shape = 'u8[4096]{0}', space=vmem, size = 0x1000, scoped, tag = 'input window, operand 0']
    #allocation6 [shape = 's32[2]{0}', space=sflag, size = 0x8, scoped, tag = 'scoped memory for tpu_custom_call.1']
    #allocation7 [shape = 's32[2]{0}', space=sflag, size = 0x8, scoped, tag = 'scoped memory for tpu_custom_call.1']
    #allocation8 [shape = 'u8[512]{0}', space=vmem, size = 0x400, scoped, tag = 'input window, operand 1, single buffered']
    #allocation9 [shape = 's32[1]{0}', space=sflag, size = 0x4, scoped, tag = 'scoped memory for tpu_custom_call.1']
    #allocation10 [shape = 'u8[512]{0}', space=vmem, size = 0x400, scoped, tag = 'input window, operand 2, single buffered']
    #allocation11 [shape = 'u8[8192]{0}', space=vmem, size = 0x2000, scoped, tag = 'input window, operand 3, single buffered']
    #allocation12 [shape = 's32[1]{0}', space=sflag, size = 0x4, scoped, tag = 'scoped memory for tpu_custom_call.1']
    #allocation13 [shape = 'u8[512]{0}', space=vmem, size = 0x400, scoped, tag = 'input window, operand 4, single buffered']
    #allocation14 [shape = 'u8[8192]{0}', space=vmem, size = 0x2000, scoped, tag = 'input window, operand 5, single buffered']
    #allocation15 [shape = 's32[1]{0}', space=sflag, size = 0x4, scoped, tag = 'scoped memory for tpu_custom_call.1']
    #allocation16 [shape = 'u8[512]{0}', space=vmem, size = 0x400, scoped, tag = 'input window, operand 6, single buffered']
    #allocation17 [shape = 'u8[8192]{0}', space=vmem, size = 0x2000, scoped, tag = 'input window, operand 7, single buffered']
    #allocation18 [shape = 's32[1]{0}', space=sflag, size = 0x4, scoped, tag = 'scoped memory for tpu_custom_call.1']
    #allocation19 [shape = 'u8[512]{0}', space=vmem, size = 0x400, scoped, tag = 'input window, operand 8, single buffered']
    #allocation20 [shape = 'u8[8192]{0}', space=vmem, size = 0x2000, scoped, tag = 'input window, operand 9, single buffered']
    #allocation21 [shape = 's32[1]{0}', space=sflag, size = 0x4, scoped, tag = 'scoped memory for tpu_custom_call.1']
    #allocation22 [shape = 'u8[512]{0}', space=vmem, size = 0x400, scoped, tag = 'input window, operand 10, single buffered']
    #allocation23 [shape = 'u8[512]{0}', space=vmem, size = 0x400, scoped, tag = 'input window, operand 11, single buffered']
    #allocation24 [shape = 's32[1]{0}', space=sflag, size = 0x4, scoped, tag = 'scoped memory for tpu_custom_call.1']
    #allocation25 [shape = 'u8[512]{0}', space=vmem, size = 0x400, scoped, tag = 'input window, operand 12, single buffered']
    #allocation26 [shape = 'u8[8192]{0}', space=vmem, size = 0x2000, scoped, tag = 'input window, operand 13, single buffered']
    #allocation27 [shape = 's32[1]{0}', space=sflag, size = 0x4, scoped, tag = 'scoped memory for tpu_custom_call.1']
    #allocation28 [shape = 'u8[512]{0}', space=vmem, size = 0x400, scoped, tag = 'input window, operand 14, single buffered']
    #allocation29 [shape = 'u8[32768]{0}', space=vmem, size = 0x8000, scoped, tag = 'input window, operand 15, single buffered']
    #allocation30 [shape = 's32[1]{0}', space=sflag, size = 0x4, scoped, tag = 'scoped memory for tpu_custom_call.1']
    #allocation31 [shape = 'u8[512]{0}', space=vmem, size = 0x400, scoped, tag = 'input window, operand 16, single buffered']
    #allocation32 [shape = 'u8[8192]{0}', space=vmem, size = 0x2000, scoped, tag = 'output window, operand 0']
    %22 = vsyncpa [#allocation6], 0
    %s23 = scalar_lea.sflag [#allocation6], 1
    %24 = vsyncpa %s23, 0
    %25 = vsyncpa [#allocation9], 0
    %26 = vsyncpa [#allocation12], 0
    %27 = vsyncpa [#allocation15], 0
    %28 = vsyncpa [#allocation18], 0
    %29 = vsyncpa [#allocation21], 0
    %30 = vsyncpa [#allocation24], 0
    %31 = vsyncpa [#allocation27], 0
    %32 = vsyncpa [#allocation30], 0
    %33 = vsyncpa [#allocation7], 0
    %s34 = scalar_lea.sflag [#allocation7], 1
    %35 = vsyncpa %s34, 0
    loop: start=0, step=1, limit=4
    $region2: #{tpu_custom_call.1} parent=1 // loop_pre_header
      _
    $region3: #{tpu_custom_call.1} parent=1 // loop_header
      %s37 = sphi 0, %s41
      %p38 = scmp.ge.s32.totalorder %s37, 4
      %s44 = sphi 0, %s56
      %s45 = sphi 0, %s52
      %s46 = sphi 0, %s44
      %s47 = sphi 0, %s45
      %s48 = sphi 0, %s46
      %s49 = sphi 0, %s47
      %s59 = sphi 0, %s61
      %s62 = sphi 0, %s59
      %s63 = sphi 0, %s62
      %s79 = sphi 0, %s63
      %s83 = sphi 0, %s83
      %s85 = sphi 0, %s83
      %s86 = sphi 0, %s85
      %s100 = sphi 0, %s86
      %s104 = sphi 0, %s104
      %s106 = sphi 0, %s104
      %s107 = sphi 0, %s106
      %s121 = sphi 0, %s107
      %s125 = sphi 0, %s125
      %s127 = sphi 0, %s125
      %s128 = sphi 0, %s127
      %s142 = sphi 0, %s128
      %s146 = sphi 0, %s146
      %s148 = sphi 0, %s146
      %s149 = sphi 0, %s148
      %s163 = sphi 0, %s149
      %s167 = sphi 0, %s167
      %s169 = sphi 0, %s167
      %s170 = sphi 0, %s169
      %s184 = sphi 0, %s170
      %s188 = sphi 0, %s188
      %s190 = sphi 0, %s188
      %s191 = sphi 0, %s190
      %s205 = sphi 0, %s191
      %s209 = sphi 0, %s209
      %s211 = sphi 0, %s209
      %s212 = sphi 0, %s211
      %s226 = sphi 0, %s212
      %s230 = sphi 0, %s230
      %s232 = sphi 0, %s230
      %s233 = sphi 0, %s232
      %s247 = sphi 0, %s233
      %s251 = sphi 0, %s251
      %s253 = sphi 0, %s251
      %s254 = sphi 0, %s253
      %s268 = sphi 0, %s254
      %s272 = sphi 0, %s272
      %s274 = sphi 0, %s272
      %s275 = sphi 0, %s274
      %s289 = sphi 0, %s275
      %s293 = sphi 0, %s293
      %s295 = sphi 0, %s293
      %s296 = sphi 0, %s295
      %s310 = sphi 0, %s296
      %s314 = sphi 0, %s314
      %s316 = sphi 0, %s314
      %s317 = sphi 0, %s316
      %s331 = sphi 0, %s317
      %s335 = sphi 0, %s335
      %s337 = sphi 0, %s335
      %s338 = sphi 0, %s337
      %s352 = sphi 0, %s338
      %s356 = sphi 0, %s356
      %s358 = sphi 0, %s356
      %s359 = sphi 0, %s358
      %s373 = sphi 0, %s359
      %s377 = sphi 0, %s377
      %s379 = sphi 0, %s377
      %s380 = sphi 0, %s379
      %s394 = sphi 0, %s380
      %s398 = sphi 0, %s398
      %s400 = sphi 0, %s398
      %s401 = sphi 0, %s400
      %s415 = sphi 0, %s401
      %s423 = sphi 0, %s425
      %s426 = sphi 0, %s423
      %s427 = sphi 0, %s426
      %s443 = sphi 0, %s427
    $region4: #{tpu_custom_call.1} parent=1 // loop_header_branch
      %40 = sbr.rel (%p38) target = $region8
    $region5: #{tpu_custom_call.1} parent=1 // loop_body
      %s42 = ssub.s32 %s37, 1
      %s43 = ssub.s32 %s37, 2
      %s50 = sadd.s32 1, %s45
      %p51 = scmp.ge.s32.totalorder %s50, 1
      %s52 = scalar_select %p51, 0, %s50
      %s53 = sadd.s32 1, %s44
      %s54 = scalar_select %p51, %s53, %s44
      %p55 = scmp.ge.s32.totalorder %s54, 2
      %s56 = scalar_select %p55, 0, %s54
      %s57 = ssub.s32 %s44, %s56
      %p58 = scmp.eq.s32.totalorder %s57, 0
      %s60 = sadd.s32 %s59, 1
      %s61 = scalar_select %p58, %s59, %s60
      %p64 = pneg %p58
      %p65 = scmp.eq.s32.totalorder %s37, 1
      %p66 = por %p64, %p65
      %p67 = scmp.ne.s32.totalorder %s59, %s62
      %p68 = scmp.eq.s32.totalorder %s37, 0
      %p69 = por %p67, %p68
      %p70 = scmp.ne.s32.totalorder %s59, %s62
      %p71 = scmp.eq.s32.totalorder %s42, 1
      %p72 = por %p70, %p71
      %p73 = scmp.ne.s32.totalorder %s62, %s63
      %p74 = scmp.eq.s32.totalorder %s42, 0
      %p75 = por %p73, %p74
      %p76 = scmp.ne.s32.totalorder %s62, %s63
      %p77 = scmp.eq.s32.totalorder %s43, 1
      %p78 = por %p76, %p77
      %p80 = scmp.ne.s32.totalorder %s63, %s79
      %p81 = scmp.eq.s32.totalorder %s43, 0
      %p82 = por %p80, %p81
      %s84 = sadd.s32 %s83, 1
      %p87 = scmp.eq.s32.totalorder %s37, 1
      %p88 = scmp.ne.s32.totalorder %s83, %s85
      %p89 = scmp.eq.s32.totalorder %s37, 0
      %p90 = por %p88, %p89
      %p91 = scmp.ne.s32.totalorder %s83, %s85
      %p92 = scmp.eq.s32.totalorder %s42, 1
      %p93 = por %p91, %p92
      %p94 = scmp.ne.s32.totalorder %s85, %s86
      %p95 = scmp.eq.s32.totalorder %s42, 0
      %p96 = por %p94, %p95
      %p97 = scmp.ne.s32.totalorder %s85, %s86
      %p98 = scmp.eq.s32.totalorder %s43, 1
      %p99 = por %p97, %p98
      %p101 = scmp.ne.s32.totalorder %s86, %s100
      %p102 = scmp.eq.s32.totalorder %s43, 0
      %p103 = por %p101, %p102
      %s105 = sadd.s32 %s104, 1
      %p108 = scmp.eq.s32.totalorder %s37, 1
      %p109 = scmp.ne.s32.totalorder %s104, %s106
      %p110 = scmp.eq.s32.totalorder %s37, 0
      %p111 = por %p109, %p110
      %p112 = scmp.ne.s32.totalorder %s104, %s106
      %p113 = scmp.eq.s32.totalorder %s42, 1
      %p114 = por %p112, %p113
      %p115 = scmp.ne.s32.totalorder %s106, %s107
      %p116 = scmp.eq.s32.totalorder %s42, 0
      %p117 = por %p115, %p116
      %p118 = scmp.ne.s32.totalorder %s106, %s107
      %p119 = scmp.eq.s32.totalorder %s43, 1
      %p120 = por %p118, %p119
      %p122 = scmp.ne.s32.totalorder %s107, %s121
      %p123 = scmp.eq.s32.totalorder %s43, 0
      %p124 = por %p122, %p123
      %s126 = sadd.s32 %s125, 1
      %p129 = scmp.eq.s32.totalorder %s37, 1
      %p130 = scmp.ne.s32.totalorder %s125, %s127
      %p131 = scmp.eq.s32.totalorder %s37, 0
      %p132 = por %p130, %p131
      %p133 = scmp.ne.s32.totalorder %s125, %s127
      %p134 = scmp.eq.s32.totalorder %s42, 1
      %p135 = por %p133, %p134
      %p136 = scmp.ne.s32.totalorder %s127, %s128
      %p137 = scmp.eq.s32.totalorder %s42, 0
      %p138 = por %p136, %p137
      %p139 = scmp.ne.s32.totalorder %s127, %s128
      %p140 = scmp.eq.s32.totalorder %s43, 1
      %p141 = por %p139, %p140
      %p143 = scmp.ne.s32.totalorder %s128, %s142
      %p144 = scmp.eq.s32.totalorder %s43, 0
      %p145 = por %p143, %p144
      %s147 = sadd.s32 %s146, 1
      %p150 = scmp.eq.s32.totalorder %s37, 1
      %p151 = scmp.ne.s32.totalorder %s146, %s148
      %p152 = scmp.eq.s32.totalorder %s37, 0
      %p153 = por %p151, %p152
      %p154 = scmp.ne.s32.totalorder %s146, %s148
      %p155 = scmp.eq.s32.totalorder %s42, 1
      %p156 = por %p154, %p155
      %p157 = scmp.ne.s32.totalorder %s148, %s149
      %p158 = scmp.eq.s32.totalorder %s42, 0
      %p159 = por %p157, %p158
      %p160 = scmp.ne.s32.totalorder %s148, %s149
      %p161 = scmp.eq.s32.totalorder %s43, 1
      %p162 = por %p160, %p161
      %p164 = scmp.ne.s32.totalorder %s149, %s163
      %p165 = scmp.eq.s32.totalorder %s43, 0
      %p166 = por %p164, %p165
      %s168 = sadd.s32 %s167, 1
      %p171 = scmp.eq.s32.totalorder %s37, 1
      %p172 = scmp.ne.s32.totalorder %s167, %s169
      %p173 = scmp.eq.s32.totalorder %s37, 0
      %p174 = por %p172, %p173
      %p175 = scmp.ne.s32.totalorder %s167, %s169
      %p176 = scmp.eq.s32.totalorder %s42, 1
      %p177 = por %p175, %p176
      %p178 = scmp.ne.s32.totalorder %s169, %s170
      %p179 = scmp.eq.s32.totalorder %s42, 0
      %p180 = por %p178, %p179
      %p181 = scmp.ne.s32.totalorder %s169, %s170
      %p182 = scmp.eq.s32.totalorder %s43, 1
      %p183 = por %p181, %p182
      %p185 = scmp.ne.s32.totalorder %s170, %s184
      %p186 = scmp.eq.s32.totalorder %s43, 0
      %p187 = por %p185, %p186
      %s189 = sadd.s32 %s188, 1
      %p192 = scmp.eq.s32.totalorder %s37, 1
      %p193 = scmp.ne.s32.totalorder %s188, %s190
      %p194 = scmp.eq.s32.totalorder %s37, 0
      %p195 = por %p193, %p194
      %p196 = scmp.ne.s32.totalorder %s188, %s190
      %p197 = scmp.eq.s32.totalorder %s42, 1
      %p198 = por %p196, %p197
      %p199 = scmp.ne.s32.totalorder %s190, %s191
      %p200 = scmp.eq.s32.totalorder %s42, 0
      %p201 = por %p199, %p200
      %p202 = scmp.ne.s32.totalorder %s190, %s191
      %p203 = scmp.eq.s32.totalorder %s43, 1
      %p204 = por %p202, %p203
      %p206 = scmp.ne.s32.totalorder %s191, %s205
      %p207 = scmp.eq.s32.totalorder %s43, 0
      %p208 = por %p206, %p207
      %s210 = sadd.s32 %s209, 1
      %p213 = scmp.eq.s32.totalorder %s37, 1
      %p214 = scmp.ne.s32.totalorder %s209, %s211
      %p215 = scmp.eq.s32.totalorder %s37, 0
      %p216 = por %p214, %p215
      %p217 = scmp.ne.s32.totalorder %s209, %s211
      %p218 = scmp.eq.s32.totalorder %s42, 1
      %p219 = por %p217, %p218
      %p220 = scmp.ne.s32.totalorder %s211, %s212
      %p221 = scmp.eq.s32.totalorder %s42, 0
      %p222 = por %p220, %p221
      %p223 = scmp.ne.s32.totalorder %s211, %s212
      %p224 = scmp.eq.s32.totalorder %s43, 1
      %p225 = por %p223, %p224
      %p227 = scmp.ne.s32.totalorder %s212, %s226
      %p228 = scmp.eq.s32.totalorder %s43, 0
      %p229 = por %p227, %p228
      %s231 = sadd.s32 %s230, 1
      %p234 = scmp.eq.s32.totalorder %s37, 1
      %p235 = scmp.ne.s32.totalorder %s230, %s232
      %p236 = scmp.eq.s32.totalorder %s37, 0
      %p237 = por %p235, %p236
      %p238 = scmp.ne.s32.totalorder %s230, %s232
      %p239 = scmp.eq.s32.totalorder %s42, 1
      %p240 = por %p238, %p239
      %p241 = scmp.ne.s32.totalorder %s232, %s233
      %p242 = scmp.eq.s32.totalorder %s42, 0
      %p243 = por %p241, %p242
      %p244 = scmp.ne.s32.totalorder %s232, %s233
      %p245 = scmp.eq.s32.totalorder %s43, 1
      %p246 = por %p244, %p245
      %p248 = scmp.ne.s32.totalorder %s233, %s247
      %p249 = scmp.eq.s32.totalorder %s43, 0
      %p250 = por %p248, %p249
      %s252 = sadd.s32 %s251, 1
      %p255 = scmp.eq.s32.totalorder %s37, 1
      %p256 = scmp.ne.s32.totalorder %s251, %s253
      %p257 = scmp.eq.s32.totalorder %s37, 0
      %p258 = por %p256, %p257
      %p259 = scmp.ne.s32.totalorder %s251, %s253
      %p260 = scmp.eq.s32.totalorder %s42, 1
      %p261 = por %p259, %p260
      %p262 = scmp.ne.s32.totalorder %s253, %s254
      %p263 = scmp.eq.s32.totalorder %s42, 0
      %p264 = por %p262, %p263
      %p265 = scmp.ne.s32.totalorder %s253, %s254
      %p266 = scmp.eq.s32.totalorder %s43, 1
      %p267 = por %p265, %p266
      %p269 = scmp.ne.s32.totalorder %s254, %s268
      %p270 = scmp.eq.s32.totalorder %s43, 0
      %p271 = por %p269, %p270
      %s273 = sadd.s32 %s272, 1
      %p276 = scmp.eq.s32.totalorder %s37, 1
      %p277 = scmp.ne.s32.totalorder %s272, %s274
      %p278 = scmp.eq.s32.totalorder %s37, 0
      %p279 = por %p277, %p278
      %p280 = scmp.ne.s32.totalorder %s272, %s274
      %p281 = scmp.eq.s32.totalorder %s42, 1
      %p282 = por %p280, %p281
      %p283 = scmp.ne.s32.totalorder %s274, %s275
      %p284 = scmp.eq.s32.totalorder %s42, 0
      %p285 = por %p283, %p284
      %p286 = scmp.ne.s32.totalorder %s274, %s275
      %p287 = scmp.eq.s32.totalorder %s43, 1
      %p288 = por %p286, %p287
      %p290 = scmp.ne.s32.totalorder %s275, %s289
      %p291 = scmp.eq.s32.totalorder %s43, 0
      %p292 = por %p290, %p291
      %s294 = sadd.s32 %s293, 1
      %p297 = scmp.eq.s32.totalorder %s37, 1
      %p298 = scmp.ne.s32.totalorder %s293, %s295
      %p299 = scmp.eq.s32.totalorder %s37, 0
      %p300 = por %p298, %p299
      %p301 = scmp.ne.s32.totalorder %s293, %s295
      %p302 = scmp.eq.s32.totalorder %s42, 1
      %p303 = por %p301, %p302
      %p304 = scmp.ne.s32.totalorder %s295, %s296
      %p305 = scmp.eq.s32.totalorder %s42, 0
      %p306 = por %p304, %p305
      %p307 = scmp.ne.s32.totalorder %s295, %s296
      %p308 = scmp.eq.s32.totalorder %s43, 1
      %p309 = por %p307, %p308
      %p311 = scmp.ne.s32.totalorder %s296, %s310
      %p312 = scmp.eq.s32.totalorder %s43, 0
      %p313 = por %p311, %p312
      %s315 = sadd.s32 %s314, 1
      %p318 = scmp.eq.s32.totalorder %s37, 1
      %p319 = scmp.ne.s32.totalorder %s314, %s316
      %p320 = scmp.eq.s32.totalorder %s37, 0
      %p321 = por %p319, %p320
      %p322 = scmp.ne.s32.totalorder %s314, %s316
      %p323 = scmp.eq.s32.totalorder %s42, 1
      %p324 = por %p322, %p323
      %p325 = scmp.ne.s32.totalorder %s316, %s317
      %p326 = scmp.eq.s32.totalorder %s42, 0
      %p327 = por %p325, %p326
      %p328 = scmp.ne.s32.totalorder %s316, %s317
      %p329 = scmp.eq.s32.totalorder %s43, 1
      %p330 = por %p328, %p329
      %p332 = scmp.ne.s32.totalorder %s317, %s331
      %p333 = scmp.eq.s32.totalorder %s43, 0
      %p334 = por %p332, %p333
      %s336 = sadd.s32 %s335, 1
      %p339 = scmp.eq.s32.totalorder %s37, 1
      %p340 = scmp.ne.s32.totalorder %s335, %s337
      %p341 = scmp.eq.s32.totalorder %s37, 0
      %p342 = por %p340, %p341
      %p343 = scmp.ne.s32.totalorder %s335, %s337
      %p344 = scmp.eq.s32.totalorder %s42, 1
      %p345 = por %p343, %p344
      %p346 = scmp.ne.s32.totalorder %s337, %s338
      %p347 = scmp.eq.s32.totalorder %s42, 0
      %p348 = por %p346, %p347
      %p349 = scmp.ne.s32.totalorder %s337, %s338
      %p350 = scmp.eq.s32.totalorder %s43, 1
      %p351 = por %p349, %p350
      %p353 = scmp.ne.s32.totalorder %s338, %s352
      %p354 = scmp.eq.s32.totalorder %s43, 0
      %p355 = por %p353, %p354
      %s357 = sadd.s32 %s356, 1
      %p360 = scmp.eq.s32.totalorder %s37, 1
      %p361 = scmp.ne.s32.totalorder %s356, %s358
      %p362 = scmp.eq.s32.totalorder %s37, 0
      %p363 = por %p361, %p362
      %p364 = scmp.ne.s32.totalorder %s356, %s358
      %p365 = scmp.eq.s32.totalorder %s42, 1
      %p366 = por %p364, %p365
      %p367 = scmp.ne.s32.totalorder %s358, %s359
      %p368 = scmp.eq.s32.totalorder %s42, 0
      %p369 = por %p367, %p368
      %p370 = scmp.ne.s32.totalorder %s358, %s359
      %p371 = scmp.eq.s32.totalorder %s43, 1
      %p372 = por %p370, %p371
      %p374 = scmp.ne.s32.totalorder %s359, %s373
      %p375 = scmp.eq.s32.totalorder %s43, 0
      %p376 = por %p374, %p375
      %s378 = sadd.s32 %s377, 1
      %p381 = scmp.eq.s32.totalorder %s37, 1
      %p382 = scmp.ne.s32.totalorder %s377, %s379
      %p383 = scmp.eq.s32.totalorder %s37, 0
      %p384 = por %p382, %p383
      %p385 = scmp.ne.s32.totalorder %s377, %s379
      %p386 = scmp.eq.s32.totalorder %s42, 1
      %p387 = por %p385, %p386
      %p388 = scmp.ne.s32.totalorder %s379, %s380
      %p389 = scmp.eq.s32.totalorder %s42, 0
      %p390 = por %p388, %p389
      %p391 = scmp.ne.s32.totalorder %s379, %s380
      %p392 = scmp.eq.s32.totalorder %s43, 1
      %p393 = por %p391, %p392
      %p395 = scmp.ne.s32.totalorder %s380, %s394
      %p396 = scmp.eq.s32.totalorder %s43, 0
      %p397 = por %p395, %p396
      %s399 = sadd.s32 %s398, 1
      %p402 = scmp.eq.s32.totalorder %s37, 1
      %p403 = scmp.ne.s32.totalorder %s398, %s400
      %p404 = scmp.eq.s32.totalorder %s37, 0
      %p405 = por %p403, %p404
      %p406 = scmp.ne.s32.totalorder %s398, %s400
      %p407 = scmp.eq.s32.totalorder %s42, 1
      %p408 = por %p406, %p407
      %p409 = scmp.ne.s32.totalorder %s400, %s401
      %p410 = scmp.eq.s32.totalorder %s42, 0
      %p411 = por %p409, %p410
      %p412 = scmp.ne.s32.totalorder %s400, %s401
      %p413 = scmp.eq.s32.totalorder %s43, 1
      %p414 = por %p412, %p413
      %p416 = scmp.ne.s32.totalorder %s401, %s415
      %p417 = scmp.eq.s32.totalorder %s43, 0
      %p418 = por %p416, %p417
      %s419 = ssub.s32 %s44, %s56
      %s420 = ssub.s32 %s45, %s52
      %s421 = sor.u32 %s419, %s420
      %p422 = scmp.eq.s32.totalorder %s421, 0
      %s424 = sadd.s32 %s423, 1
      %s425 = scalar_select %p422, %s423, %s424
      %p428 = pneg %p422
      %p429 = scmp.eq.s32.totalorder %s37, 1
      %p430 = por %p428, %p429
      %p431 = scmp.ne.s32.totalorder %s423, %s426
      %p432 = scmp.eq.s32.totalorder %s37, 0
      %p433 = por %p431, %p432
      %p434 = scmp.ne.s32.totalorder %s423, %s426
      %p435 = scmp.eq.s32.totalorder %s42, 1
      %p436 = por %p434, %p435
      %p437 = scmp.ne.s32.totalorder %s426, %s427
      %p438 = scmp.eq.s32.totalorder %s42, 0
      %p439 = por %p437, %p438
      %p440 = scmp.ne.s32.totalorder %s426, %s427
      %p441 = scmp.eq.s32.totalorder %s43, 1
      %p442 = por %p440, %p441
      %p444 = scmp.ne.s32.totalorder %s427, %s443
      %p445 = scmp.eq.s32.totalorder %s43, 0
      %p446 = por %p444, %p445
      %p447 = scmp.le.s32.totalorder 1, %s37
      %p448 = scmp.lt.s32.totalorder %s37, 3
      %p449 = pnand %p447, %p448
      %p450 = pneg %p449
      // Predicated region
      $region9: #{tpu_custom_call.1} parent=5 // pred_check
        _
      $region10: #{tpu_custom_call.1} parent=5 // pred_check_branch
        %452 = sbr.rel (%p449) target = $region12
      $region11: #{tpu_custom_call.1} parent=5 // pred_region
        %s453 = ssub.s32 %s37, 1
        // Predicated region
        $region13: #{tpu_custom_call.1} parent=11 // pred_check
          %p454 = pneg %p96
        $region14: #{tpu_custom_call.1} parent=11 // pred_check_branch
          %456 = sbr.rel (%p454) target = $region16
        $region15: #{tpu_custom_call.1} parent=11 // pred_region
          %s458 = ssub.s32 16, 16
          %459 = vsyncadd [#allocation9], %s458
          %s461 = sshll.u32 [#allocation8], 4
          %s462 = int_to_ptr.vmem [resolvable:$true] %s461
          %464 = dma.hbm_to_vmem [thread:$0]  %s1, 16, %s462, [#allocation9]
        $region16: #{tpu_custom_call.1} parent=11 // pred_fallthru
          _
        // Predicated region
        $region17: #{tpu_custom_call.1} parent=11 // pred_check
          %p465 = pneg %p117
        $region18: #{tpu_custom_call.1} parent=11 // pred_check_branch
          %467 = sbr.rel (%p465) target = $region20
        $region19: #{tpu_custom_call.1} parent=11 // pred_region
          %s469 = ssub.s32 16, 16
          %470 = vsyncadd [#allocation9], %s469
          %s472 = sshll.u32 [#allocation10], 4
          %s473 = int_to_ptr.vmem [resolvable:$true] %s472
          %475 = dma.hbm_to_vmem [thread:$0]  %s2, 16, %s473, [#allocation9]
        $region20: #{tpu_custom_call.1} parent=11 // pred_fallthru
          _
        // Predicated region
        $region21: #{tpu_custom_call.1} parent=11 // pred_check
          %p476 = pneg %p138
        $region22: #{tpu_custom_call.1} parent=11 // pred_check_branch
          %478 = sbr.rel (%p476) target = $region24
        $region23: #{tpu_custom_call.1} parent=11 // pred_region
          %s480 = ssub.s32 256, 256
          %481 = vsyncadd [#allocation12], %s480
          %s482 = sshll.u32 [#allocation11], 4
          %s483 = int_to_ptr.vmem [resolvable:$true] %s482
          %488 = dma.hbm_to_vmem [thread:$0]  %s3, 256, %s483, [#allocation12], 64, 64, 4
        $region24: #{tpu_custom_call.1} parent=11 // pred_fallthru
          _
        // Predicated region
        $region25: #{tpu_custom_call.1} parent=11 // pred_check
          %p489 = pneg %p159
        $region26: #{tpu_custom_call.1} parent=11 // pred_check_branch
          %491 = sbr.rel (%p489) target = $region28
        $region27: #{tpu_custom_call.1} parent=11 // pred_region
          %s493 = ssub.s32 16, 16
          %494 = vsyncadd [#allocation12], %s493
          %s496 = sshll.u32 [#allocation13], 4
          %s497 = int_to_ptr.vmem [resolvable:$true] %s496
          %499 = dma.hbm_to_vmem [thread:$0]  %s4, 16, %s497, [#allocation12]
        $region28: #{tpu_custom_call.1} parent=11 // pred_fallthru
          _
        // Predicated region
        $region29: #{tpu_custom_call.1} parent=11 // pred_check
          %p500 = pneg %p180
        $region30: #{tpu_custom_call.1} parent=11 // pred_check_branch
          %502 = sbr.rel (%p500) target = $region32
        $region31: #{tpu_custom_call.1} parent=11 // pred_region
          %s504 = ssub.s32 256, 256
          %505 = vsyncadd [#allocation15], %s504
          %s506 = sshll.u32 [#allocation14], 4
          %s507 = int_to_ptr.vmem [resolvable:$true] %s506
          %512 = dma.hbm_to_vmem [thread:$0]  %s5, 256, %s507, [#allocation15], 64, 64, 4
        $region32: #{tpu_custom_call.1} parent=11 // pred_fallthru
          _
        // Predicated region
        $region33: #{tpu_custom_call.1} parent=11 // pred_check
          %p513 = pneg %p201
        $region34: #{tpu_custom_call.1} parent=11 // pred_check_branch
          %515 = sbr.rel (%p513) target = $region36
        $region35: #{tpu_custom_call.1} parent=11 // pred_region
          %s517 = ssub.s32 16, 16
          %518 = vsyncadd [#allocation15], %s517
          %s520 = sshll.u32 [#allocation16], 4
          %s521 = int_to_ptr.vmem [resolvable:$true] %s520
          %523 = dma.hbm_to_vmem [thread:$0]  %s6, 16, %s521, [#allocation15]
        $region36: #{tpu_custom_call.1} parent=11 // pred_fallthru
          _
        // Predicated region
        $region37: #{tpu_custom_call.1} parent=11 // pred_check
          %p524 = pneg %p222
        $region38: #{tpu_custom_call.1} parent=11 // pred_check_branch
          %526 = sbr.rel (%p524) target = $region40
        $region39: #{tpu_custom_call.1} parent=11 // pred_region
          %s528 = ssub.s32 256, 256
          %529 = vsyncadd [#allocation18], %s528
          %s530 = sshll.u32 [#allocation17], 4
          %s531 = int_to_ptr.vmem [resolvable:$true] %s530
          %536 = dma.hbm_to_vmem [thread:$0]  %s7, 256, %s531, [#allocation18], 64, 64, 4
        $region40: #{tpu_custom_call.1} parent=11 // pred_fallthru
          _
        // Predicated region
        $region41: #{tpu_custom_call.1} parent=11 // pred_check
          %p537 = pneg %p243
        $region42: #{tpu_custom_call.1} parent=11 // pred_check_branch
          %539 = sbr.rel (%p537) target = $region44
        $region43: #{tpu_custom_call.1} parent=11 // pred_region
          %s541 = ssub.s32 16, 16
          %542 = vsyncadd [#allocation18], %s541
          %s544 = sshll.u32 [#allocation19], 4
          %s545 = int_to_ptr.vmem [resolvable:$true] %s544
          %547 = dma.hbm_to_vmem [thread:$0]  %s8, 16, %s545, [#allocation18]
        $region44: #{tpu_custom_call.1} parent=11 // pred_fallthru
          _
        // Predicated region
        $region45: #{tpu_custom_call.1} parent=11 // pred_check
          %p548 = pneg %p264
        $region46: #{tpu_custom_call.1} parent=11 // pred_check_branch
          %550 = sbr.rel (%p548) target = $region48
        $region47: #{tpu_custom_call.1} parent=11 // pred_region
          %s552 = ssub.s32 256, 256
          %553 = vsyncadd [#allocation21], %s552
          %s554 = sshll.u32 [#allocation20], 4
          %s555 = int_to_ptr.vmem [resolvable:$true] %s554
          %560 = dma.hbm_to_vmem [thread:$0]  %s9, 256, %s555, [#allocation21], 64, 64, 4
        $region48: #{tpu_custom_call.1} parent=11 // pred_fallthru
          _
        // Predicated region
        $region49: #{tpu_custom_call.1} parent=11 // pred_check
          %p561 = pneg %p285
        $region50: #{tpu_custom_call.1} parent=11 // pred_check_branch
          %563 = sbr.rel (%p561) target = $region52
        $region51: #{tpu_custom_call.1} parent=11 // pred_region
          %s565 = ssub.s32 16, 16
          %566 = vsyncadd [#allocation21], %s565
          %s568 = sshll.u32 [#allocation22], 4
          %s569 = int_to_ptr.vmem [resolvable:$true] %s568
          %571 = dma.hbm_to_vmem [thread:$0]  %s10, 16, %s569, [#allocation21]
        $region52: #{tpu_custom_call.1} parent=11 // pred_fallthru
          _
        // Predicated region
        $region53: #{tpu_custom_call.1} parent=11 // pred_check
          %p572 = pneg %p306
        $region54: #{tpu_custom_call.1} parent=11 // pred_check_branch
          %574 = sbr.rel (%p572) target = $region56
        $region55: #{tpu_custom_call.1} parent=11 // pred_region
          %s576 = ssub.s32 16, 16
          %577 = vsyncadd [#allocation24], %s576
          %s579 = sshll.u32 [#allocation23], 4
          %s580 = int_to_ptr.vmem [resolvable:$true] %s579
          %582 = dma.hbm_to_vmem [thread:$0]  %s11, 16, %s580, [#allocation24]
        $region56: #{tpu_custom_call.1} parent=11 // pred_fallthru
          _
        // Predicated region
        $region57: #{tpu_custom_call.1} parent=11 // pred_check
          %p583 = pneg %p327
        $region58: #{tpu_custom_call.1} parent=11 // pred_check_branch
          %585 = sbr.rel (%p583) target = $region60
        $region59: #{tpu_custom_call.1} parent=11 // pred_region
          %s587 = ssub.s32 16, 16
          %588 = vsyncadd [#allocation24], %s587
          %s590 = sshll.u32 [#allocation25], 4
          %s591 = int_to_ptr.vmem [resolvable:$true] %s590
          %593 = dma.hbm_to_vmem [thread:$0]  %s12, 16, %s591, [#allocation24]
        $region60: #{tpu_custom_call.1} parent=11 // pred_fallthru
          _
        // Predicated region
        $region61: #{tpu_custom_call.1} parent=11 // pred_check
          %p594 = pneg %p348
        $region62: #{tpu_custom_call.1} parent=11 // pred_check_branch
          %596 = sbr.rel (%p594) target = $region64
        $region63: #{tpu_custom_call.1} parent=11 // pred_region
          %s598 = ssub.s32 256, 256
          %599 = vsyncadd [#allocation27], %s598
          %s600 = sshll.u32 [#allocation26], 4
          %s601 = int_to_ptr.vmem [resolvable:$true] %s600
          %606 = dma.hbm_to_vmem [thread:$0]  %s13, 256, %s601, [#allocation27], 64, 64, 4
        $region64: #{tpu_custom_call.1} parent=11 // pred_fallthru
          _
        // Predicated region
        $region65: #{tpu_custom_call.1} parent=11 // pred_check
          %p607 = pneg %p369
        $region66: #{tpu_custom_call.1} parent=11 // pred_check_branch
          %609 = sbr.rel (%p607) target = $region68
        $region67: #{tpu_custom_call.1} parent=11 // pred_region
          %s611 = ssub.s32 16, 16
          %612 = vsyncadd [#allocation27], %s611
          %s614 = sshll.u32 [#allocation28], 4
          %s615 = int_to_ptr.vmem [resolvable:$true] %s614
          %617 = dma.hbm_to_vmem [thread:$0]  %s14, 16, %s615, [#allocation27]
        $region68: #{tpu_custom_call.1} parent=11 // pred_fallthru
          _
        // Predicated region
        $region69: #{tpu_custom_call.1} parent=11 // pred_check
          %p618 = pneg %p390
        $region70: #{tpu_custom_call.1} parent=11 // pred_check_branch
          %620 = sbr.rel (%p618) target = $region72
        $region71: #{tpu_custom_call.1} parent=11 // pred_region
          %s622 = ssub.s32 1024, 1024
          %623 = vsyncadd [#allocation30], %s622
          %s624 = sshll.u32 [#allocation29], 4
          %s625 = int_to_ptr.vmem [resolvable:$true] %s624
          %630 = dma.hbm_to_vmem [thread:$0]  %s15, 1024, %s625, [#allocation30], 64, 64, 4
        $region72: #{tpu_custom_call.1} parent=11 // pred_fallthru
          _
        // Predicated region
        $region73: #{tpu_custom_call.1} parent=11 // pred_check
          %p631 = pneg %p411
        $region74: #{tpu_custom_call.1} parent=11 // pred_check_branch
          %633 = sbr.rel (%p631) target = $region76
        $region75: #{tpu_custom_call.1} parent=11 // pred_region
          %s635 = ssub.s32 16, 16
          %636 = vsyncadd [#allocation30], %s635
          %s638 = sshll.u32 [#allocation31], 4
          %s639 = int_to_ptr.vmem [resolvable:$true] %s638
          %641 = dma.hbm_to_vmem [thread:$0]  %s16, 16, %s639, [#allocation30]
        $region76: #{tpu_custom_call.1} parent=11 // pred_fallthru
          _
      $region12: #{tpu_custom_call.1} parent=5 // pred_fallthru
        _
      %p642 = scmp.lt.s32.totalorder %s37, 2
      // Predicated region
      $region77: #{tpu_custom_call.1} parent=5 // pred_check
        %p643 = pneg %p642
      $region78: #{tpu_custom_call.1} parent=5 // pred_check_branch
        %645 = sbr.rel (%p643) target = $region80
      $region79: #{tpu_custom_call.1} parent=5 // pred_region
        // Predicated region
        $region81: #{tpu_custom_call.1} parent=79 // pred_check
          %p646 = pneg %p69
        $region82: #{tpu_custom_call.1} parent=79 // pred_check_branch
          %648 = sbr.rel (%p646) target = $region84
        $region83: #{tpu_custom_call.1} parent=79 // pred_region
          %s649 = sand.u32 %s59, 1
          %s650 = scalar_lea.sflag [#allocation6], %s649
          %s651 = sand.u32 %s59, 1
          %s652 = smul.addr %s651, 4
          %s653 = scalar_lea.vmem [#allocation5], %s652
          %s655 = ssub.s32 64, 64
          %656 = vsyncadd %s650, %s655
          %s657 = smul.addr %s44, 64
          %s658 = scalar_lea.hbm %s0, %s657
          %s660 = sshll.u32 %s653, 4
          %s661 = int_to_ptr.vmem [resolvable:$true] %s660
          %663 = dma.hbm_to_vmem [thread:$0]  %s658, 64, %s661, %s650
        $region84: #{tpu_custom_call.1} parent=79 // pred_fallthru
          _
      $region80: #{tpu_custom_call.1} parent=5 // pred_fallthru
        _
      %p664 = scmp.le.s32.totalorder 1, %s37
      %p665 = scmp.lt.s32.totalorder %s37, 3
      %p666 = pnand %p664, %p665
      %p667 = pneg %p666
      // Predicated region
      $region85: #{tpu_custom_call.1} parent=5 // pred_check
        _
      $region86: #{tpu_custom_call.1} parent=5 // pred_check_branch
        %669 = sbr.rel (%p666) target = $region88
      $region87: #{tpu_custom_call.1} parent=5 // pred_region
        %s670 = ssub.s32 %s37, 1
        %s671 = sand.u32 %s62, 1
        %s672 = scalar_lea.sflag [#allocation6], %s671
        %s673 = sand.u32 %s62, 1
        %s674 = smul.addr %s673, 4
        %s675 = scalar_lea.vmem [#allocation5], %s674
        // Predicated region
        $region89: #{tpu_custom_call.1} parent=87 // pred_check
          %p676 = pneg %p75
        $region90: #{tpu_custom_call.1} parent=87 // pred_check_branch
          %678 = sbr.rel (%p676) target = $region92
        $region91: #{tpu_custom_call.1} parent=87 // pred_region
          %679 = dma.done %s672, 64
        $region92: #{tpu_custom_call.1} parent=87 // pred_fallthru
          _
        // Predicated region
        $region93: #{tpu_custom_call.1} parent=87 // pred_check
          %p680 = pneg %p96
        $region94: #{tpu_custom_call.1} parent=87 // pred_check_branch
          %682 = sbr.rel (%p680) target = $region96
        $region95: #{tpu_custom_call.1} parent=87 // pred_region
          %683 = dma.done [#allocation9], 16
        $region96: #{tpu_custom_call.1} parent=87 // pred_fallthru
          _
        // Predicated region
        $region97: #{tpu_custom_call.1} parent=87 // pred_check
          %p684 = pneg %p117
        $region98: #{tpu_custom_call.1} parent=87 // pred_check_branch
          %686 = sbr.rel (%p684) target = $region100
        $region99: #{tpu_custom_call.1} parent=87 // pred_region
          %687 = dma.done [#allocation9], 16
        $region100: #{tpu_custom_call.1} parent=87 // pred_fallthru
          _
        // Predicated region
        $region101: #{tpu_custom_call.1} parent=87 // pred_check
          %p688 = pneg %p138
        $region102: #{tpu_custom_call.1} parent=87 // pred_check_branch
          %690 = sbr.rel (%p688) target = $region104
        $region103: #{tpu_custom_call.1} parent=87 // pred_region
          %691 = dma.done [#allocation12], 256
        $region104: #{tpu_custom_call.1} parent=87 // pred_fallthru
          _
        // Predicated region
        $region105: #{tpu_custom_call.1} parent=87 // pred_check
          %p692 = pneg %p159
        $region106: #{tpu_custom_call.1} parent=87 // pred_check_branch
          %694 = sbr.rel (%p692) target = $region108
        $region107: #{tpu_custom_call.1} parent=87 // pred_region
          %695 = dma.done [#allocation12], 16
        $region108: #{tpu_custom_call.1} parent=87 // pred_fallthru
          _
        // Predicated region
        $region109: #{tpu_custom_call.1} parent=87 // pred_check
          %p696 = pneg %p180
        $region110: #{tpu_custom_call.1} parent=87 // pred_check_branch
          %698 = sbr.rel (%p696) target = $region112
        $region111: #{tpu_custom_call.1} parent=87 // pred_region
          %699 = dma.done [#allocation15], 256
        $region112: #{tpu_custom_call.1} parent=87 // pred_fallthru
          _
        // Predicated region
        $region113: #{tpu_custom_call.1} parent=87 // pred_check
          %p700 = pneg %p201
        $region114: #{tpu_custom_call.1} parent=87 // pred_check_branch
          %702 = sbr.rel (%p700) target = $region116
        $region115: #{tpu_custom_call.1} parent=87 // pred_region
          %703 = dma.done [#allocation15], 16
        $region116: #{tpu_custom_call.1} parent=87 // pred_fallthru
          _
        // Predicated region
        $region117: #{tpu_custom_call.1} parent=87 // pred_check
          %p704 = pneg %p222
        $region118: #{tpu_custom_call.1} parent=87 // pred_check_branch
          %706 = sbr.rel (%p704) target = $region120
        $region119: #{tpu_custom_call.1} parent=87 // pred_region
          %707 = dma.done [#allocation18], 256
        $region120: #{tpu_custom_call.1} parent=87 // pred_fallthru
          _
        // Predicated region
        $region121: #{tpu_custom_call.1} parent=87 // pred_check
          %p708 = pneg %p243
        $region122: #{tpu_custom_call.1} parent=87 // pred_check_branch
          %710 = sbr.rel (%p708) target = $region124
        $region123: #{tpu_custom_call.1} parent=87 // pred_region
          %711 = dma.done [#allocation18], 16
        $region124: #{tpu_custom_call.1} parent=87 // pred_fallthru
          _
        // Predicated region
        $region125: #{tpu_custom_call.1} parent=87 // pred_check
          %p712 = pneg %p264
        $region126: #{tpu_custom_call.1} parent=87 // pred_check_branch
          %714 = sbr.rel (%p712) target = $region128
        $region127: #{tpu_custom_call.1} parent=87 // pred_region
          %715 = dma.done [#allocation21], 256
        $region128: #{tpu_custom_call.1} parent=87 // pred_fallthru
          _
        // Predicated region
        $region129: #{tpu_custom_call.1} parent=87 // pred_check
          %p716 = pneg %p285
        $region130: #{tpu_custom_call.1} parent=87 // pred_check_branch
          %718 = sbr.rel (%p716) target = $region132
        $region131: #{tpu_custom_call.1} parent=87 // pred_region
          %719 = dma.done [#allocation21], 16
        $region132: #{tpu_custom_call.1} parent=87 // pred_fallthru
          _
        // Predicated region
        $region133: #{tpu_custom_call.1} parent=87 // pred_check
          %p720 = pneg %p306
        $region134: #{tpu_custom_call.1} parent=87 // pred_check_branch
          %722 = sbr.rel (%p720) target = $region136
        $region135: #{tpu_custom_call.1} parent=87 // pred_region
          %723 = dma.done [#allocation24], 16
        $region136: #{tpu_custom_call.1} parent=87 // pred_fallthru
          _
        // Predicated region
        $region137: #{tpu_custom_call.1} parent=87 // pred_check
          %p724 = pneg %p327
        $region138: #{tpu_custom_call.1} parent=87 // pred_check_branch
          %726 = sbr.rel (%p724) target = $region140
        $region139: #{tpu_custom_call.1} parent=87 // pred_region
          %727 = dma.done [#allocation24], 16
        $region140: #{tpu_custom_call.1} parent=87 // pred_fallthru
          _
        // Predicated region
        $region141: #{tpu_custom_call.1} parent=87 // pred_check
          %p728 = pneg %p348
        $region142: #{tpu_custom_call.1} parent=87 // pred_check_branch
          %730 = sbr.rel (%p728) target = $region144
        $region143: #{tpu_custom_call.1} parent=87 // pred_region
          %731 = dma.done [#allocation27], 256
        $region144: #{tpu_custom_call.1} parent=87 // pred_fallthru
          _
        // Predicated region
        $region145: #{tpu_custom_call.1} parent=87 // pred_check
          %p732 = pneg %p369
        $region146: #{tpu_custom_call.1} parent=87 // pred_check_branch
          %734 = sbr.rel (%p732) target = $region148
        $region147: #{tpu_custom_call.1} parent=87 // pred_region
          %735 = dma.done [#allocation27], 16
        $region148: #{tpu_custom_call.1} parent=87 // pred_fallthru
          _
        // Predicated region
        $region149: #{tpu_custom_call.1} parent=87 // pred_check
          %p736 = pneg %p390
        $region150: #{tpu_custom_call.1} parent=87 // pred_check_branch
          %738 = sbr.rel (%p736) target = $region152
        $region151: #{tpu_custom_call.1} parent=87 // pred_region
          %739 = dma.done [#allocation30], 1024
        $region152: #{tpu_custom_call.1} parent=87 // pred_fallthru
          _
        // Predicated region
        $region153: #{tpu_custom_call.1} parent=87 // pred_check
          %p740 = pneg %p411
        $region154: #{tpu_custom_call.1} parent=87 // pred_check_branch
          %742 = sbr.rel (%p740) target = $region156
        $region155: #{tpu_custom_call.1} parent=87 // pred_region
          %743 = dma.done [#allocation30], 16
        $region156: #{tpu_custom_call.1} parent=87 // pred_fallthru
          _
        %s744 = sand.u32 %s62, 1
        %s745 = scalar_lea.sflag [#allocation6], %s744
        %s746 = sand.u32 %s62, 1
        %s747 = smul.addr %s746, 4
        %s748 = scalar_lea.vmem [#allocation5], %s747
        %p749 = pneg %p75
        %p750 = pneg %p72
        %p751 = pneg %p96
        %p752 = pneg %p93
        %p753 = pneg %p117
        %p754 = pneg %p114
        %p755 = pneg %p138
        %p756 = pneg %p135
        %p757 = pneg %p159
        %p758 = pneg %p156
        %p759 = pneg %p180
        %p760 = pneg %p177
        %p761 = pneg %p201
        %p762 = pneg %p198
        %p763 = pneg %p222
        %p764 = pneg %p219
        %p765 = pneg %p243
        %p766 = pneg %p240
        %p767 = pneg %p264
        %p768 = pneg %p261
        %p769 = pneg %p285
        %p770 = pneg %p282
        %p771 = pneg %p306
        %p772 = pneg %p303
        %p773 = pneg %p327
        %p774 = pneg %p324
        %p775 = pneg %p348
        %p776 = pneg %p345
        %p777 = pneg %p369
        %p778 = pneg %p366
        %p779 = pneg %p390
        %p780 = pneg %p387
        %p781 = pneg %p411
        %p782 = pneg %p408
        %p783 = pneg %p439
        %p784 = pneg %p436
        %s785 = sand.u32 %s426, 1
        %s786 = scalar_lea.sflag [#allocation7], %s785
        %s787 = sand.u32 %s426, 1
        %s788 = smul.addr %s787, 8
        %s789 = scalar_lea.vmem [#allocation32], %s788
        %p791 = scmp.eq.s32.totalorder %s47, 0
        // Predicated region
        $region157: #{tpu_custom_call.1} parent=87 // pred_check
          %p792 = pneg %p791
        $region158: #{tpu_custom_call.1} parent=87 // pred_check_branch
          %794 = sbr.rel (%p792) target = $region160
        $region159: #{tpu_custom_call.1} parent=87 // pred_region
          %v795 = vld [vmem:[%s675] sm:$0xf]
          %v796 = vunpack.c.l.bf16 %v795
          %v797 = vld [vmem:[#allocation8] sm:$0x1]
          %v798 = vld [vmem:[#allocation10] sm:$0x1]
          %vm799 = vcmask 261120
          %v800 = vsel %vm799, %v796, 0.0
          %801 = vadd.xlane.f32.xlu0 %v800
          %v802 = vpop.xlane.xlu0 %801
          %v803 = vrcp.pop 32.0
          %v804 = vmul.f32 %v802, %v803
          %v805 = vsub.f32 %v796, %v804
          %v806 = vmul.f32 %v805, %v805
          %v807 = vsel %vm799, %v806, 0.0
          %808 = vadd.xlane.f32.xlu0 %v807
          %v809 = vpop.xlane.xlu0 %808
          %v810 = vmul.f32 %v809, %v803
          %v811 = vadd.f32 %v810, 1e-06
          %v812 = vrsqrt.pop %v811
          %v813 = vmul.f32 %v805, %v812
          %v815 = vlaneseq
          %v816 = vshrl.u32 %v815, 7
          %v817 = vsub.s32 0, %v816
          %v818 = vrot.slane %v797, %v817
          %v820 = vmul.f32 %v813, %v818
          %v822 = vlaneseq
          %v823 = vshrl.u32 %v822, 7
          %v824 = vsub.s32 0, %v823
          %v825 = vrot.slane %v798, %v824
          %v827 = vadd.f32 %v820, %v825
          %v828 = vpack.c.bf16 %v827, %v827
          %v829 = vld [vmem:[#allocation14] sm:$0xf]
          %v830 = vld [vmem:[#allocation14 + $0x4] sm:$0xf]
          %v831 = vld [vmem:[#allocation14 + $0x8] sm:$0xf]
          %v832 = vld [vmem:[#allocation14 + $0xc] sm:$0xf]
          %v833 = vld [vmem:[#allocation16] sm:$0x1]
          %v835 = vlaneseq
          %v836 = vshrl.u32 %v835, 7
          %v837 = vsub.s32 0, %v836
          %v838 = vrot.slane %v833, %v837
          %v844 = vunpack.c.l.b16 %v829
          %v845 = vunpack.c.l.b16 %v830
          %v846 = vunpack.c.l.b16 %v831
          %v847 = vunpack.c.l.b16 %v832
          %v848 = vpack.c.b16 %v845, %v844
          %v849 = vpack.c.b16 %v847, %v846
          %v853 = vsel %vm799, %v828, 0
          %855 = vmatprep.subr.bf16.mxu0 0
          %856 = vmatpush1.bf16.msra.mxu0 %v848
          %857 = vmatprep.subr.bf16.mxu0 0
          %858 = vmatpush1.bf16.msra.mxu0 %v849
          %859 = vmatprep.subr.bf16.mxu0 0
          %860 = vmatpush1.bf16.msra.mxu0 0
          %861 = vmatprep.subr.bf16.mxu0 0
          %862 = vmatpush1.bf16.msra.mxu0 0
          %863 = vmatprep.subr.bf16.mxu0 0
          %864 = vmatpush1.bf16.msra.mxu0 0
          %865 = vmatprep.subr.bf16.mxu0 0
          %866 = vmatpush1.bf16.msra.mxu0 0
          %867 = vmatprep.subr.bf16.mxu0 0
          %868 = vmatpush1.bf16.msra.mxu0 0
          %869 = vmatprep.subr.bf16.mxu0 0
          %870 = vmatpush1.bf16.msra.mxu0 0
          %871 = vmatprep.subr.bf16.mxu0 0
          %872 = vmatpush1.bf16.msra.mxu0 0
          %873 = vmatprep.subr.bf16.mxu0 0
          %874 = vmatpush1.bf16.msra.mxu0 0
          %875 = vmatprep.subr.bf16.mxu0 0
          %876 = vmatpush1.bf16.msra.mxu0 0
          %877 = vmatprep.subr.bf16.mxu0 0
          %878 = vmatpush1.bf16.msra.mxu0 0
          %879 = vmatprep.subr.bf16.mxu0 0
          %880 = vmatpush1.bf16.msra.mxu0 0
          %881 = vmatprep.subr.bf16.mxu0 0
          %882 = vmatpush1.bf16.msra.mxu0 0
          %883 = vmatprep.subr.bf16.mxu0 0
          %884 = vmatpush1.bf16.msra.mxu0 0
          %885 = vmatprep.subr.bf16.mxu0 0
          %886 = vmatpush1.bf16.msra.mxu0 0
          %887 = vmatprep.mubr.bf16.mxu0 0
          %888 = vmatmul.mubr.bf16.gmra.mrb[0].mxu0 %v853
          %v889 = vpop.f32.mrb[0].mxu0
          %v890 = vadd.f32 %v838, %v889
          %v891 = vpop.f32.mrb[0].mxu0
          %v892 = vpop.f32.mrb[0].mxu0
          %v893 = vpop.f32.mrb[0].mxu0
          %894 = vdwg.mxu0
          %v895 = vld [vmem:[#allocation17] sm:$0xf]
          %v896 = vld [vmem:[#allocation17 + $0x4] sm:$0xf]
          %v897 = vld [vmem:[#allocation17 + $0x8] sm:$0xf]
          %v898 = vld [vmem:[#allocation17 + $0xc] sm:$0xf]
          %v899 = vld [vmem:[#allocation19] sm:$0x1]
          %v901 = vlaneseq
          %v902 = vshrl.u32 %v901, 7
          %v903 = vsub.s32 0, %v902
          %v904 = vrot.slane %v899, %v903
          %v910 = vunpack.c.l.b16 %v895
          %v911 = vunpack.c.l.b16 %v896
          %v912 = vunpack.c.l.b16 %v897
          %v913 = vunpack.c.l.b16 %v898
          %v914 = vpack.c.b16 %v911, %v910
          %v915 = vpack.c.b16 %v913, %v912
          %918 = vmatprep.subr.bf16.mxu0 0
          %919 = vmatpush1.bf16.msra.mxu0 %v914
          %920 = vmatprep.subr.bf16.mxu0 0
          %921 = vmatpush1.bf16.msra.mxu0 %v915
          %922 = vmatprep.subr.bf16.mxu0 0
          %923 = vmatpush1.bf16.msra.mxu0 0
          %924 = vmatprep.subr.bf16.mxu0 0
          %925 = vmatpush1.bf16.msra.mxu0 0
          %926 = vmatprep.subr.bf16.mxu0 0
          %927 = vmatpush1.bf16.msra.mxu0 0
          %928 = vmatprep.subr.bf16.mxu0 0
          %929 = vmatpush1.bf16.msra.mxu0 0
          %930 = vmatprep.subr.bf16.mxu0 0
          %931 = vmatpush1.bf16.msra.mxu0 0
          %932 = vmatprep.subr.bf16.mxu0 0
          %933 = vmatpush1.bf16.msra.mxu0 0
          %934 = vmatprep.subr.bf16.mxu0 0
          %935 = vmatpush1.bf16.msra.mxu0 0
          %936 = vmatprep.subr.bf16.mxu0 0
          %937 = vmatpush1.bf16.msra.mxu0 0
          %938 = vmatprep.subr.bf16.mxu0 0
          %939 = vmatpush1.bf16.msra.mxu0 0
          %940 = vmatprep.subr.bf16.mxu0 0
          %941 = vmatpush1.bf16.msra.mxu0 0
          %942 = vmatprep.subr.bf16.mxu0 0
          %943 = vmatpush1.bf16.msra.mxu0 0
          %944 = vmatprep.subr.bf16.mxu0 0
          %945 = vmatpush1.bf16.msra.mxu0 0
          %946 = vmatprep.subr.bf16.mxu0 0
          %947 = vmatpush1.bf16.msra.mxu0 0
          %948 = vmatprep.subr.bf16.mxu0 0
          %949 = vmatpush1.bf16.msra.mxu0 0
          %950 = vmatprep.mubr.bf16.mxu0 0
          %951 = vmatmul.mubr.bf16.gmra.mrb[0].mxu0 %v853
          %v952 = vpop.f32.mrb[0].mxu0
          %v953 = vadd.f32 %v904, %v952
          %v954 = vpop.f32.mrb[0].mxu0
          %v955 = vpop.f32.mrb[0].mxu0
          %v956 = vpop.f32.mrb[0].mxu0
          %957 = vdwg.mxu0
          %v958 = vpack.c.bf16 %v890, %v890
          %vm959 = vcmask 257024
          %960 = vst.msk [vmem:[#allocation2] sm:$0xf] %vm959, %v958
          %v961 = vpack.c.bf16 %v953, %v953
          %962 = vst.msk [vmem:[#allocation3] sm:$0xf] %vm959, %v961
        $region160: #{tpu_custom_call.1} parent=87 // pred_fallthru
          _
        %s963 = smul.u32 %s47, 8
        %s964 = sshra.s32 %s963, 3
        %s965 = sand.u32 %s963, 7
        %s966 = smul.addr %s964, 4
        %s967 = scalar_lea.vmem %s675, %s966 [#allocation5]
        %v968 = vld [vmem:[%s967] sm:$0xf]
        %v969 = vunpack.c.l.bf16 %v968
        %v970 = vld [vmem:[#allocation8] sm:$0x1]
        %v971 = vld [vmem:[#allocation10] sm:$0x1]
        %vm972 = vcmask 261120
        %v973 = vsel %vm972, %v969, 0.0
        %974 = vadd.xlane.f32.xlu0 %v973
        %v975 = vpop.xlane.xlu0 %974
        %v976 = vrcp.pop 32.0
        %v977 = vmul.f32 %v975, %v976
        %v978 = vsub.f32 %v969, %v977
        %v979 = vmul.f32 %v978, %v978
        %v980 = vsel %vm972, %v979, 0.0
        %981 = vadd.xlane.f32.xlu0 %v980
        %v982 = vpop.xlane.xlu0 %981
        %v983 = vmul.f32 %v982, %v976
        %v984 = vadd.f32 %v983, 1e-06
        %v985 = vrsqrt.pop %v984
        %v986 = vmul.f32 %v978, %v985
        %v988 = vlaneseq
        %v989 = vshrl.u32 %v988, 7
        %v990 = vsub.s32 0, %v989
        %v991 = vrot.slane %v970, %v990
        %v993 = vmul.f32 %v986, %v991
        %v995 = vlaneseq
        %v996 = vshrl.u32 %v995, 7
        %v997 = vsub.s32 0, %v996
        %v998 = vrot.slane %v971, %v997
        %v1000 = vadd.f32 %v993, %v998
        %v1001 = vpack.c.bf16 %v1000, %v1000
        %v1002 = vld [vmem:[#allocation11] sm:$0xf]
        %v1003 = vld [vmem:[#allocation11 + $0x4] sm:$0xf]
        %v1004 = vld [vmem:[#allocation11 + $0x8] sm:$0xf]
        %v1005 = vld [vmem:[#allocation11 + $0xc] sm:$0xf]
        %v1006 = vld [vmem:[#allocation13] sm:$0x1]
        %v1008 = vlaneseq
        %v1009 = vshrl.u32 %v1008, 7
        %v1010 = vsub.s32 0, %v1009
        %v1011 = vrot.slane %v1006, %v1010
        %v1017 = vunpack.c.l.b16 %v1002
        %v1018 = vunpack.c.l.b16 %v1003
        %v1019 = vunpack.c.l.b16 %v1004
        %v1020 = vunpack.c.l.b16 %v1005
        %v1021 = vpack.c.b16 %v1018, %v1017
        %v1022 = vpack.c.b16 %v1020, %v1019
        %v1026 = vsel %vm972, %v1001, 0
        %1028 = vmatprep.subr.bf16.mxu0 0
        %1029 = vmatpush1.bf16.msra.mxu0 %v1021
        %1030 = vmatprep.subr.bf16.mxu0 0
        %1031 = vmatpush1.bf16.msra.mxu0 %v1022
        %1032 = vmatprep.subr.bf16.mxu0 0
        %1033 = vmatpush1.bf16.msra.mxu0 0
        %1034 = vmatprep.subr.bf16.mxu0 0
        %1035 = vmatpush1.bf16.msra.mxu0 0
        %1036 = vmatprep.subr.bf16.mxu0 0
        %1037 = vmatpush1.bf16.msra.mxu0 0
        %1038 = vmatprep.subr.bf16.mxu0 0
        %1039 = vmatpush1.bf16.msra.mxu0 0
        %1040 = vmatprep.subr.bf16.mxu0 0
        %1041 = vmatpush1.bf16.msra.mxu0 0
        %1042 = vmatprep.subr.bf16.mxu0 0
        %1043 = vmatpush1.bf16.msra.mxu0 0
        %1044 = vmatprep.subr.bf16.mxu0 0
        %1045 = vmatpush1.bf16.msra.mxu0 0
        %1046 = vmatprep.subr.bf16.mxu0 0
        %1047 = vmatpush1.bf16.msra.mxu0 0
        %1048 = vmatprep.subr.bf16.mxu0 0
        %1049 = vmatpush1.bf16.msra.mxu0 0
        %1050 = vmatprep.subr.bf16.mxu0 0
        %1051 = vmatpush1.bf16.msra.mxu0 0
        %1052 = vmatprep.subr.bf16.mxu0 0
        %1053 = vmatpush1.bf16.msra.mxu0 0
        %1054 = vmatprep.subr.bf16.mxu0 0
        %1055 = vmatpush1.bf16.msra.mxu0 0
        %1056 = vmatprep.subr.bf16.mxu0 0
        %1057 = vmatpush1.bf16.msra.mxu0 0
        %1058 = vmatprep.subr.bf16.mxu0 0
        %1059 = vmatpush1.bf16.msra.mxu0 0
        %1060 = vmatprep.mubr.bf16.mxu0 0
        %1061 = vmatmul.mubr.bf16.gmra.mrb[0].mxu0 %v1026
        %v1062 = vpop.f32.mrb[0].mxu0
        %v1063 = vadd.f32 %v1011, %v1062
        %v1064 = vpop.f32.mrb[0].mxu0
        %v1065 = vpop.f32.mrb[0].mxu0
        %v1066 = vpop.f32.mrb[0].mxu0
        %1067 = vdwg.mxu0
        %v1068 = vpack.c.bf16 %v1063, %v1063
        %v1069 = vld [vmem:[#allocation2] sm:$0xf]
        %vm1070 = vcmask 64512
        %v1072 = vsel %vm1070, %v1068, 0
        %v1075 = vsel %vm1070, %v1069, 0
        %1077 = vmatprep.subr.bf16.mxu0 0
        %1078 = vmatpush1.bf16.xpose.msra.mxu0 %v1075
        %1079 = vmatprep.subr.bf16.mxu0 0
        %1080 = vmatpush1.bf16.xpose.msra.mxu0 0
        %1081 = vmatprep.subr.bf16.mxu0 0
        %1082 = vmatpush1.bf16.xpose.msra.mxu0 0
        %1083 = vmatprep.subr.bf16.mxu0 0
        %1084 = vmatpush1.bf16.xpose.msra.mxu0 0
        %1085 = vmatprep.subr.bf16.mxu0 0
        %1086 = vmatpush1.bf16.xpose.msra.mxu0 0
        %1087 = vmatprep.subr.bf16.mxu0 0
        %1088 = vmatpush1.bf16.xpose.msra.mxu0 0
        %1089 = vmatprep.subr.bf16.mxu0 0
        %1090 = vmatpush1.bf16.xpose.msra.mxu0 0
        %1091 = vmatprep.subr.bf16.mxu0 0
        %1092 = vmatpush1.bf16.xpose.msra.mxu0 0
        %1093 = vmatprep.subr.bf16.mxu0 0
        %1094 = vmatpush1.bf16.xpose.msra.mxu0 0
        %1095 = vmatprep.subr.bf16.mxu0 0
        %1096 = vmatpush1.bf16.xpose.msra.mxu0 0
        %1097 = vmatprep.subr.bf16.mxu0 0
        %1098 = vmatpush1.bf16.xpose.msra.mxu0 0
        %1099 = vmatprep.subr.bf16.mxu0 0
        %1100 = vmatpush1.bf16.xpose.msra.mxu0 0
        %1101 = vmatprep.subr.bf16.mxu0 0
        %1102 = vmatpush1.bf16.xpose.msra.mxu0 0
        %1103 = vmatprep.subr.bf16.mxu0 0
        %1104 = vmatpush1.bf16.xpose.msra.mxu0 0
        %1105 = vmatprep.subr.bf16.mxu0 0
        %1106 = vmatpush1.bf16.xpose.msra.mxu0 0
        %1107 = vmatprep.subr.bf16.mxu0 0
        %1108 = vmatpush1.bf16.xpose.msra.mxu0 0
        %1109 = vmatprep.mubr.bf16.mxu0 0
        %1110 = vmatmul.mubr.bf16.gmra.mrb[0].mxu0 %v1072
        %v1111 = vpop.f32.mrb[0].mxu0
        %v1112 = vadd.f32 0.0, %v1111
        %v1113 = vpop.f32.mrb[0].mxu0
        %v1114 = vpop.f32.mrb[0].mxu0
        %v1115 = vpop.f32.mrb[0].mxu0
        %1116 = vdwg.mxu0
        %v1117 = vsel %vm1070, %v1112, -inf
        %1118 = vmax.xlane.f32.xlu0 %v1117
        %v1119 = vpop.xlane.xlu0 %1118
        %v1120 = vsub.f32 %v1112, %v1119
        %v1121 = vmul.f32 %v1120, 1.442695
        %v1122 = vpow.pop %v1121
        %v1123 = vsel %vm1070, %v1122, 0.0
        %1124 = vadd.xlane.f32.xlu0 %v1123
        %v1125 = vpop.xlane.xlu0 %1124
        %v1126 = vpack.c.bf16 %v1122, %v1122
        %v1127 = vld [vmem:[#allocation3] sm:$0xf]
        %v1129 = vsel %vm1070, %v1126, 0
        %vm1131 = vcmask 1043456
        %v1133 = vsel %vm1131, %v1127, 0
        %1135 = vmatprep.subr.bf16.mxu0 0
        %1136 = vmatpush1.bf16.msra.mxu0 %v1133
        %1137 = vmatprep.subr.bf16.mxu0 0
        %1138 = vmatpush1.bf16.msra.mxu0 0
        %1139 = vmatprep.subr.bf16.mxu0 0
        %1140 = vmatpush1.bf16.msra.mxu0 0
        %1141 = vmatprep.subr.bf16.mxu0 0
        %1142 = vmatpush1.bf16.msra.mxu0 0
        %1143 = vmatprep.subr.bf16.mxu0 0
        %1144 = vmatpush1.bf16.msra.mxu0 0
        %1145 = vmatprep.subr.bf16.mxu0 0
        %1146 = vmatpush1.bf16.msra.mxu0 0
        %1147 = vmatprep.subr.bf16.mxu0 0
        %1148 = vmatpush1.bf16.msra.mxu0 0
        %1149 = vmatprep.subr.bf16.mxu0 0
        %1150 = vmatpush1.bf16.msra.mxu0 0
        %1151 = vmatprep.subr.bf16.mxu0 0
        %1152 = vmatpush1.bf16.msra.mxu0 0
        %1153 = vmatprep.subr.bf16.mxu0 0
        %1154 = vmatpush1.bf16.msra.mxu0 0
        %1155 = vmatprep.subr.bf16.mxu0 0
        %1156 = vmatpush1.bf16.msra.mxu0 0
        %1157 = vmatprep.subr.bf16.mxu0 0
        %1158 = vmatpush1.bf16.msra.mxu0 0
        %1159 = vmatprep.subr.bf16.mxu0 0
        %1160 = vmatpush1.bf16.msra.mxu0 0
        %1161 = vmatprep.subr.bf16.mxu0 0
        %1162 = vmatpush1.bf16.msra.mxu0 0
        %1163 = vmatprep.subr.bf16.mxu0 0
        %1164 = vmatpush1.bf16.msra.mxu0 0
        %1165 = vmatprep.subr.bf16.mxu0 0
        %1166 = vmatpush1.bf16.msra.mxu0 0
        %1167 = vmatprep.mubr.bf16.mxu0 0
        %1168 = vmatmul.mubr.bf16.gmra.mrb[0].mxu0 %v1129
        %v1169 = vpop.f32.mrb[0].mxu0
        %v1170 = vadd.f32 0.0, %v1169
        %v1171 = vpop.f32.mrb[0].mxu0
        %v1172 = vpop.f32.mrb[0].mxu0
        %v1173 = vpop.f32.mrb[0].mxu0
        %1174 = vdwg.mxu0
        %v1175 = vrcp.pop %v1125
        %v1176 = vmul.f32 %v1170, %v1175
        %1177 = vst.msk [vmem:[#allocation4] sm:$0xff] %vm1070, %v1176
        %v1178 = vld [vmem:[#allocation2] sm:$0xf]
        %1180 = vrot.lane.b32.xlu0 %v1068, 120
        %v1181 = vpop.permute.xlu0 %1180
        %v1183 = vunpack.c.l.b16 %v1178
        %v1184 = vpack.c.b16 %v1183, %v1183
        %1185 = vrot.lane.b32.xlu0 %v1184, 120
        %v1186 = vpop.permute.xlu0 %1185
        %v1188 = vsel %vm1070, %v1181, 0
        %v1191 = vsel %vm1070, %v1186, 0
        %1193 = vmatprep.subr.bf16.mxu0 0
        %1194 = vmatpush1.bf16.xpose.msra.mxu0 %v1191
        %1195 = vmatprep.subr.bf16.mxu0 0
        %1196 = vmatpush1.bf16.xpose.msra.mxu0 0
        %1197 = vmatprep.subr.bf16.mxu0 0
        %1198 = vmatpush1.bf16.xpose.msra.mxu0 0
        %1199 = vmatprep.subr.bf16.mxu0 0
        %1200 = vmatpush1.bf16.xpose.msra.mxu0 0
        %1201 = vmatprep.subr.bf16.mxu0 0
        %1202 = vmatpush1.bf16.xpose.msra.mxu0 0
        %1203 = vmatprep.subr.bf16.mxu0 0
        %1204 = vmatpush1.bf16.xpose.msra.mxu0 0
        %1205 = vmatprep.subr.bf16.mxu0 0
        %1206 = vmatpush1.bf16.xpose.msra.mxu0 0
        %1207 = vmatprep.subr.bf16.mxu0 0
        %1208 = vmatpush1.bf16.xpose.msra.mxu0 0
        %1209 = vmatprep.subr.bf16.mxu0 0
        %1210 = vmatpush1.bf16.xpose.msra.mxu0 0
        %1211 = vmatprep.subr.bf16.mxu0 0
        %1212 = vmatpush1.bf16.xpose.msra.mxu0 0
        %1213 = vmatprep.subr.bf16.mxu0 0
        %1214 = vmatpush1.bf16.xpose.msra.mxu0 0
        %1215 = vmatprep.subr.bf16.mxu0 0
        %1216 = vmatpush1.bf16.xpose.msra.mxu0 0
        %1217 = vmatprep.subr.bf16.mxu0 0
        %1218 = vmatpush1.bf16.xpose.msra.mxu0 0
        %1219 = vmatprep.subr.bf16.mxu0 0
        %1220 = vmatpush1.bf16.xpose.msra.mxu0 0
        %1221 = vmatprep.subr.bf16.mxu0 0
        %1222 = vmatpush1.bf16.xpose.msra.mxu0 0
        %1223 = vmatprep.subr.bf16.mxu0 0
        %1224 = vmatpush1.bf16.xpose.msra.mxu0 0
        %1225 = vmatprep.mubr.bf16.mxu0 0
        %1226 = vmatmul.mubr.bf16.gmra.mrb[0].mxu0 %v1188
        %v1227 = vpop.f32.mrb[0].mxu0
        %v1228 = vadd.f32 0.0, %v1227
        %v1229 = vpop.f32.mrb[0].mxu0
        %v1230 = vpop.f32.mrb[0].mxu0
        %v1231 = vpop.f32.mrb[0].mxu0
        %1232 = vdwg.mxu0
        %v1233 = vsel %vm1070, %v1228, -inf
        %1234 = vmax.xlane.f32.xlu0 %v1233
        %v1235 = vpop.xlane.xlu0 %1234
        %v1236 = vsub.f32 %v1228, %v1235
        %v1237 = vmul.f32 %v1236, 1.442695
        %v1238 = vpow.pop %v1237
        %v1239 = vsel %vm1070, %v1238, 0.0
        %1240 = vadd.xlane.f32.xlu0 %v1239
        %v1241 = vpop.xlane.xlu0 %1240
        %v1242 = vpack.c.bf16 %v1238, %v1238
        %v1243 = vld [vmem:[#allocation3] sm:$0xf]
        %v1245 = vunpack.c.l.b16 %v1243
        %v1246 = vpack.c.b16 %v1245, %v1245
        %1247 = vrot.lane.b32.xlu0 %v1246, 120
        %v1248 = vpop.permute.xlu0 %1247
        %v1250 = vsel %vm1070, %v1242, 0
        %v1253 = vsel %vm1131, %v1248, 0
        %1255 = vmatprep.subr.bf16.mxu0 0
        %1256 = vmatpush1.bf16.msra.mxu0 %v1253
        %1257 = vmatprep.subr.bf16.mxu0 0
        %1258 = vmatpush1.bf16.msra.mxu0 0
        %1259 = vmatprep.subr.bf16.mxu0 0
        %1260 = vmatpush1.bf16.msra.mxu0 0
        %1261 = vmatprep.subr.bf16.mxu0 0
        %1262 = vmatpush1.bf16.msra.mxu0 0
        %1263 = vmatprep.subr.bf16.mxu0 0
        %1264 = vmatpush1.bf16.msra.mxu0 0
        %1265 = vmatprep.subr.bf16.mxu0 0
        %1266 = vmatpush1.bf16.msra.mxu0 0
        %1267 = vmatprep.subr.bf16.mxu0 0
        %1268 = vmatpush1.bf16.msra.mxu0 0
        %1269 = vmatprep.subr.bf16.mxu0 0
        %1270 = vmatpush1.bf16.msra.mxu0 0
        %1271 = vmatprep.subr.bf16.mxu0 0
        %1272 = vmatpush1.bf16.msra.mxu0 0
        %1273 = vmatprep.subr.bf16.mxu0 0
        %1274 = vmatpush1.bf16.msra.mxu0 0
        %1275 = vmatprep.subr.bf16.mxu0 0
        %1276 = vmatpush1.bf16.msra.mxu0 0
        %1277 = vmatprep.subr.bf16.mxu0 0
        %1278 = vmatpush1.bf16.msra.mxu0 0
        %1279 = vmatprep.subr.bf16.mxu0 0
        %1280 = vmatpush1.bf16.msra.mxu0 0
        %1281 = vmatprep.subr.bf16.mxu0 0
        %1282 = vmatpush1.bf16.msra.mxu0 0
        %1283 = vmatprep.subr.bf16.mxu0 0
        %1284 = vmatpush1.bf16.msra.mxu0 0
        %1285 = vmatprep.subr.bf16.mxu0 0
        %1286 = vmatpush1.bf16.msra.mxu0 0
        %1287 = vmatprep.mubr.bf16.mxu0 0
        %1288 = vmatmul.mubr.bf16.gmra.mrb[0].mxu0 %v1250
        %v1289 = vpop.f32.mrb[0].mxu0
        %v1290 = vadd.f32 0.0, %v1289
        %v1291 = vpop.f32.mrb[0].mxu0
        %v1292 = vpop.f32.mrb[0].mxu0
        %v1293 = vpop.f32.mrb[0].mxu0
        %1294 = vdwg.mxu0
        %v1295 = vrcp.pop %v1241
        %v1296 = vmul.f32 %v1290, %v1295
        %1298 = vrot.lane.b32.xlu0 %v1296, 8
        %v1299 = vpop.permute.xlu0 %1298
        %vm1301 = vcmask 130112
        %1302 = vst.msk [vmem:[#allocation4] sm:$0xff] %vm1301, %v1299
        %v1303 = vld [vmem:[#allocation2] sm:$0xf]
        %1304 = vrot.lane.b32.xlu0 %v1068, 112
        %v1305 = vpop.permute.xlu0 %1304
        %v1307 = vunpack.c.l.b16 %v1303
        %v1308 = vpack.c.b16 %v1307, %v1307
        %1309 = vrot.lane.b32.xlu0 %v1308, 112
        %v1310 = vpop.permute.xlu0 %1309
        %v1312 = vsel %vm1070, %v1305, 0
        %v1315 = vsel %vm1070, %v1310, 0
        %1317 = vmatprep.subr.bf16.mxu0 0
        %1318 = vmatpush1.bf16.xpose.msra.mxu0 %v1315
        %1319 = vmatprep.subr.bf16.mxu0 0
        %1320 = vmatpush1.bf16.xpose.msra.mxu0 0
        %1321 = vmatprep.subr.bf16.mxu0 0
        %1322 = vmatpush1.bf16.xpose.msra.mxu0 0
        %1323 = vmatprep.subr.bf16.mxu0 0
        %1324 = vmatpush1.bf16.xpose.msra.mxu0 0
        %1325 = vmatprep.subr.bf16.mxu0 0
        %1326 = vmatpush1.bf16.xpose.msra.mxu0 0
        %1327 = vmatprep.subr.bf16.mxu0 0
        %1328 = vmatpush1.bf16.xpose.msra.mxu0 0
        %1329 = vmatprep.subr.bf16.mxu0 0
        %1330 = vmatpush1.bf16.xpose.msra.mxu0 0
        %1331 = vmatprep.subr.bf16.mxu0 0
        %1332 = vmatpush1.bf16.xpose.msra.mxu0 0
        %1333 = vmatprep.subr.bf16.mxu0 0
        %1334 = vmatpush1.bf16.xpose.msra.mxu0 0
        %1335 = vmatprep.subr.bf16.mxu0 0
        %1336 = vmatpush1.bf16.xpose.msra.mxu0 0
        %1337 = vmatprep.subr.bf16.mxu0 0
        %1338 = vmatpush1.bf16.xpose.msra.mxu0 0
        %1339 = vmatprep.subr.bf16.mxu0 0
        %1340 = vmatpush1.bf16.xpose.msra.mxu0 0
        %1341 = vmatprep.subr.bf16.mxu0 0
        %1342 = vmatpush1.bf16.xpose.msra.mxu0 0
        %1343 = vmatprep.subr.bf16.mxu0 0
        %1344 = vmatpush1.bf16.xpose.msra.mxu0 0
        %1345 = vmatprep.subr.bf16.mxu0 0
        %1346 = vmatpush1.bf16.xpose.msra.mxu0 0
        %1347 = vmatprep.subr.bf16.mxu0 0
        %1348 = vmatpush1.bf16.xpose.msra.mxu0 0
        %1349 = vmatprep.mubr.bf16.mxu0 0
        %1350 = vmatmul.mubr.bf16.gmra.mrb[0].mxu0 %v1312
        %v1351 = vpop.f32.mrb[0].mxu0
        %v1352 = vadd.f32 0.0, %v1351
        %v1353 = vpop.f32.mrb[0].mxu0
        %v1354 = vpop.f32.mrb[0].mxu0
        %v1355 = vpop.f32.mrb[0].mxu0
        %1356 = vdwg.mxu0
        %v1357 = vsel %vm1070, %v1352, -inf
        %1358 = vmax.xlane.f32.xlu0 %v1357
        %v1359 = vpop.xlane.xlu0 %1358
        %v1360 = vsub.f32 %v1352, %v1359
        %v1361 = vmul.f32 %v1360, 1.442695
        %v1362 = vpow.pop %v1361
        %v1363 = vsel %vm1070, %v1362, 0.0
        %1364 = vadd.xlane.f32.xlu0 %v1363
        %v1365 = vpop.xlane.xlu0 %1364
        %v1366 = vpack.c.bf16 %v1362, %v1362
        %v1367 = vld [vmem:[#allocation3] sm:$0xf]
        %v1369 = vunpack.c.l.b16 %v1367
        %v1370 = vpack.c.b16 %v1369, %v1369
        %1371 = vrot.lane.b32.xlu0 %v1370, 112
        %v1372 = vpop.permute.xlu0 %1371
        %v1374 = vsel %vm1070, %v1366, 0
        %v1377 = vsel %vm1131, %v1372, 0
        %1379 = vmatprep.subr.bf16.mxu0 0
        %1380 = vmatpush1.bf16.msra.mxu0 %v1377
        %1381 = vmatprep.subr.bf16.mxu0 0
        %1382 = vmatpush1.bf16.msra.mxu0 0
        %1383 = vmatprep.subr.bf16.mxu0 0
        %1384 = vmatpush1.bf16.msra.mxu0 0
        %1385 = vmatprep.subr.bf16.mxu0 0
        %1386 = vmatpush1.bf16.msra.mxu0 0
        %1387 = vmatprep.subr.bf16.mxu0 0
        %1388 = vmatpush1.bf16.msra.mxu0 0
        %1389 = vmatprep.subr.bf16.mxu0 0
        %1390 = vmatpush1.bf16.msra.mxu0 0
        %1391 = vmatprep.subr.bf16.mxu0 0
        %1392 = vmatpush1.bf16.msra.mxu0 0
        %1393 = vmatprep.subr.bf16.mxu0 0
        %1394 = vmatpush1.bf16.msra.mxu0 0
        %1395 = vmatprep.subr.bf16.mxu0 0
        %1396 = vmatpush1.bf16.msra.mxu0 0
        %1397 = vmatprep.subr.bf16.mxu0 0
        %1398 = vmatpush1.bf16.msra.mxu0 0
        %1399 = vmatprep.subr.bf16.mxu0 0
        %1400 = vmatpush1.bf16.msra.mxu0 0
        %1401 = vmatprep.subr.bf16.mxu0 0
        %1402 = vmatpush1.bf16.msra.mxu0 0
        %1403 = vmatprep.subr.bf16.mxu0 0
        %1404 = vmatpush1.bf16.msra.mxu0 0
        %1405 = vmatprep.subr.bf16.mxu0 0
        %1406 = vmatpush1.bf16.msra.mxu0 0
        %1407 = vmatprep.subr.bf16.mxu0 0
        %1408 = vmatpush1.bf16.msra.mxu0 0
        %1409 = vmatprep.subr.bf16.mxu0 0
        %1410 = vmatpush1.bf16.msra.mxu0 0
        %1411 = vmatprep.mubr.bf16.mxu0 0
        %1412 = vmatmul.mubr.bf16.gmra.mrb[0].mxu0 %v1374
        %v1413 = vpop.f32.mrb[0].mxu0
        %v1414 = vadd.f32 0.0, %v1413
        %v1415 = vpop.f32.mrb[0].mxu0
        %v1416 = vpop.f32.mrb[0].mxu0
        %v1417 = vpop.f32.mrb[0].mxu0
        %1418 = vdwg.mxu0
        %v1419 = vrcp.pop %v1365
        %v1420 = vmul.f32 %v1414, %v1419
        %1422 = vrot.lane.b32.xlu0 %v1420, 16
        %v1423 = vpop.permute.xlu0 %1422
        %vm1425 = vcmask 195712
        %1426 = vst.msk [vmem:[#allocation4] sm:$0xff] %vm1425, %v1423
        %v1427 = vld [vmem:[#allocation2] sm:$0xf]
        %1428 = vrot.lane.b32.xlu0 %v1068, 104
        %v1429 = vpop.permute.xlu0 %1428
        %v1431 = vunpack.c.l.b16 %v1427
        %v1432 = vpack.c.b16 %v1431, %v1431
        %1433 = vrot.lane.b32.xlu0 %v1432, 104
        %v1434 = vpop.permute.xlu0 %1433
        %v1436 = vsel %vm1070, %v1429, 0
        %v1439 = vsel %vm1070, %v1434, 0
        %1441 = vmatprep.subr.bf16.mxu0 0
        %1442 = vmatpush1.bf16.xpose.msra.mxu0 %v1439
        %1443 = vmatprep.subr.bf16.mxu0 0
        %1444 = vmatpush1.bf16.xpose.msra.mxu0 0
        %1445 = vmatprep.subr.bf16.mxu0 0
        %1446 = vmatpush1.bf16.xpose.msra.mxu0 0
        %1447 = vmatprep.subr.bf16.mxu0 0
        %1448 = vmatpush1.bf16.xpose.msra.mxu0 0
        %1449 = vmatprep.subr.bf16.mxu0 0
        %1450 = vmatpush1.bf16.xpose.msra.mxu0 0
        %1451 = vmatprep.subr.bf16.mxu0 0
        %1452 = vmatpush1.bf16.xpose.msra.mxu0 0
        %1453 = vmatprep.subr.bf16.mxu0 0
        %1454 = vmatpush1.bf16.xpose.msra.mxu0 0
        %1455 = vmatprep.subr.bf16.mxu0 0
        %1456 = vmatpush1.bf16.xpose.msra.mxu0 0
        %1457 = vmatprep.subr.bf16.mxu0 0
        %1458 = vmatpush1.bf16.xpose.msra.mxu0 0
        %1459 = vmatprep.subr.bf16.mxu0 0
        %1460 = vmatpush1.bf16.xpose.msra.mxu0 0
        %1461 = vmatprep.subr.bf16.mxu0 0
        %1462 = vmatpush1.bf16.xpose.msra.mxu0 0
        %1463 = vmatprep.subr.bf16.mxu0 0
        %1464 = vmatpush1.bf16.xpose.msra.mxu0 0
        %1465 = vmatprep.subr.bf16.mxu0 0
        %1466 = vmatpush1.bf16.xpose.msra.mxu0 0
        %1467 = vmatprep.subr.bf16.mxu0 0
        %1468 = vmatpush1.bf16.xpose.msra.mxu0 0
        %1469 = vmatprep.subr.bf16.mxu0 0
        %1470 = vmatpush1.bf16.xpose.msra.mxu0 0
        %1471 = vmatprep.subr.bf16.mxu0 0
        %1472 = vmatpush1.bf16.xpose.msra.mxu0 0
        %1473 = vmatprep.mubr.bf16.mxu0 0
        %1474 = vmatmul.mubr.bf16.gmra.mrb[0].mxu0 %v1436
        %v1475 = vpop.f32.mrb[0].mxu0
        %v1476 = vadd.f32 0.0, %v1475
        %v1477 = vpop.f32.mrb[0].mxu0
        %v1478 = vpop.f32.mrb[0].mxu0
        %v1479 = vpop.f32.mrb[0].mxu0
        %1480 = vdwg.mxu0
        %v1481 = vsel %vm1070, %v1476, -inf
        %1482 = vmax.xlane.f32.xlu0 %v1481
        %v1483 = vpop.xlane.xlu0 %1482
        %v1484 = vsub.f32 %v1476, %v1483
        %v1485 = vmul.f32 %v1484, 1.442695
        %v1486 = vpow.pop %v1485
        %v1487 = vsel %vm1070, %v1486, 0.0
        %1488 = vadd.xlane.f32.xlu0 %v1487
        %v1489 = vpop.xlane.xlu0 %1488
        %v1490 = vpack.c.bf16 %v1486, %v1486
        %v1491 = vld [vmem:[#allocation3] sm:$0xf]
        %v1493 = vunpack.c.l.b16 %v1491
        %v1494 = vpack.c.b16 %v1493, %v1493
        %1495 = vrot.lane.b32.xlu0 %v1494, 104
        %v1496 = vpop.permute.xlu0 %1495
        %v1498 = vsel %vm1070, %v1490, 0
        %v1501 = vsel %vm1131, %v1496, 0
        %1503 = vmatprep.subr.bf16.mxu0 0
        %1504 = vmatpush1.bf16.msra.mxu0 %v1501
        %1505 = vmatprep.subr.bf16.mxu0 0
        %1506 = vmatpush1.bf16.msra.mxu0 0
        %1507 = vmatprep.subr.bf16.mxu0 0
        %1508 = vmatpush1.bf16.msra.mxu0 0
        %1509 = vmatprep.subr.bf16.mxu0 0
        %1510 = vmatpush1.bf16.msra.mxu0 0
        %1511 = vmatprep.subr.bf16.mxu0 0
        %1512 = vmatpush1.bf16.msra.mxu0 0
        %1513 = vmatprep.subr.bf16.mxu0 0
        %1514 = vmatpush1.bf16.msra.mxu0 0
        %1515 = vmatprep.subr.bf16.mxu0 0
        %1516 = vmatpush1.bf16.msra.mxu0 0
        %1517 = vmatprep.subr.bf16.mxu0 0
        %1518 = vmatpush1.bf16.msra.mxu0 0
        %1519 = vmatprep.subr.bf16.mxu0 0
        %1520 = vmatpush1.bf16.msra.mxu0 0
        %1521 = vmatprep.subr.bf16.mxu0 0
        %1522 = vmatpush1.bf16.msra.mxu0 0
        %1523 = vmatprep.subr.bf16.mxu0 0
        %1524 = vmatpush1.bf16.msra.mxu0 0
        %1525 = vmatprep.subr.bf16.mxu0 0
        %1526 = vmatpush1.bf16.msra.mxu0 0
        %1527 = vmatprep.subr.bf16.mxu0 0
        %1528 = vmatpush1.bf16.msra.mxu0 0
        %1529 = vmatprep.subr.bf16.mxu0 0
        %1530 = vmatpush1.bf16.msra.mxu0 0
        %1531 = vmatprep.subr.bf16.mxu0 0
        %1532 = vmatpush1.bf16.msra.mxu0 0
        %1533 = vmatprep.subr.bf16.mxu0 0
        %1534 = vmatpush1.bf16.msra.mxu0 0
        %1535 = vmatprep.mubr.bf16.mxu0 0
        %1536 = vmatmul.mubr.bf16.gmra.mrb[0].mxu0 %v1498
        %v1537 = vpop.f32.mrb[0].mxu0
        %v1538 = vadd.f32 0.0, %v1537
        %v1539 = vpop.f32.mrb[0].mxu0
        %v1540 = vpop.f32.mrb[0].mxu0
        %v1541 = vpop.f32.mrb[0].mxu0
        %1542 = vdwg.mxu0
        %v1543 = vrcp.pop %v1489
        %v1544 = vmul.f32 %v1538, %v1543
        %1546 = vrot.lane.b32.xlu0 %v1544, 24
        %v1547 = vpop.permute.xlu0 %1546
        %vm1549 = vcmask 261312
        %1550 = vst.msk [vmem:[#allocation4] sm:$0xff] %vm1549, %v1547
        %v1551 = vld [vmem:[#allocation4] sm:$0xff]
        %v1552 = vpack.c.bf16 %v1551, %v1551
        %v1553 = vld [vmem:[#allocation20] sm:$0xf]
        %v1554 = vld [vmem:[#allocation20 + $0x4] sm:$0xf]
        %v1555 = vld [vmem:[#allocation20 + $0x8] sm:$0xf]
        %v1556 = vld [vmem:[#allocation20 + $0xc] sm:$0xf]
        %v1557 = vld [vmem:[#allocation22] sm:$0x1]
        %v1559 = vlaneseq
        %v1560 = vshrl.u32 %v1559, 7
        %v1561 = vsub.s32 0, %v1560
        %v1562 = vrot.slane %v1557, %v1561
        %v1568 = vunpack.c.l.b16 %v1553
        %v1569 = vunpack.c.l.b16 %v1554
        %v1570 = vunpack.c.l.b16 %v1555
        %v1571 = vunpack.c.l.b16 %v1556
        %v1572 = vpack.c.b16 %v1569, %v1568
        %v1573 = vpack.c.b16 %v1571, %v1570
        %v1577 = vsel %vm972, %v1552, 0
        %1579 = vmatprep.subr.bf16.mxu0 0
        %1580 = vmatpush1.bf16.msra.mxu0 %v1572
        %1581 = vmatprep.subr.bf16.mxu0 0
        %1582 = vmatpush1.bf16.msra.mxu0 %v1573
        %1583 = vmatprep.subr.bf16.mxu0 0
        %1584 = vmatpush1.bf16.msra.mxu0 0
        %1585 = vmatprep.subr.bf16.mxu0 0
        %1586 = vmatpush1.bf16.msra.mxu0 0
        %1587 = vmatprep.subr.bf16.mxu0 0
        %1588 = vmatpush1.bf16.msra.mxu0 0
        %1589 = vmatprep.subr.bf16.mxu0 0
        %1590 = vmatpush1.bf16.msra.mxu0 0
        %1591 = vmatprep.subr.bf16.mxu0 0
        %1592 = vmatpush1.bf16.msra.mxu0 0
        %1593 = vmatprep.subr.bf16.mxu0 0
        %1594 = vmatpush1.bf16.msra.mxu0 0
        %1595 = vmatprep.subr.bf16.mxu0 0
        %1596 = vmatpush1.bf16.msra.mxu0 0
        %1597 = vmatprep.subr.bf16.mxu0 0
        %1598 = vmatpush1.bf16.msra.mxu0 0
        %1599 = vmatprep.subr.bf16.mxu0 0
        %1600 = vmatpush1.bf16.msra.mxu0 0
        %1601 = vmatprep.subr.bf16.mxu0 0
        %1602 = vmatpush1.bf16.msra.mxu0 0
        %1603 = vmatprep.subr.bf16.mxu0 0
        %1604 = vmatpush1.bf16.msra.mxu0 0
        %1605 = vmatprep.subr.bf16.mxu0 0
        %1606 = vmatpush1.bf16.msra.mxu0 0
        %1607 = vmatprep.subr.bf16.mxu0 0
        %1608 = vmatpush1.bf16.msra.mxu0 0
        %1609 = vmatprep.subr.bf16.mxu0 0
        %1610 = vmatpush1.bf16.msra.mxu0 0
        %1611 = vmatprep.mubr.bf16.mxu0 0
        %1612 = vmatmul.mubr.bf16.gmra.mrb[0].mxu0 %v1577
        %v1613 = vpop.f32.mrb[0].mxu0
        %v1614 = vadd.f32 %v1562, %v1613
        %v1615 = vpop.f32.mrb[0].mxu0
        %v1616 = vpop.f32.mrb[0].mxu0
        %v1617 = vpop.f32.mrb[0].mxu0
        %1618 = vdwg.mxu0
        %v1619 = vadd.f32 %v969, %v1614
        %v1620 = vld [vmem:[#allocation23] sm:$0x1]
        %v1621 = vld [vmem:[#allocation25] sm:$0x1]
        %v1622 = vsel %vm972, %v1619, 0.0
        %1623 = vadd.xlane.f32.xlu0 %v1622
        %v1624 = vpop.xlane.xlu0 %1623
        %v1625 = vmul.f32 %v1624, %v976
        %v1626 = vsub.f32 %v1619, %v1625
        %v1627 = vmul.f32 %v1626, %v1626
        %v1628 = vsel %vm972, %v1627, 0.0
        %1629 = vadd.xlane.f32.xlu0 %v1628
        %v1630 = vpop.xlane.xlu0 %1629
        %v1631 = vmul.f32 %v1630, %v976
        %v1632 = vadd.f32 %v1631, 1e-06
        %v1633 = vrsqrt.pop %v1632
        %v1634 = vmul.f32 %v1626, %v1633
        %v1636 = vlaneseq
        %v1637 = vshrl.u32 %v1636, 7
        %v1638 = vsub.s32 0, %v1637
        %v1639 = vrot.slane %v1620, %v1638
        %v1641 = vmul.f32 %v1634, %v1639
        %v1643 = vlaneseq
        %v1644 = vshrl.u32 %v1643, 7
        %v1645 = vsub.s32 0, %v1644
        %v1646 = vrot.slane %v1621, %v1645
        %v1648 = vadd.f32 %v1641, %v1646
        %v1649 = vpack.c.bf16 %v1648, %v1648
        %v1650 = vld [vmem:[#allocation26] sm:$0xf]
        %v1651 = vld [vmem:[#allocation26 + $0x4] sm:$0xf]
        %v1652 = vld [vmem:[#allocation26 + $0x8] sm:$0xf]
        %v1653 = vld [vmem:[#allocation26 + $0xc] sm:$0xf]
        %v1654 = vld [vmem:[#allocation28] sm:$0x1]
        %v1656 = vlaneseq
        %v1657 = vshrl.u32 %v1656, 7
        %v1658 = vsub.s32 0, %v1657
        %v1659 = vrot.slane %v1654, %v1658
        %v1665 = vunpack.c.l.b16 %v1650
        %v1666 = vunpack.c.l.b16 %v1651
        %v1667 = vunpack.c.l.b16 %v1652
        %v1668 = vunpack.c.l.b16 %v1653
        %v1669 = vpack.c.b16 %v1666, %v1665
        %v1670 = vpack.c.b16 %v1668, %v1667
        %v1674 = vsel %vm972, %v1649, 0
        %1676 = vmatprep.subr.bf16.mxu0 0
        %1677 = vmatpush1.bf16.msra.mxu0 %v1669
        %1678 = vmatprep.subr.bf16.mxu0 0
        %1679 = vmatpush1.bf16.msra.mxu0 %v1670
        %1680 = vmatprep.subr.bf16.mxu0 0
        %1681 = vmatpush1.bf16.msra.mxu0 0
        %1682 = vmatprep.subr.bf16.mxu0 0
        %1683 = vmatpush1.bf16.msra.mxu0 0
        %1684 = vmatprep.subr.bf16.mxu0 0
        %1685 = vmatpush1.bf16.msra.mxu0 0
        %1686 = vmatprep.subr.bf16.mxu0 0
        %1687 = vmatpush1.bf16.msra.mxu0 0
        %1688 = vmatprep.subr.bf16.mxu0 0
        %1689 = vmatpush1.bf16.msra.mxu0 0
        %1690 = vmatprep.subr.bf16.mxu0 0
        %1691 = vmatpush1.bf16.msra.mxu0 0
        %1692 = vmatprep.subr.bf16.mxu0 0
        %1693 = vmatpush1.bf16.msra.mxu0 0
        %1694 = vmatprep.subr.bf16.mxu0 0
        %1695 = vmatpush1.bf16.msra.mxu0 0
        %1696 = vmatprep.subr.bf16.mxu0 0
        %1697 = vmatpush1.bf16.msra.mxu0 0
        %1698 = vmatprep.subr.bf16.mxu0 0
        %1699 = vmatpush1.bf16.msra.mxu0 0
        %1700 = vmatprep.subr.bf16.mxu0 0
        %1701 = vmatpush1.bf16.msra.mxu0 0
        %1702 = vmatprep.subr.bf16.mxu0 0
        %1703 = vmatpush1.bf16.msra.mxu0 0
        %1704 = vmatprep.subr.bf16.mxu0 0
        %1705 = vmatpush1.bf16.msra.mxu0 0
        %1706 = vmatprep.subr.bf16.mxu0 0
        %1707 = vmatpush1.bf16.msra.mxu0 0
        %1708 = vmatprep.mubr.bf16.mxu0 0
        %1709 = vmatmul.mubr.bf16.gmra.mrb[0].mxu0 %v1674
        %v1710 = vpop.f32.mrb[0].mxu0
        %v1711 = vadd.f32 %v1659, %v1710
        %v1712 = vpop.f32.mrb[0].mxu0
        %v1713 = vpop.f32.mrb[0].mxu0
        %v1714 = vpop.f32.mrb[0].mxu0
        %1715 = vdwg.mxu0
        %v1716 = vmul.f32 %v1711, 0.5
        %v1717 = vmul.f32 %v1711, 0.044715
        %v1718 = vmul.f32 %v1717, %v1711
        %v1719 = vmul.f32 %v1718, %v1711
        %v1720 = vadd.f32 %v1711, %v1719
        %v1721 = vmul.f32 %v1720, 0.7978846
        %v1722 = vtanh.pop %v1721
        %v1723 = vadd.f32 %v1722, 1.0
        %v1724 = vmul.f32 %v1716, %v1723
        %v1725 = vpack.c.bf16 %v1724, %v1724
        %v1726 = vld [vmem:[#allocation29] sm:$0xf]
        %v1727 = vld [vmem:[#allocation29 + $0x4] sm:$0xf]
        %v1728 = vld [vmem:[#allocation29 + $0x8] sm:$0xf]
        %v1729 = vld [vmem:[#allocation29 + $0xc] sm:$0xf]
        %v1730 = vld [vmem:[#allocation29 + $0x10] sm:$0xf]
        %v1731 = vld [vmem:[#allocation29 + $0x14] sm:$0xf]
        %v1732 = vld [vmem:[#allocation29 + $0x18] sm:$0xf]
        %v1733 = vld [vmem:[#allocation29 + $0x1c] sm:$0xf]
        %v1734 = vld [vmem:[#allocation29 + $0x20] sm:$0xf]
        %v1735 = vld [vmem:[#allocation29 + $0x24] sm:$0xf]
        %v1736 = vld [vmem:[#allocation29 + $0x28] sm:$0xf]
        %v1737 = vld [vmem:[#allocation29 + $0x2c] sm:$0xf]
        %v1738 = vld [vmem:[#allocation29 + $0x30] sm:$0xf]
        %v1739 = vld [vmem:[#allocation29 + $0x34] sm:$0xf]
        %v1740 = vld [vmem:[#allocation29 + $0x38] sm:$0xf]
        %v1741 = vld [vmem:[#allocation29 + $0x3c] sm:$0xf]
        %v1742 = vld [vmem:[#allocation31] sm:$0x1]
        %v1744 = vlaneseq
        %v1745 = vshrl.u32 %v1744, 7
        %v1746 = vsub.s32 0, %v1745
        %v1747 = vrot.slane %v1742, %v1746
        %v1765 = vunpack.c.l.b16 %v1726
        %v1766 = vunpack.c.l.b16 %v1727
        %v1767 = vunpack.c.l.b16 %v1728
        %v1768 = vunpack.c.l.b16 %v1729
        %v1769 = vunpack.c.l.b16 %v1730
        %v1770 = vunpack.c.l.b16 %v1731
        %v1771 = vunpack.c.l.b16 %v1732
        %v1772 = vunpack.c.l.b16 %v1733
        %v1773 = vunpack.c.l.b16 %v1734
        %v1774 = vunpack.c.l.b16 %v1735
        %v1775 = vunpack.c.l.b16 %v1736
        %v1776 = vunpack.c.l.b16 %v1737
        %v1777 = vunpack.c.l.b16 %v1738
        %v1778 = vunpack.c.l.b16 %v1739
        %v1779 = vunpack.c.l.b16 %v1740
        %v1780 = vunpack.c.l.b16 %v1741
        %v1781 = vpack.c.b16 %v1766, %v1765
        %v1782 = vpack.c.b16 %v1768, %v1767
        %v1783 = vpack.c.b16 %v1770, %v1769
        %v1784 = vpack.c.b16 %v1772, %v1771
        %v1785 = vpack.c.b16 %v1774, %v1773
        %v1786 = vpack.c.b16 %v1776, %v1775
        %v1787 = vpack.c.b16 %v1778, %v1777
        %v1788 = vpack.c.b16 %v1780, %v1779
        %1797 = vmatprep.subr.bf16.mxu0 0
        %1798 = vmatpush1.bf16.msra.mxu0 %v1781
        %1799 = vmatprep.subr.bf16.mxu0 0
        %1800 = vmatpush1.bf16.msra.mxu0 %v1782
        %1801 = vmatprep.subr.bf16.mxu0 0
        %1802 = vmatpush1.bf16.msra.mxu0 %v1783
        %1803 = vmatprep.subr.bf16.mxu0 0
        %1804 = vmatpush1.bf16.msra.mxu0 %v1784
        %1805 = vmatprep.subr.bf16.mxu0 0
        %1806 = vmatpush1.bf16.msra.mxu0 %v1785
        %1807 = vmatprep.subr.bf16.mxu0 0
        %1808 = vmatpush1.bf16.msra.mxu0 %v1786
        %1809 = vmatprep.subr.bf16.mxu0 0
        %1810 = vmatpush1.bf16.msra.mxu0 %v1787
        %1811 = vmatprep.subr.bf16.mxu0 0
        %1812 = vmatpush1.bf16.msra.mxu0 %v1788
        %1813 = vmatprep.subr.bf16.mxu0 0
        %1814 = vmatpush1.bf16.msra.mxu0 0
        %1815 = vmatprep.subr.bf16.mxu0 0
        %1816 = vmatpush1.bf16.msra.mxu0 0
        %1817 = vmatprep.subr.bf16.mxu0 0
        %1818 = vmatpush1.bf16.msra.mxu0 0
        %1819 = vmatprep.subr.bf16.mxu0 0
        %1820 = vmatpush1.bf16.msra.mxu0 0
        %1821 = vmatprep.subr.bf16.mxu0 0
        %1822 = vmatpush1.bf16.msra.mxu0 0
        %1823 = vmatprep.subr.bf16.mxu0 0
        %1824 = vmatpush1.bf16.msra.mxu0 0
        %1825 = vmatprep.subr.bf16.mxu0 0
        %1826 = vmatpush1.bf16.msra.mxu0 0
        %1827 = vmatprep.subr.bf16.mxu0 0
        %1828 = vmatpush1.bf16.msra.mxu0 0
        %1829 = vmatprep.mubr.bf16.mxu0 0
        %1830 = vmatmul.mubr.bf16.gmra.mrb[0].mxu0 %v1725
        %v1831 = vpop.f32.mrb[0].mxu0
        %v1832 = vadd.f32 %v1747, %v1831
        %v1833 = vpop.f32.mrb[0].mxu0
        %v1834 = vpop.f32.mrb[0].mxu0
        %v1835 = vpop.f32.mrb[0].mxu0
        %1836 = vdwg.mxu0
        %v1837 = vadd.f32 %v1619, %v1832
        %1838 = vst.msk [vmem:[%s789] sm:$0xff] %vm972, %v1837
        %s1839 = sand.u32 %s426, 1
        %s1840 = scalar_lea.sflag [#allocation7], %s1839
        %s1841 = sand.u32 %s426, 1
        %s1842 = smul.addr %s1841, 8
        %s1843 = scalar_lea.vmem [#allocation32], %s1842
        // Predicated region
        $region161: #{tpu_custom_call.1} parent=87 // pred_check
          %p1844 = pneg %p436
        $region162: #{tpu_custom_call.1} parent=87 // pred_check_branch
          %1846 = sbr.rel (%p1844) target = $region164
        $region163: #{tpu_custom_call.1} parent=87 // pred_region
          %s1848 = ssub.s32 128, 128
          %1849 = vsyncadd %s1840, %s1848
          %s1850 = sadd.s32 %s47, %s46
          %s1851 = smul.addr %s1850, 128
          %s1852 = scalar_lea.hbm %s17, %s1851
          %s1854 = sshll.u32 %s1843, 4
          %s1855 = int_to_ptr.vmem [resolvable:$true] %s1854
          %1857 = dma.vmem_to_hbm [thread:$0]  %s1855, 128, %s1852, %s1840
        $region164: #{tpu_custom_call.1} parent=87 // pred_fallthru
          _
      $region88: #{tpu_custom_call.1} parent=5 // pred_fallthru
        _
      %p1858 = scmp.le.s32.totalorder 2, %s37
      // Predicated region
      $region165: #{tpu_custom_call.1} parent=5 // pred_check
        %p1859 = pneg %p1858
      $region166: #{tpu_custom_call.1} parent=5 // pred_check_branch
        %1861 = sbr.rel (%p1859) target = $region168
      $region167: #{tpu_custom_call.1} parent=5 // pred_region
        %s1862 = ssub.s32 %s37, 2
        // Predicated region
        $region169: #{tpu_custom_call.1} parent=167 // pred_check
          %p1863 = pneg %p442
        $region170: #{tpu_custom_call.1} parent=167 // pred_check_branch
          %1865 = sbr.rel (%p1863) target = $region172
        $region171: #{tpu_custom_call.1} parent=167 // pred_region
          %s1866 = sand.u32 %s427, 1
          %s1867 = scalar_lea.sflag [#allocation7], %s1866
          %s1868 = sand.u32 %s427, 1
          %s1869 = smul.addr %s1868, 8
          %s1870 = scalar_lea.vmem [#allocation32], %s1869
          %1871 = dma.done %s1867, 128
        $region172: #{tpu_custom_call.1} parent=167 // pred_fallthru
          _
      $region168: #{tpu_custom_call.1} parent=5 // pred_fallthru
        _
    $region6: #{tpu_custom_call.1} parent=1 // loop_footer
      %s41 = sadd.s32 1, %s37
    $region7: #{tpu_custom_call.1} parent=1 // loop_footer_branch
      %36 = sbr.rel target = $region3
    $region8: #{tpu_custom_call.1} parent=1 // loop_exit
      _
    %1872 = vsyncpa [#allocation6], 1
    %s1873 = scalar_lea.sflag [#allocation6], 1
    %1874 = vsyncpa %s1873, 1
    %1875 = vsyncpa [#allocation9], 1
    %1876 = vsyncpa [#allocation12], 1
    %1877 = vsyncpa [#allocation15], 1
    %1878 = vsyncpa [#allocation18], 1
    %1879 = vsyncpa [#allocation21], 1
    %1880 = vsyncpa [#allocation24], 1
    %1881 = vsyncpa [#allocation27], 1
    %1882 = vsyncpa [#allocation30], 1
    %1883 = vsyncpa [#allocation7], 1
    %s1884 = scalar_lea.sflag [#allocation7], 1
    %1885 = vsyncpa %s1884, 1

</llo_original>
